<compile_context>
chip_gen: v6e
topology: v6e:2x2x1
jax: 0.10.0
libtpu: 0.0.40
codegen_flags: <defaults>
</compile_context>

<pallas_src>
import numpy as np
import jax
import jax.numpy as jnp
from jax.experimental import pallas as pl
from jax.experimental.pallas import tpu as pltpu


# ----------------------------------------------------------------------------
# Fused encoder kernel: everything in VMEM, pure 2-D MXU matmuls.
# ----------------------------------------------------------------------------
def _imf_encoder_kernel(
    xd_ref, xl_ref,                       # input slabs (dfe batch, lte batch)
    s1_ref, w1_ref, b1_ref,               # dfe1
    s2_ref, w2_ref, b2_ref,               # dfe2
    s3_ref, w3_ref, b3_ref,               # dfe3
    s4_ref, w4_ref, b4_ref,               # lte1
    s5_ref, w5_ref, b5_ref,               # lte2
    pool_ref, fcw_ref, fcb_ref,           # folded mean-pool + fc
    f1_ref, f2_ref, f3_ref, tok_ref,      # outputs
):
    def conv_slab(x, s_ref, w_ref, b_ref):
        # x: [B*H, W*Cin] slab  ->  [B*Ho, Wo*Cout] slab (lane dense).
        # One (row-select @ x) @ (structured weight) pair per kernel-tap row.
        out = None
        for i in range(s_ref.shape[0]):          # kh = 3, statically unrolled
            rows = jnp.dot(s_ref[i], x, preferred_element_type=jnp.float32)
            part = jnp.dot(rows, w_ref[i], preferred_element_type=jnp.float32)
            out = part if out is None else out + part
        return jnp.maximum(out + b_ref[...], 0.0)

    # ---- dense_feature_encoder on x_reference --------------------------------
    xd = xd_ref[...]
    f1 = conv_slab(xd, s1_ref, w1_ref, b1_ref)
    f2 = conv_slab(f1, s2_ref, w2_ref, b2_ref)
    f3 = conv_slab(f2, s3_ref, w3_ref, b3_ref)
    f1_ref[...] = f1
    f2_ref[...] = f2
    f3_ref[...] = f3

    # ---- latent_token_encoder on [x_reference ; x_current] (batched 2x) ------
    xl = xl_ref[...]
    h1 = conv_slab(xl, s4_ref, w4_ref, b4_ref)
    h2 = conv_slab(h1, s5_ref, w5_ref, b5_ref)
    pooled = jnp.dot(pool_ref[...], h2, preferred_element_type=jnp.float32)
    tok = jnp.dot(pooled, fcw_ref[...], preferred_element_type=jnp.float32)
    tok_ref[...] = tok + fcb_ref[...]


# ----------------------------------------------------------------------------
# Host-side construction of the structured conv matrices.
#
#   y[b,ho,wo,o] = relu( bias[o] + sum_{i,j,c} w[i,j,c,o] *
#                        x[b, stride*ho+i-pad, stride*wo+j-pad, c] )
#
# With activations as slabs X[b*H+h, w*Cin+c] / Y[b*Ho+ho, wo*Cout+o] this is
#   Y = relu( sum_i S_i @ X @ W_i + bias_slab )
# where S_i selects (and zero-pads) input rows and W_i carries the kernel taps,
# the column stride and the width padding.
# ----------------------------------------------------------------------------
def _build_conv_mats(w, b, B, H, Wsp, stride, pad):
    w = np.asarray(w, np.float32)
    b = np.asarray(b, np.float32)
    kh, kw, Cin, Cout = w.shape
    Ho = (H + 2 * pad - kh) // stride + 1
    Wo = (Wsp + 2 * pad - kw) // stride + 1

    S = np.zeros((kh, B * Ho, B * H), np.float32)
    for i in range(kh):
        for bi in range(B):
            for ho in range(Ho):
                h = stride * ho + i - pad
                if 0 <= h < H:
                    S[i, bi * Ho + ho, bi * H + h] = 1.0

    Wm = np.zeros((kh, Wsp * Cin, Wo * Cout), np.float32)
    for i in range(kh):
        for wo in range(Wo):
            for j in range(kw):
                win = stride * wo + j - pad
                if 0 <= win < Wsp:
                    Wm[i, win * Cin:(win + 1) * Cin,
                       wo * Cout:(wo + 1) * Cout] = w[i, j]

    bias = np.tile(b, Wo)[None, :].astype(np.float32)   # [1, Wo*Cout]
    return jnp.asarray(S), jnp.asarray(Wm), jnp.asarray(bias), Ho, Wo


def _pad_cin(w, cin_pad):
    """Zero-pad the input-channel dim of a HWIO conv weight to `cin_pad`."""
    w = np.asarray(w, np.float32)
    cin = w.shape[2]
    if cin == cin_pad:
        return w
    return np.pad(w, ((0, 0), (0, 0), (0, cin_pad - cin), (0, 0)))


# ----------------------------------------------------------------------------
# Synthetic IMFModel parameters (deterministic init, no checkpoints)
# ----------------------------------------------------------------------------
def init_params():
    key = jax.random.PRNGKey(1)
    ks = jax.random.split(key, 12)

    def conv_p(k, kh, kw, cin, cout):
        kw_, kb_ = jax.random.split(k)
        scale = 1.0 / jnp.sqrt(float(kh * kw * cin))
        w = jax.random.normal(kw_, (kh, kw, cin, cout), jnp.float32) * scale
        b = jax.random.normal(kb_, (cout,), jnp.float32) * 0.01
        return {"w": w, "b": b}

    def linear_p(k, din, dout):
        kw_, kb_ = jax.random.split(k)
        scale = 1.0 / jnp.sqrt(float(din))
        w = jax.random.normal(kw_, (din, dout), jnp.float32) * scale
        b = jax.random.normal(kb_, (dout,), jnp.float32) * 0.01
        return {"w": w, "b": b}

    return {
        # dense_feature_encoder: conv pyramid returning multi-scale features
        "dfe1": conv_p(ks[0], 3, 3, 3, 16),    # stride 1 -> [B,16,16,16]
        "dfe2": conv_p(ks[1], 3, 3, 16, 32),   # stride 2 -> [B, 8, 8,32]
        "dfe3": conv_p(ks[2], 3, 3, 32, 64),   # stride 2 -> [B, 4, 4,64]
        # latent_token_encoder: conv downsample + global pool + linear token
        "lte1": conv_p(ks[3], 3, 3, 3, 16),    # stride 2
        "lte2": conv_p(ks[4], 3, 3, 16, 32),   # stride 2
        "lte_fc": linear_p(ks[5], 32, 32),     # token dim dm = 32
    }


# ----------------------------------------------------------------------------
# Build the fused encoder (operands + jitted forward)
# ----------------------------------------------------------------------------
def build_imf_encoder(params, B, H, W):
    Cin = int(params["dfe1"]["w"].shape[2])
    # Pad the 3-channel input to 8 channels so the input slab column width
    # W*Cin_pad = 128 is lane dense (unmasked loads inside the kernel).
    Cin_pad = 8
    B2 = 2 * B                                   # lte runs both images at once

    operands = []
    dfe_shapes = []
    h, w_sp = H, W
    for idx, (name, stride) in enumerate((("dfe1", 1), ("dfe2", 2), ("dfe3", 2))):
        wgt, bias = params[name]["w"], params[name]["b"]
        wgt_np = _pad_cin(wgt, Cin_pad) if idx == 0 else np.asarray(wgt, np.float32)
        S, Wm, bvec, Ho, Wo = _build_conv_mats(wgt_np, bias, B, h, w_sp, stride, 1)
        operands += [S, Wm, bvec]
        dfe_shapes.append((B, Ho, Wo, int(wgt.shape[3])))
        h, w_sp = Ho, Wo

    h, w_sp = H, W
    for idx, (name, stride) in enumerate((("lte1", 2), ("lte2", 2))):
        wgt, bias = params[name]["w"], params[name]["b"]
        wgt_np = _pad_cin(wgt, Cin_pad) if idx == 0 else np.asarray(wgt, np.float32)
        S, Wm, bvec, Ho, Wo = _build_conv_mats(wgt_np, bias, B2, h, w_sp, stride, 1)
        operands += [S, Wm, bvec]
        h, w_sp = Ho, Wo
    Ho_l, Wo_l = h, w_sp

    # global mean-pool + final linear folded into two small matmuls
    pool = np.zeros((B2, B2 * Ho_l), np.float32)
    for bi in range(B2):
        pool[bi, bi * Ho_l:(bi + 1) * Ho_l] = 1.0 / Ho_l
    fcw = np.asarray(params["lte_fc"]["w"], np.float32)          # [C, dm]
    fcb = np.asarray(params["lte_fc"]["b"], np.float32)
    fcw_exp = np.tile(fcw, (Wo_l, 1)) / float(Wo_l)              # [Wo*C, dm]
    dm = int(fcw.shape[1])
    operands += [jnp.asarray(pool), jnp.asarray(fcw_exp), jnp.asarray(fcb[None, :])]
    operands = tuple(jnp.asarray(o) for o in operands)

    out_shapes = tuple(
        jax.ShapeDtypeStruct((b_ * ho, wo * co), jnp.float32)
        for (b_, ho, wo, co) in dfe_shapes
    ) + (jax.ShapeDtypeStruct((B2, dm), jnp.float32),)

    kernel_fn = pl.pallas_call(
        _imf_encoder_kernel,
        out_shape=out_shapes,
        compiler_params=pltpu.CompilerParams(vmem_limit_bytes=64 * 1024 * 1024),
    )

    def forward(ops, x_current, x_reference):
        # NCHW -> NHWC -> channel-pad to 8 -> lane-dense slabs [B*H, W*Cin_pad]
        xr = jnp.transpose(x_reference, (0, 2, 3, 1))
        xc = jnp.transpose(x_current, (0, 2, 3, 1))
        pad_cfg = ((0, 0), (0, 0), (0, 0), (0, Cin_pad - Cin))
        xr_p = jnp.pad(xr, pad_cfg)
        xc_p = jnp.pad(xc, pad_cfg)
        xd = xr_p.reshape(B * H, W * Cin_pad)
        xl = jnp.concatenate([xr_p, xc_p], axis=0).reshape(B2 * H, W * Cin_pad)

        f1s, f2s, f3s, tok = kernel_fn(xd, xl, *ops)

        f_r = tuple(f.reshape(shape)
                    for f, shape in zip((f1s, f2s, f3s), dfe_shapes))
        t_r, t_c = tok[:B], tok[B:]
        return f_r, t_r, t_c

    fwd = jax.jit(forward)
    return lambda x_current, x_reference: fwd(operands, x_current, x_reference)


# ----------------------------------------------------------------------------
# Plain-JAX reference (for correctness check only)
# ----------------------------------------------------------------------------
def _conv2d_ref(x, w, b, stride, padding):
    y = jax.lax.conv_general_dilated(
        x, w, window_strides=(stride, stride),
        padding=[(padding, padding), (padding, padding)],
        dimension_numbers=("NHWC", "HWIO", "NHWC"),
        precision=jax.lax.Precision.HIGHEST)
    return jnp.maximum(y + b[None, None, None, :], 0.0)


def imf_encoder_reference(params, x_current, x_reference):
    xr = jnp.transpose(x_reference, (0, 2, 3, 1))
    xc = jnp.transpose(x_current, (0, 2, 3, 1))
    f1 = _conv2d_ref(xr, params["dfe1"]["w"], params["dfe1"]["b"], 1, 1)
    f2 = _conv2d_ref(f1, params["dfe2"]["w"], params["dfe2"]["b"], 2, 1)
    f3 = _conv2d_ref(f2, params["dfe3"]["w"], params["dfe3"]["b"], 2, 1)

    def lte(x):
        h = _conv2d_ref(x, params["lte1"]["w"], params["lte1"]["b"], 2, 1)
        h = _conv2d_ref(h, params["lte2"]["w"], params["lte2"]["b"], 2, 1)
        h = jnp.mean(h, axis=(1, 2))
        return (jnp.dot(h, params["lte_fc"]["w"],
                        precision=jax.lax.Precision.HIGHEST)
                + params["lte_fc"]["b"])

    return (f1, f2, f3), lte(xr), lte(xc)


# ----------------------------------------------------------------------------
if __name__ == "__main__":
    key = jax.random.PRNGKey(0)
    kc, kr = jax.random.split(key)
    B, C, H, W = 2, 3, 16, 16
    x_current = jax.random.normal(kc, (B, C, H, W), jnp.float32)
    x_reference = jax.random.normal(kr, (B, C, H, W), jnp.float32)

    params = init_params()
    encoder = build_imf_encoder(params, B, H, W)

    f_r, t_r, t_c = encoder(x_current, x_reference)
    jax.block_until_ready((f_r, t_r, t_c))

    # shape checks (features returned NHWC, tokens [B, dm])
    assert f_r[0].shape == (2, 16, 16, 16)
    assert f_r[1].shape == (2, 8, 8, 32)
    assert f_r[2].shape == (2, 4, 4, 64)
    assert t_r.shape == (2, 32) and t_c.shape == (2, 32)

    # numerical check against a plain-JAX reference
    f_ref, tr_ref, tc_ref = imf_encoder_reference(params, x_current, x_reference)
    for got, want in zip(list(f_r) + [t_r, t_c], list(f_ref) + [tr_ref, tc_ref]):
        np.testing.assert_allclose(np.asarray(got), np.asarray(want),
                                   rtol=5e-2, atol=5e-2)

    print("KERNEL_OK")
</pallas_src>

<mosaic_0001>
module attributes {stable_mosaic.version = 11 : i64} {
  func.func @_imf_encoder_kernel(%arg0: memref<32x128xf32, #tpu.memory_space<vmem>>, %arg1: memref<64x128xf32, #tpu.memory_space<vmem>>, %arg2: memref<3x32x32xf32, #tpu.memory_space<vmem>>, %arg3: memref<3x128x256xf32, #tpu.memory_space<vmem>>, %arg4: memref<1x256xf32, #tpu.memory_space<vmem>>, %arg5: memref<3x16x32xf32, #tpu.memory_space<vmem>>, %arg6: memref<3x256x256xf32, #tpu.memory_space<vmem>>, %arg7: memref<1x256xf32, #tpu.memory_space<vmem>>, %arg8: memref<3x8x16xf32, #tpu.memory_space<vmem>>, %arg9: memref<3x256x256xf32, #tpu.memory_space<vmem>>, %arg10: memref<1x256xf32, #tpu.memory_space<vmem>>, %arg11: memref<3x32x64xf32, #tpu.memory_space<vmem>>, %arg12: memref<3x128x128xf32, #tpu.memory_space<vmem>>, %arg13: memref<1x128xf32, #tpu.memory_space<vmem>>, %arg14: memref<3x16x32xf32, #tpu.memory_space<vmem>>, %arg15: memref<3x128x128xf32, #tpu.memory_space<vmem>>, %arg16: memref<1x128xf32, #tpu.memory_space<vmem>>, %arg17: memref<4x16xf32, #tpu.memory_space<vmem>>, %arg18: memref<128x32xf32, #tpu.memory_space<vmem>>, %arg19: memref<1x32xf32, #tpu.memory_space<vmem>>, %arg20: memref<32x256xf32, #tpu.memory_space<vmem>>, %arg21: memref<16x256xf32, #tpu.memory_space<vmem>>, %arg22: memref<8x256xf32, #tpu.memory_space<vmem>>, %arg23: memref<4x32xf32, #tpu.memory_space<vmem>>) attributes {dimension_semantics = [], scalar_prefetch = 0 : i64, scratch_operands = 0 : i64, tpu.core_type = #tpu.core_type<tc>} {
    %c0 = arith.constant 0 : index
    %c0_0 = arith.constant 0 : index
    %0 = vector.load %arg0[%c0, %c0_0] : memref<32x128xf32, #tpu.memory_space<vmem>>, vector<32x128xf32>
    %c0_1 = arith.constant 0 : index
    %c0_2 = arith.constant 0 : index
    %c0_3 = arith.constant 0 : index
    %1 = vector.load %arg2[%c0_1, %c0_2, %c0_3] : memref<3x32x32xf32, #tpu.memory_space<vmem>>, vector<1x32x32xf32>
    %2 = vector.shape_cast %1 : vector<1x32x32xf32> to vector<32x32xf32>
    %cst = arith.constant dense<0.000000e+00> : vector<32x128xf32>
    %3 = tpu.matmul %2, %0, %cst {dimension_numbers = #tpu.dot_dimension_numbers<[1], [0], [0], [1], [0, 0, 1, 1], [], []>} : vector<32x32xf32>, vector<32x128xf32>, vector<32x128xf32> -> vector<32x128xf32>
    %c0_4 = arith.constant 0 : index
    %c0_5 = arith.constant 0 : index
    %c0_6 = arith.constant 0 : index
    %4 = vector.load %arg3[%c0_4, %c0_5, %c0_6] : memref<3x128x256xf32, #tpu.memory_space<vmem>>, vector<1x128x256xf32>
    %5 = vector.shape_cast %4 : vector<1x128x256xf32> to vector<128x256xf32>
    %cst_7 = arith.constant dense<0.000000e+00> : vector<32x256xf32>
    %6 = tpu.matmul %3, %5, %cst_7 {dimension_numbers = #tpu.dot_dimension_numbers<[1], [0], [0], [1], [0, 0, 1, 1], [], []>} : vector<32x128xf32>, vector<128x256xf32>, vector<32x256xf32> -> vector<32x256xf32>
    %c1 = arith.constant 1 : index
    %c0_8 = arith.constant 0 : index
    %c0_9 = arith.constant 0 : index
    %7 = vector.load %arg2[%c1, %c0_8, %c0_9] : memref<3x32x32xf32, #tpu.memory_space<vmem>>, vector<1x32x32xf32>
    %8 = vector.shape_cast %7 : vector<1x32x32xf32> to vector<32x32xf32>
    %cst_10 = arith.constant dense<0.000000e+00> : vector<32x128xf32>
    %9 = tpu.matmul %8, %0, %cst_10 {dimension_numbers = #tpu.dot_dimension_numbers<[1], [0], [0], [1], [0, 0, 1, 1], [], []>} : vector<32x32xf32>, vector<32x128xf32>, vector<32x128xf32> -> vector<32x128xf32>
    %c1_11 = arith.constant 1 : index
    %c0_12 = arith.constant 0 : index
    %c0_13 = arith.constant 0 : index
    %10 = vector.load %arg3[%c1_11, %c0_12, %c0_13] : memref<3x128x256xf32, #tpu.memory_space<vmem>>, vector<1x128x256xf32>
    %11 = vector.shape_cast %10 : vector<1x128x256xf32> to vector<128x256xf32>
    %cst_14 = arith.constant dense<0.000000e+00> : vector<32x256xf32>
    %12 = tpu.matmul %9, %11, %cst_14 {dimension_numbers = #tpu.dot_dimension_numbers<[1], [0], [0], [1], [0, 0, 1, 1], [], []>} : vector<32x128xf32>, vector<128x256xf32>, vector<32x256xf32> -> vector<32x256xf32>
    %13 = arith.addf %6, %12 : vector<32x256xf32>
    %c2 = arith.constant 2 : index
    %c0_15 = arith.constant 0 : index
    %c0_16 = arith.constant 0 : index
    %14 = vector.load %arg2[%c2, %c0_15, %c0_16] : memref<3x32x32xf32, #tpu.memory_space<vmem>>, vector<1x32x32xf32>
    %15 = vector.shape_cast %14 : vector<1x32x32xf32> to vector<32x32xf32>
    %cst_17 = arith.constant dense<0.000000e+00> : vector<32x128xf32>
    %16 = tpu.matmul %15, %0, %cst_17 {dimension_numbers = #tpu.dot_dimension_numbers<[1], [0], [0], [1], [0, 0, 1, 1], [], []>} : vector<32x32xf32>, vector<32x128xf32>, vector<32x128xf32> -> vector<32x128xf32>
    %c2_18 = arith.constant 2 : index
    %c0_19 = arith.constant 0 : index
    %c0_20 = arith.constant 0 : index
    %17 = vector.load %arg3[%c2_18, %c0_19, %c0_20] : memref<3x128x256xf32, #tpu.memory_space<vmem>>, vector<1x128x256xf32>
    %18 = vector.shape_cast %17 : vector<1x128x256xf32> to vector<128x256xf32>
    %cst_21 = arith.constant dense<0.000000e+00> : vector<32x256xf32>
    %19 = tpu.matmul %16, %18, %cst_21 {dimension_numbers = #tpu.dot_dimension_numbers<[1], [0], [0], [1], [0, 0, 1, 1], [], []>} : vector<32x128xf32>, vector<128x256xf32>, vector<32x256xf32> -> vector<32x256xf32>
    %20 = arith.addf %13, %19 : vector<32x256xf32>
    %c0_22 = arith.constant 0 : index
    %c0_23 = arith.constant 0 : index
    %21 = vector.load %arg4[%c0_22, %c0_23] : memref<1x256xf32, #tpu.memory_space<vmem>>, vector<1x256xf32>
    %22 = vector.broadcast %21 : vector<1x256xf32> to vector<32x256xf32>
    %23 = arith.addf %20, %22 : vector<32x256xf32>
    %cst_24 = arith.constant 0.000000e+00 : f32
    %24 = vector.broadcast %cst_24 : f32 to vector<32x256xf32>
    %25 = arith.maximumf %23, %24 : vector<32x256xf32>
    %c0_25 = arith.constant 0 : index
    %c0_26 = arith.constant 0 : index
    %c0_27 = arith.constant 0 : index
    %26 = vector.load %arg5[%c0_25, %c0_26, %c0_27] : memref<3x16x32xf32, #tpu.memory_space<vmem>>, vector<1x16x32xf32>
    %27 = vector.shape_cast %26 : vector<1x16x32xf32> to vector<16x32xf32>
    %cst_28 = arith.constant dense<0.000000e+00> : vector<16x256xf32>
    %28 = tpu.matmul %27, %25, %cst_28 {dimension_numbers = #tpu.dot_dimension_numbers<[1], [0], [0], [1], [0, 0, 1, 1], [], []>} : vector<16x32xf32>, vector<32x256xf32>, vector<16x256xf32> -> vector<16x256xf32>
    %c0_29 = arith.constant 0 : index
    %c0_30 = arith.constant 0 : index
    %c0_31 = arith.constant 0 : index
    %29 = vector.load %arg6[%c0_29, %c0_30, %c0_31] : memref<3x256x256xf32, #tpu.memory_space<vmem>>, vector<1x256x256xf32>
    %30 = vector.shape_cast %29 : vector<1x256x256xf32> to vector<256x256xf32>
    %cst_32 = arith.constant dense<0.000000e+00> : vector<16x256xf32>
    %31 = tpu.matmul %28, %30, %cst_32 {dimension_numbers = #tpu.dot_dimension_numbers<[1], [0], [0], [1], [0, 0, 1, 1], [], []>} : vector<16x256xf32>, vector<256x256xf32>, vector<16x256xf32> -> vector<16x256xf32>
    %c1_33 = arith.constant 1 : index
    %c0_34 = arith.constant 0 : index
    %c0_35 = arith.constant 0 : index
    %32 = vector.load %arg5[%c1_33, %c0_34, %c0_35] : memref<3x16x32xf32, #tpu.memory_space<vmem>>, vector<1x16x32xf32>
    %33 = vector.shape_cast %32 : vector<1x16x32xf32> to vector<16x32xf32>
    %cst_36 = arith.constant dense<0.000000e+00> : vector<16x256xf32>
    %34 = tpu.matmul %33, %25, %cst_36 {dimension_numbers = #tpu.dot_dimension_numbers<[1], [0], [0], [1], [0, 0, 1, 1], [], []>} : vector<16x32xf32>, vector<32x256xf32>, vector<16x256xf32> -> vector<16x256xf32>
    %c1_37 = arith.constant 1 : index
    %c0_38 = arith.constant 0 : index
    %c0_39 = arith.constant 0 : index
    %35 = vector.load %arg6[%c1_37, %c0_38, %c0_39] : memref<3x256x256xf32, #tpu.memory_space<vmem>>, vector<1x256x256xf32>
    %36 = vector.shape_cast %35 : vector<1x256x256xf32> to vector<256x256xf32>
    %cst_40 = arith.constant dense<0.000000e+00> : vector<16x256xf32>
    %37 = tpu.matmul %34, %36, %cst_40 {dimension_numbers = #tpu.dot_dimension_numbers<[1], [0], [0], [1], [0, 0, 1, 1], [], []>} : vector<16x256xf32>, vector<256x256xf32>, vector<16x256xf32> -> vector<16x256xf32>
    %38 = arith.addf %31, %37 : vector<16x256xf32>
    %c2_41 = arith.constant 2 : index
    %c0_42 = arith.constant 0 : index
    %c0_43 = arith.constant 0 : index
    %39 = vector.load %arg5[%c2_41, %c0_42, %c0_43] : memref<3x16x32xf32, #tpu.memory_space<vmem>>, vector<1x16x32xf32>
    %40 = vector.shape_cast %39 : vector<1x16x32xf32> to vector<16x32xf32>
    %cst_44 = arith.constant dense<0.000000e+00> : vector<16x256xf32>
    %41 = tpu.matmul %40, %25, %cst_44 {dimension_numbers = #tpu.dot_dimension_numbers<[1], [0], [0], [1], [0, 0, 1, 1], [], []>} : vector<16x32xf32>, vector<32x256xf32>, vector<16x256xf32> -> vector<16x256xf32>
    %c2_45 = arith.constant 2 : index
    %c0_46 = arith.constant 0 : index
    %c0_47 = arith.constant 0 : index
    %42 = vector.load %arg6[%c2_45, %c0_46, %c0_47] : memref<3x256x256xf32, #tpu.memory_space<vmem>>, vector<1x256x256xf32>
    %43 = vector.shape_cast %42 : vector<1x256x256xf32> to vector<256x256xf32>
    %cst_48 = arith.constant dense<0.000000e+00> : vector<16x256xf32>
    %44 = tpu.matmul %41, %43, %cst_48 {dimension_numbers = #tpu.dot_dimension_numbers<[1], [0], [0], [1], [0, 0, 1, 1], [], []>} : vector<16x256xf32>, vector<256x256xf32>, vector<16x256xf32> -> vector<16x256xf32>
    %45 = arith.addf %38, %44 : vector<16x256xf32>
    %c0_49 = arith.constant 0 : index
    %c0_50 = arith.constant 0 : index
    %46 = vector.load %arg7[%c0_49, %c0_50] : memref<1x256xf32, #tpu.memory_space<vmem>>, vector<1x256xf32>
    %47 = vector.broadcast %46 : vector<1x256xf32> to vector<16x256xf32>
    %48 = arith.addf %45, %47 : vector<16x256xf32>
    %cst_51 = arith.constant 0.000000e+00 : f32
    %49 = vector.broadcast %cst_51 : f32 to vector<16x256xf32>
    %50 = arith.maximumf %48, %49 : vector<16x256xf32>
    %c0_52 = arith.constant 0 : index
    %c0_53 = arith.constant 0 : index
    %c0_54 = arith.constant 0 : index
    %51 = vector.load %arg8[%c0_52, %c0_53, %c0_54] : memref<3x8x16xf32, #tpu.memory_space<vmem>>, vector<1x8x16xf32>
    %52 = vector.shape_cast %51 : vector<1x8x16xf32> to vector<8x16xf32>
    %cst_55 = arith.constant dense<0.000000e+00> : vector<8x256xf32>
    %53 = tpu.matmul %52, %50, %cst_55 {dimension_numbers = #tpu.dot_dimension_numbers<[1], [0], [0], [1], [0, 0, 1, 1], [], []>} : vector<8x16xf32>, vector<16x256xf32>, vector<8x256xf32> -> vector<8x256xf32>
    %c0_56 = arith.constant 0 : index
    %c0_57 = arith.constant 0 : index
    %c0_58 = arith.constant 0 : index
    %54 = vector.load %arg9[%c0_56, %c0_57, %c0_58] : memref<3x256x256xf32, #tpu.memory_space<vmem>>, vector<1x256x256xf32>
    %55 = vector.shape_cast %54 : vector<1x256x256xf32> to vector<256x256xf32>
    %cst_59 = arith.constant dense<0.000000e+00> : vector<8x256xf32>
    %56 = tpu.matmul %53, %55, %cst_59 {dimension_numbers = #tpu.dot_dimension_numbers<[1], [0], [0], [1], [0, 0, 1, 1], [], []>} : vector<8x256xf32>, vector<256x256xf32>, vector<8x256xf32> -> vector<8x256xf32>
    %c1_60 = arith.constant 1 : index
    %c0_61 = arith.constant 0 : index
    %c0_62 = arith.constant 0 : index
    %57 = vector.load %arg8[%c1_60, %c0_61, %c0_62] : memref<3x8x16xf32, #tpu.memory_space<vmem>>, vector<1x8x16xf32>
    %58 = vector.shape_cast %57 : vector<1x8x16xf32> to vector<8x16xf32>
    %cst_63 = arith.constant dense<0.000000e+00> : vector<8x256xf32>
    %59 = tpu.matmul %58, %50, %cst_63 {dimension_numbers = #tpu.dot_dimension_numbers<[1], [0], [0], [1], [0, 0, 1, 1], [], []>} : vector<8x16xf32>, vector<16x256xf32>, vector<8x256xf32> -> vector<8x256xf32>
    %c1_64 = arith.constant 1 : index
    %c0_65 = arith.constant 0 : index
    %c0_66 = arith.constant 0 : index
    %60 = vector.load %arg9[%c1_64, %c0_65, %c0_66] : memref<3x256x256xf32, #tpu.memory_space<vmem>>, vector<1x256x256xf32>
    %61 = vector.shape_cast %60 : vector<1x256x256xf32> to vector<256x256xf32>
    %cst_67 = arith.constant dense<0.000000e+00> : vector<8x256xf32>
    %62 = tpu.matmul %59, %61, %cst_67 {dimension_numbers = #tpu.dot_dimension_numbers<[1], [0], [0], [1], [0, 0, 1, 1], [], []>} : vector<8x256xf32>, vector<256x256xf32>, vector<8x256xf32> -> vector<8x256xf32>
    %63 = arith.addf %56, %62 : vector<8x256xf32>
    %c2_68 = arith.constant 2 : index
    %c0_69 = arith.constant 0 : index
    %c0_70 = arith.constant 0 : index
    %64 = vector.load %arg8[%c2_68, %c0_69, %c0_70] : memref<3x8x16xf32, #tpu.memory_space<vmem>>, vector<1x8x16xf32>
    %65 = vector.shape_cast %64 : vector<1x8x16xf32> to vector<8x16xf32>
    %cst_71 = arith.constant dense<0.000000e+00> : vector<8x256xf32>
    %66 = tpu.matmul %65, %50, %cst_71 {dimension_numbers = #tpu.dot_dimension_numbers<[1], [0], [0], [1], [0, 0, 1, 1], [], []>} : vector<8x16xf32>, vector<16x256xf32>, vector<8x256xf32> -> vector<8x256xf32>
    %c2_72 = arith.constant 2 : index
    %c0_73 = arith.constant 0 : index
    %c0_74 = arith.constant 0 : index
    %67 = vector.load %arg9[%c2_72, %c0_73, %c0_74] : memref<3x256x256xf32, #tpu.memory_space<vmem>>, vector<1x256x256xf32>
    %68 = vector.shape_cast %67 : vector<1x256x256xf32> to vector<256x256xf32>
    %cst_75 = arith.constant dense<0.000000e+00> : vector<8x256xf32>
    %69 = tpu.matmul %66, %68, %cst_75 {dimension_numbers = #tpu.dot_dimension_numbers<[1], [0], [0], [1], [0, 0, 1, 1], [], []>} : vector<8x256xf32>, vector<256x256xf32>, vector<8x256xf32> -> vector<8x256xf32>
    %70 = arith.addf %63, %69 : vector<8x256xf32>
    %c0_76 = arith.constant 0 : index
    %c0_77 = arith.constant 0 : index
    %71 = vector.load %arg10[%c0_76, %c0_77] : memref<1x256xf32, #tpu.memory_space<vmem>>, vector<1x256xf32>
    %72 = vector.broadcast %71 : vector<1x256xf32> to vector<8x256xf32>
    %73 = arith.addf %70, %72 : vector<8x256xf32>
    %cst_78 = arith.constant 0.000000e+00 : f32
    %74 = vector.broadcast %cst_78 : f32 to vector<8x256xf32>
    %75 = arith.maximumf %73, %74 : vector<8x256xf32>
    %c0_79 = arith.constant 0 : index
    %c0_80 = arith.constant 0 : index
    %76 = vector.load %arg20[%c0_79, %c0_80] : memref<32x256xf32, #tpu.memory_space<vmem>>, vector<32x256xf32>
    tpu.vector_store %arg20[%c0_79, %c0_80], %25 {strides = array<i32>} : memref<32x256xf32, #tpu.memory_space<vmem>>, vector<32x256xf32>,
    %c0_81 = arith.constant 0 : index
    %c0_82 = arith.constant 0 : index
    %77 = vector.load %arg21[%c0_81, %c0_82] : memref<16x256xf32, #tpu.memory_space<vmem>>, vector<16x256xf32>
    tpu.vector_store %arg21[%c0_81, %c0_82], %50 {strides = array<i32>} : memref<16x256xf32, #tpu.memory_space<vmem>>, vector<16x256xf32>,
    %c0_83 = arith.constant 0 : index
    %c0_84 = arith.constant 0 : index
    %78 = vector.load %arg22[%c0_83, %c0_84] : memref<8x256xf32, #tpu.memory_space<vmem>>, vector<8x256xf32>
    tpu.vector_store %arg22[%c0_83, %c0_84], %75 {strides = array<i32>} : memref<8x256xf32, #tpu.memory_space<vmem>>, vector<8x256xf32>,
    %c0_85 = arith.constant 0 : index
    %c0_86 = arith.constant 0 : index
    %79 = vector.load %arg1[%c0_85, %c0_86] : memref<64x128xf32, #tpu.memory_space<vmem>>, vector<64x128xf32>
    %c0_87 = arith.constant 0 : index
    %c0_88 = arith.constant 0 : index
    %c0_89 = arith.constant 0 : index
    %80 = vector.load %arg11[%c0_87, %c0_88, %c0_89] : memref<3x32x64xf32, #tpu.memory_space<vmem>>, vector<1x32x64xf32>
    %81 = vector.shape_cast %80 : vector<1x32x64xf32> to vector<32x64xf32>
    %cst_90 = arith.constant dense<0.000000e+00> : vector<32x128xf32>
    %82 = tpu.matmul %81, %79, %cst_90 {dimension_numbers = #tpu.dot_dimension_numbers<[1], [0], [0], [1], [0, 0, 1, 1], [], []>} : vector<32x64xf32>, vector<64x128xf32>, vector<32x128xf32> -> vector<32x128xf32>
    %c0_91 = arith.constant 0 : index
    %c0_92 = arith.constant 0 : index
    %c0_93 = arith.constant 0 : index
    %83 = vector.load %arg12[%c0_91, %c0_92, %c0_93] : memref<3x128x128xf32, #tpu.memory_space<vmem>>, vector<1x128x128xf32>
    %84 = vector.shape_cast %83 : vector<1x128x128xf32> to vector<128x128xf32>
    %cst_94 = arith.constant dense<0.000000e+00> : vector<32x128xf32>
    %85 = tpu.matmul %82, %84, %cst_94 {dimension_numbers = #tpu.dot_dimension_numbers<[1], [0], [0], [1], [0, 0, 1, 1], [], []>} : vector<32x128xf32>, vector<128x128xf32>, vector<32x128xf32> -> vector<32x128xf32>
    %c1_95 = arith.constant 1 : index
    %c0_96 = arith.constant 0 : index
    %c0_97 = arith.constant 0 : index
    %86 = vector.load %arg11[%c1_95, %c0_96, %c0_97] : memref<3x32x64xf32, #tpu.memory_space<vmem>>, vector<1x32x64xf32>
    %87 = vector.shape_cast %86 : vector<1x32x64xf32> to vector<32x64xf32>
    %cst_98 = arith.constant dense<0.000000e+00> : vector<32x128xf32>
    %88 = tpu.matmul %87, %79, %cst_98 {dimension_numbers = #tpu.dot_dimension_numbers<[1], [0], [0], [1], [0, 0, 1, 1], [], []>} : vector<32x64xf32>, vector<64x128xf32>, vector<32x128xf32> -> vector<32x128xf32>
    %c1_99 = arith.constant 1 : index
    %c0_100 = arith.constant 0 : index
    %c0_101 = arith.constant 0 : index
    %89 = vector.load %arg12[%c1_99, %c0_100, %c0_101] : memref<3x128x128xf32, #tpu.memory_space<vmem>>, vector<1x128x128xf32>
    %90 = vector.shape_cast %89 : vector<1x128x128xf32> to vector<128x128xf32>
    %cst_102 = arith.constant dense<0.000000e+00> : vector<32x128xf32>
    %91 = tpu.matmul %88, %90, %cst_102 {dimension_numbers = #tpu.dot_dimension_numbers<[1], [0], [0], [1], [0, 0, 1, 1], [], []>} : vector<32x128xf32>, vector<128x128xf32>, vector<32x128xf32> -> vector<32x128xf32>
    %92 = arith.addf %85, %91 : vector<32x128xf32>
    %c2_103 = arith.constant 2 : index
    %c0_104 = arith.constant 0 : index
    %c0_105 = arith.constant 0 : index
    %93 = vector.load %arg11[%c2_103, %c0_104, %c0_105] : memref<3x32x64xf32, #tpu.memory_space<vmem>>, vector<1x32x64xf32>
    %94 = vector.shape_cast %93 : vector<1x32x64xf32> to vector<32x64xf32>
    %cst_106 = arith.constant dense<0.000000e+00> : vector<32x128xf32>
    %95 = tpu.matmul %94, %79, %cst_106 {dimension_numbers = #tpu.dot_dimension_numbers<[1], [0], [0], [1], [0, 0, 1, 1], [], []>} : vector<32x64xf32>, vector<64x128xf32>, vector<32x128xf32> -> vector<32x128xf32>
    %c2_107 = arith.constant 2 : index
    %c0_108 = arith.constant 0 : index
    %c0_109 = arith.constant 0 : index
    %96 = vector.load %arg12[%c2_107, %c0_108, %c0_109] : memref<3x128x128xf32, #tpu.memory_space<vmem>>, vector<1x128x128xf32>
    %97 = vector.shape_cast %96 : vector<1x128x128xf32> to vector<128x128xf32>
    %cst_110 = arith.constant dense<0.000000e+00> : vector<32x128xf32>
    %98 = tpu.matmul %95, %97, %cst_110 {dimension_numbers = #tpu.dot_dimension_numbers<[1], [0], [0], [1], [0, 0, 1, 1], [], []>} : vector<32x128xf32>, vector<128x128xf32>, vector<32x128xf32> -> vector<32x128xf32>
    %99 = arith.addf %92, %98 : vector<32x128xf32>
    %c0_111 = arith.constant 0 : index
    %c0_112 = arith.constant 0 : index
    %100 = vector.load %arg13[%c0_111, %c0_112] : memref<1x128xf32, #tpu.memory_space<vmem>>, vector<1x128xf32>
    %101 = vector.broadcast %100 : vector<1x128xf32> to vector<32x128xf32>
    %102 = arith.addf %99, %101 : vector<32x128xf32>
    %cst_113 = arith.constant 0.000000e+00 : f32
    %103 = vector.broadcast %cst_113 : f32 to vector<32x128xf32>
    %104 = arith.maximumf %102, %103 : vector<32x128xf32>
    %c0_114 = arith.constant 0 : index
    %c0_115 = arith.constant 0 : index
    %c0_116 = arith.constant 0 : index
    %105 = vector.load %arg14[%c0_114, %c0_115, %c0_116] : memref<3x16x32xf32, #tpu.memory_space<vmem>>, vector<1x16x32xf32>
    %106 = vector.shape_cast %105 : vector<1x16x32xf32> to vector<16x32xf32>
    %cst_117 = arith.constant dense<0.000000e+00> : vector<16x128xf32>
    %107 = tpu.matmul %106, %104, %cst_117 {dimension_numbers = #tpu.dot_dimension_numbers<[1], [0], [0], [1], [0, 0, 1, 1], [], []>} : vector<16x32xf32>, vector<32x128xf32>, vector<16x128xf32> -> vector<16x128xf32>
    %c0_118 = arith.constant 0 : index
    %c0_119 = arith.constant 0 : index
    %c0_120 = arith.constant 0 : index
    %108 = vector.load %arg15[%c0_118, %c0_119, %c0_120] : memref<3x128x128xf32, #tpu.memory_space<vmem>>, vector<1x128x128xf32>
    %109 = vector.shape_cast %108 : vector<1x128x128xf32> to vector<128x128xf32>
    %cst_121 = arith.constant dense<0.000000e+00> : vector<16x128xf32>
    %110 = tpu.matmul %107, %109, %cst_121 {dimension_numbers = #tpu.dot_dimension_numbers<[1], [0], [0], [1], [0, 0, 1, 1], [], []>} : vector<16x128xf32>, vector<128x128xf32>, vector<16x128xf32> -> vector<16x128xf32>
    %c1_122 = arith.constant 1 : index
    %c0_123 = arith.constant 0 : index
    %c0_124 = arith.constant 0 : index
    %111 = vector.load %arg14[%c1_122, %c0_123, %c0_124] : memref<3x16x32xf32, #tpu.memory_space<vmem>>, vector<1x16x32xf32>
    %112 = vector.shape_cast %111 : vector<1x16x32xf32> to vector<16x32xf32>
    %cst_125 = arith.constant dense<0.000000e+00> : vector<16x128xf32>
    %113 = tpu.matmul %112, %104, %cst_125 {dimension_numbers = #tpu.dot_dimension_numbers<[1], [0], [0], [1], [0, 0, 1, 1], [], []>} : vector<16x32xf32>, vector<32x128xf32>, vector<16x128xf32> -> vector<16x128xf32>
    %c1_126 = arith.constant 1 : index
    %c0_127 = arith.constant 0 : index
    %c0_128 = arith.constant 0 : index
    %114 = vector.load %arg15[%c1_126, %c0_127, %c0_128] : memref<3x128x128xf32, #tpu.memory_space<vmem>>, vector<1x128x128xf32>
    %115 = vector.shape_cast %114 : vector<1x128x128xf32> to vector<128x128xf32>
    %cst_129 = arith.constant dense<0.000000e+00> : vector<16x128xf32>
    %116 = tpu.matmul %113, %115, %cst_129 {dimension_numbers = #tpu.dot_dimension_numbers<[1], [0], [0], [1], [0, 0, 1, 1], [], []>} : vector<16x128xf32>, vector<128x128xf32>, vector<16x128xf32> -> vector<16x128xf32>
    %117 = arith.addf %110, %116 : vector<16x128xf32>
    %c2_130 = arith.constant 2 : index
    %c0_131 = arith.constant 0 : index
    %c0_132 = arith.constant 0 : index
    %118 = vector.load %arg14[%c2_130, %c0_131, %c0_132] : memref<3x16x32xf32, #tpu.memory_space<vmem>>, vector<1x16x32xf32>
    %119 = vector.shape_cast %118 : vector<1x16x32xf32> to vector<16x32xf32>
    %cst_133 = arith.constant dense<0.000000e+00> : vector<16x128xf32>
    %120 = tpu.matmul %119, %104, %cst_133 {dimension_numbers = #tpu.dot_dimension_numbers<[1], [0], [0], [1], [0, 0, 1, 1], [], []>} : vector<16x32xf32>, vector<32x128xf32>, vector<16x128xf32> -> vector<16x128xf32>
    %c2_134 = arith.constant 2 : index
    %c0_135 = arith.constant 0 : index
    %c0_136 = arith.constant 0 : index
    %121 = vector.load %arg15[%c2_134, %c0_135, %c0_136] : memref<3x128x128xf32, #tpu.memory_space<vmem>>, vector<1x128x128xf32>
    %122 = vector.shape_cast %121 : vector<1x128x128xf32> to vector<128x128xf32>
    %cst_137 = arith.constant dense<0.000000e+00> : vector<16x128xf32>
    %123 = tpu.matmul %120, %122, %cst_137 {dimension_numbers = #tpu.dot_dimension_numbers<[1], [0], [0], [1], [0, 0, 1, 1], [], []>} : vector<16x128xf32>, vector<128x128xf32>, vector<16x128xf32> -> vector<16x128xf32>
    %124 = arith.addf %117, %123 : vector<16x128xf32>
    %c0_138 = arith.constant 0 : index
    %c0_139 = arith.constant 0 : index
    %125 = vector.load %arg16[%c0_138, %c0_139] : memref<1x128xf32, #tpu.memory_space<vmem>>, vector<1x128xf32>
    %126 = vector.broadcast %125 : vector<1x128xf32> to vector<16x128xf32>
    %127 = arith.addf %124, %126 : vector<16x128xf32>
    %cst_140 = arith.constant 0.000000e+00 : f32
    %128 = vector.broadcast %cst_140 : f32 to vector<16x128xf32>
    %129 = arith.maximumf %127, %128 : vector<16x128xf32>
    %c0_141 = arith.constant 0 : index
    %c0_142 = arith.constant 0 : index
    %130 = vector.load %arg17[%c0_141, %c0_142] : memref<4x16xf32, #tpu.memory_space<vmem>>, vector<4x16xf32>
    %cst_143 = arith.constant dense<0.000000e+00> : vector<4x128xf32>
    %131 = tpu.matmul %130, %129, %cst_143 {dimension_numbers = #tpu.dot_dimension_numbers<[1], [0], [0], [1], [0, 0, 1, 1], [], []>} : vector<4x16xf32>, vector<16x128xf32>, vector<4x128xf32> -> vector<4x128xf32>
    %c0_144 = arith.constant 0 : index
    %c0_145 = arith.constant 0 : index
    %132 = vector.load %arg18[%c0_144, %c0_145] : memref<128x32xf32, #tpu.memory_space<vmem>>, vector<128x32xf32>
    %cst_146 = arith.constant dense<0.000000e+00> : vector<4x32xf32>
    %133 = tpu.matmul %131, %132, %cst_146 {dimension_numbers = #tpu.dot_dimension_numbers<[1], [0], [0], [1], [0, 0, 1, 1], [], []>} : vector<4x128xf32>, vector<128x32xf32>, vector<4x32xf32> -> vector<4x32xf32>
    %c0_147 = arith.constant 0 : index
    %c0_148 = arith.constant 0 : index
    %134 = vector.load %arg19[%c0_147, %c0_148] : memref<1x32xf32, #tpu.memory_space<vmem>>, vector<1x32xf32>
    %135 = vector.broadcast %134 : vector<1x32xf32> to vector<4x32xf32>
    %136 = arith.addf %133, %135 : vector<4x32xf32>
    %c0_149 = arith.constant 0 : index
    %c0_150 = arith.constant 0 : index
    %137 = vector.load %arg23[%c0_149, %c0_150] : memref<4x32xf32, #tpu.memory_space<vmem>>, vector<4x32xf32>
    tpu.vector_store %arg23[%c0_149, %c0_150], %136 {strides = array<i32>} : memref<4x32xf32, #tpu.memory_space<vmem>>, vector<4x32xf32>,
    return
  }
}

</mosaic_0001>

<llo_original>
// kernel: forward.1
$region0: #{forward.1}
  #allocation0 [shape = 'u32[]', space=smem, size = 0x4, offset = 0x4, fixed_abs, tag = 'smem constant byte address 0x4 - core index']
  #allocation1 [shape = 'u32[144,128]{1,0:T(1,128)}', space=vmem, size = 0x12000, scoped, tag = 'internal scratch']
  %s0 = inlined_call_operand.vmem [shape: f32[32,128], index: 0, kind: input, shape index: {}]
  %s1 = inlined_call_operand.vmem [shape: f32[64,128], index: 1, kind: input, shape index: {}]
  %s2 = inlined_call_operand.hbm [shape: f32[3,32,32], index: 2, kind: input, shape index: {}]
  %s3 = inlined_call_operand.vmem [shape: f32[3,128,256], index: 3, kind: input, shape index: {}]
  %s4 = inlined_call_operand.hbm [shape: f32[1,256], index: 4, kind: input, shape index: {}]
  %s5 = inlined_call_operand.hbm [shape: f32[3,16,32], index: 5, kind: input, shape index: {}]
  %s6 = inlined_call_operand.vmem [shape: f32[3,256,256], index: 6, kind: input, shape index: {}]
  %s7 = inlined_call_operand.hbm [shape: f32[1,256], index: 7, kind: input, shape index: {}]
  %s8 = inlined_call_operand.hbm [shape: f32[3,8,16], index: 8, kind: input, shape index: {}]
  %s9 = inlined_call_operand.vmem [shape: f32[3,256,256], index: 9, kind: input, shape index: {}]
  %s10 = inlined_call_operand.hbm [shape: f32[1,256], index: 10, kind: input, shape index: {}]
  %s11 = inlined_call_operand.hbm [shape: f32[3,32,64], index: 11, kind: input, shape index: {}]
  %s12 = inlined_call_operand.vmem [shape: f32[3,128,128], index: 12, kind: input, shape index: {}]
  %s13 = inlined_call_operand.hbm [shape: f32[1,128], index: 13, kind: input, shape index: {}]
  %s14 = inlined_call_operand.hbm [shape: f32[3,16,32], index: 14, kind: input, shape index: {}]
  %s15 = inlined_call_operand.hbm [shape: f32[3,128,128], index: 15, kind: input, shape index: {}]
  %s16 = inlined_call_operand.hbm [shape: f32[1,128], index: 16, kind: input, shape index: {}]
  %s17 = inlined_call_operand.hbm [shape: f32[4,16], index: 17, kind: input, shape index: {}]
  %s18 = inlined_call_operand.vmem [shape: f32[128,32], index: 18, kind: input, shape index: {}]
  %s19 = inlined_call_operand.hbm [shape: f32[1,32], index: 19, kind: input, shape index: {}]
  %s20 = inlined_call_operand.vmem [shape: f32[32,256], index: 20, kind: output, shape index: {0}]
  %s21 = inlined_call_operand.vmem [shape: f32[16,256], index: 21, kind: output, shape index: {1}]
  %s22 = inlined_call_operand.vmem [shape: f32[8,256], index: 22, kind: output, shape index: {2}]
  %s23 = inlined_call_operand.vmem [shape: f32[4,32], index: 23, kind: output, shape index: {3}]
  %24 = xla_tuple %s20, %s21, %s22, %s23
  %s25 = sld [smem:[#allocation0]]
  $region166: #{forward.1} parent=0
    _
  %s27 = ssub.s32 1, %s25
  %s28 = scalar_select 0, %s27, %s25
  $region1: #{forward.1} parent=0
    #allocation2 [shape = 'u8[49152]{0}', space=vmem, size = 0xc000, scoped, tag = 'input window, operand 2, single buffered']
    #allocation3 [shape = 's32[1]{0}', space=sflag, size = 0x4, scoped, tag = 'scoped memory for forward.1']
    #allocation4 [shape = 'u8[1024]{0}', space=vmem, size = 0x400, scoped, tag = 'input window, operand 4, single buffered']
    #allocation5 [shape = 's32[1]{0}', space=sflag, size = 0x4, scoped, tag = 'scoped memory for forward.1']
    #allocation6 [shape = 'u8[24576]{0}', space=vmem, size = 0x6000, scoped, tag = 'input window, operand 5, single buffered']
    #allocation7 [shape = 'u8[1024]{0}', space=vmem, size = 0x400, scoped, tag = 'input window, operand 7, single buffered']
    #allocation8 [shape = 's32[1]{0}', space=sflag, size = 0x4, scoped, tag = 'scoped memory for forward.1']
    #allocation9 [shape = 'u8[12288]{0}', space=vmem, size = 0x3000, scoped, tag = 'input window, operand 8, single buffered']
    #allocation10 [shape = 'u8[1024]{0}', space=vmem, size = 0x400, scoped, tag = 'input window, operand 10, single buffered']
    #allocation11 [shape = 's32[1]{0}', space=sflag, size = 0x4, scoped, tag = 'scoped memory for forward.1']
    #allocation12 [shape = 'u8[49152]{0}', space=vmem, size = 0xc000, scoped, tag = 'input window, operand 11, single buffered']
    #allocation13 [shape = 'u8[512]{0}', space=vmem, size = 0x400, scoped, tag = 'input window, operand 13, single buffered']
    #allocation14 [shape = 's32[1]{0}', space=sflag, size = 0x4, scoped, tag = 'scoped memory for forward.1']
    #allocation15 [shape = 'u8[24576]{0}', space=vmem, size = 0x6000, scoped, tag = 'input window, operand 14, single buffered']
    #allocation16 [shape = 'u8[196608]{0}', space=vmem, size = 0x30000, scoped, tag = 'input window, operand 15, single buffered']
    #allocation17 [shape = 's32[1]{0}', space=sflag, size = 0x4, scoped, tag = 'scoped memory for forward.1']
    #allocation18 [shape = 'u8[512]{0}', space=vmem, size = 0x400, scoped, tag = 'input window, operand 16, single buffered']
    #allocation19 [shape = 'u8[2048]{0}', space=vmem, size = 0x800, scoped, tag = 'input window, operand 17, single buffered']
    #allocation20 [shape = 's32[1]{0}', space=sflag, size = 0x4, scoped, tag = 'scoped memory for forward.1']
    #allocation21 [shape = 'u8[512]{0}', space=vmem, size = 0x400, scoped, tag = 'input window, operand 19, single buffered']
    %29 = vsyncpa [#allocation3], 0
    %30 = vsyncpa [#allocation5], 0
    %31 = vsyncpa [#allocation8], 0
    %32 = vsyncpa [#allocation11], 0
    %33 = vsyncpa [#allocation14], 0
    %34 = vsyncpa [#allocation17], 0
    %35 = vsyncpa [#allocation20], 0
    // Predicated region
    $region2: #{forward.1} parent=1 // pred_check
      _
    $region3: #{forward.1} parent=1 // pred_check_branch
      %37 = sbr.rel (0) target = $region5
    $region4: #{forward.1} parent=1 // pred_region
      _
    $region5: #{forward.1} parent=1 // pred_fallthru
      _
    // Predicated region
    $region6: #{forward.1} parent=1 // pred_check
      _
    $region7: #{forward.1} parent=1 // pred_check_branch
      %39 = sbr.rel (0) target = $region9
    $region8: #{forward.1} parent=1 // pred_region
      _
    $region9: #{forward.1} parent=1 // pred_fallthru
      _
    // Predicated region
    $region10: #{forward.1} parent=1 // pred_check
      _
    $region11: #{forward.1} parent=1 // pred_check_branch
      %41 = sbr.rel (0) target = $region13
    $region12: #{forward.1} parent=1 // pred_region
      %s43 = ssub.s32 1536, 1536
      %44 = vsyncadd [#allocation3], %s43
      %s45 = sshll.u32 [#allocation2], 4
      %s46 = int_to_ptr.vmem [resolvable:$true] %s45
      %51 = dma.hbm_to_vmem [thread:$0]  %s2, 1536, %s46, [#allocation3], 128, 128, 8
    $region13: #{forward.1} parent=1 // pred_fallthru
      _
    // Predicated region
    $region14: #{forward.1} parent=1 // pred_check
      _
    $region15: #{forward.1} parent=1 // pred_check_branch
      %53 = sbr.rel (0) target = $region17
    $region16: #{forward.1} parent=1 // pred_region
      _
    $region17: #{forward.1} parent=1 // pred_fallthru
      _
    // Predicated region
    $region18: #{forward.1} parent=1 // pred_check
      _
    $region19: #{forward.1} parent=1 // pred_check_branch
      %55 = sbr.rel (0) target = $region21
    $region20: #{forward.1} parent=1 // pred_region
      %s57 = ssub.s32 32, 32
      %58 = vsyncadd [#allocation5], %s57
      %s60 = sshll.u32 [#allocation4], 4
      %s61 = int_to_ptr.vmem [resolvable:$true] %s60
      %63 = dma.hbm_to_vmem [thread:$0]  %s4, 32, %s61, [#allocation5]
    $region21: #{forward.1} parent=1 // pred_fallthru
      _
    // Predicated region
    $region22: #{forward.1} parent=1 // pred_check
      _
    $region23: #{forward.1} parent=1 // pred_check_branch
      %65 = sbr.rel (0) target = $region25
    $region24: #{forward.1} parent=1 // pred_region
      %s67 = ssub.s32 768, 768
      %68 = vsyncadd [#allocation5], %s67
      %s69 = sshll.u32 [#allocation6], 4
      %s70 = int_to_ptr.vmem [resolvable:$true] %s69
      %75 = dma.hbm_to_vmem [thread:$0]  %s5, 768, %s70, [#allocation5], 128, 128, 8
    $region25: #{forward.1} parent=1 // pred_fallthru
      _
    // Predicated region
    $region26: #{forward.1} parent=1 // pred_check
      _
    $region27: #{forward.1} parent=1 // pred_check_branch
      %77 = sbr.rel (0) target = $region29
    $region28: #{forward.1} parent=1 // pred_region
      _
    $region29: #{forward.1} parent=1 // pred_fallthru
      _
    // Predicated region
    $region30: #{forward.1} parent=1 // pred_check
      _
    $region31: #{forward.1} parent=1 // pred_check_branch
      %79 = sbr.rel (0) target = $region33
    $region32: #{forward.1} parent=1 // pred_region
      %s81 = ssub.s32 32, 32
      %82 = vsyncadd [#allocation8], %s81
      %s84 = sshll.u32 [#allocation7], 4
      %s85 = int_to_ptr.vmem [resolvable:$true] %s84
      %87 = dma.hbm_to_vmem [thread:$0]  %s7, 32, %s85, [#allocation8]
    $region33: #{forward.1} parent=1 // pred_fallthru
      _
    // Predicated region
    $region34: #{forward.1} parent=1 // pred_check
      _
    $region35: #{forward.1} parent=1 // pred_check_branch
      %89 = sbr.rel (0) target = $region37
    $region36: #{forward.1} parent=1 // pred_region
      %s91 = ssub.s32 384, 384
      %92 = vsyncadd [#allocation8], %s91
      %s93 = sshll.u32 [#allocation9], 4
      %s94 = int_to_ptr.vmem [resolvable:$true] %s93
      %99 = dma.hbm_to_vmem [thread:$0]  %s8, 384, %s94, [#allocation8], 128, 128, 8
    $region37: #{forward.1} parent=1 // pred_fallthru
      _
    // Predicated region
    $region38: #{forward.1} parent=1 // pred_check
      _
    $region39: #{forward.1} parent=1 // pred_check_branch
      %101 = sbr.rel (0) target = $region41
    $region40: #{forward.1} parent=1 // pred_region
      _
    $region41: #{forward.1} parent=1 // pred_fallthru
      _
    // Predicated region
    $region42: #{forward.1} parent=1 // pred_check
      _
    $region43: #{forward.1} parent=1 // pred_check_branch
      %103 = sbr.rel (0) target = $region45
    $region44: #{forward.1} parent=1 // pred_region
      %s105 = ssub.s32 32, 32
      %106 = vsyncadd [#allocation11], %s105
      %s108 = sshll.u32 [#allocation10], 4
      %s109 = int_to_ptr.vmem [resolvable:$true] %s108
      %111 = dma.hbm_to_vmem [thread:$0]  %s10, 32, %s109, [#allocation11]
    $region45: #{forward.1} parent=1 // pred_fallthru
      _
    // Predicated region
    $region46: #{forward.1} parent=1 // pred_check
      _
    $region47: #{forward.1} parent=1 // pred_check_branch
      %113 = sbr.rel (0) target = $region49
    $region48: #{forward.1} parent=1 // pred_region
      %s115 = ssub.s32 1536, 1536
      %116 = vsyncadd [#allocation11], %s115
      %s117 = sshll.u32 [#allocation12], 4
      %s118 = int_to_ptr.vmem [resolvable:$true] %s117
      %123 = dma.hbm_to_vmem [thread:$0]  %s11, 1536, %s118, [#allocation11], 128, 128, 8
    $region49: #{forward.1} parent=1 // pred_fallthru
      _
    // Predicated region
    $region50: #{forward.1} parent=1 // pred_check
      _
    $region51: #{forward.1} parent=1 // pred_check_branch
      %125 = sbr.rel (0) target = $region53
    $region52: #{forward.1} parent=1 // pred_region
      _
    $region53: #{forward.1} parent=1 // pred_fallthru
      _
    // Predicated region
    $region54: #{forward.1} parent=1 // pred_check
      _
    $region55: #{forward.1} parent=1 // pred_check_branch
      %127 = sbr.rel (0) target = $region57
    $region56: #{forward.1} parent=1 // pred_region
      %s129 = ssub.s32 16, 16
      %130 = vsyncadd [#allocation14], %s129
      %s132 = sshll.u32 [#allocation13], 4
      %s133 = int_to_ptr.vmem [resolvable:$true] %s132
      %135 = dma.hbm_to_vmem [thread:$0]  %s13, 16, %s133, [#allocation14]
    $region57: #{forward.1} parent=1 // pred_fallthru
      _
    // Predicated region
    $region58: #{forward.1} parent=1 // pred_check
      _
    $region59: #{forward.1} parent=1 // pred_check_branch
      %137 = sbr.rel (0) target = $region61
    $region60: #{forward.1} parent=1 // pred_region
      %s139 = ssub.s32 768, 768
      %140 = vsyncadd [#allocation14], %s139
      %s141 = sshll.u32 [#allocation15], 4
      %s142 = int_to_ptr.vmem [resolvable:$true] %s141
      %147 = dma.hbm_to_vmem [thread:$0]  %s14, 768, %s142, [#allocation14], 128, 128, 8
    $region61: #{forward.1} parent=1 // pred_fallthru
      _
    // Predicated region
    $region62: #{forward.1} parent=1 // pred_check
      _
    $region63: #{forward.1} parent=1 // pred_check_branch
      %149 = sbr.rel (0) target = $region65
    $region64: #{forward.1} parent=1 // pred_region
      %s151 = ssub.s32 6144, 6144
      %152 = vsyncadd [#allocation17], %s151
      %s153 = sshll.u32 [#allocation16], 4
      %s154 = int_to_ptr.vmem [resolvable:$true] %s153
      %159 = dma.hbm_to_vmem [thread:$0]  %s15, 6144, %s154, [#allocation17], 128, 128, 8
    $region65: #{forward.1} parent=1 // pred_fallthru
      _
    // Predicated region
    $region66: #{forward.1} parent=1 // pred_check
      _
    $region67: #{forward.1} parent=1 // pred_check_branch
      %161 = sbr.rel (0) target = $region69
    $region68: #{forward.1} parent=1 // pred_region
      %s163 = ssub.s32 16, 16
      %164 = vsyncadd [#allocation17], %s163
      %s166 = sshll.u32 [#allocation18], 4
      %s167 = int_to_ptr.vmem [resolvable:$true] %s166
      %169 = dma.hbm_to_vmem [thread:$0]  %s16, 16, %s167, [#allocation17]
    $region69: #{forward.1} parent=1 // pred_fallthru
      _
    // Predicated region
    $region70: #{forward.1} parent=1 // pred_check
      _
    $region71: #{forward.1} parent=1 // pred_check_branch
      %171 = sbr.rel (0) target = $region73
    $region72: #{forward.1} parent=1 // pred_region
      %s173 = ssub.s32 64, 64
      %174 = vsyncadd [#allocation20], %s173
      %s176 = sshll.u32 [#allocation19], 4
      %s177 = int_to_ptr.vmem [resolvable:$true] %s176
      %179 = dma.hbm_to_vmem [thread:$0]  %s17, 64, %s177, [#allocation20]
    $region73: #{forward.1} parent=1 // pred_fallthru
      _
    // Predicated region
    $region74: #{forward.1} parent=1 // pred_check
      _
    $region75: #{forward.1} parent=1 // pred_check_branch
      %181 = sbr.rel (0) target = $region77
    $region76: #{forward.1} parent=1 // pred_region
      _
    $region77: #{forward.1} parent=1 // pred_fallthru
      _
    // Predicated region
    $region78: #{forward.1} parent=1 // pred_check
      _
    $region79: #{forward.1} parent=1 // pred_check_branch
      %183 = sbr.rel (0) target = $region81
    $region80: #{forward.1} parent=1 // pred_region
      %s185 = ssub.s32 16, 16
      %186 = vsyncadd [#allocation20], %s185
      %s188 = sshll.u32 [#allocation21], 4
      %s189 = int_to_ptr.vmem [resolvable:$true] %s188
      %191 = dma.hbm_to_vmem [thread:$0]  %s19, 16, %s189, [#allocation20]
    $region81: #{forward.1} parent=1 // pred_fallthru
      _
    // Predicated region
    $region82: #{forward.1} parent=1 // pred_check
      _
    $region83: #{forward.1} parent=1 // pred_check_branch
      %193 = sbr.rel (0) target = $region85
    $region84: #{forward.1} parent=1 // pred_region
      %194 = dma.done [#allocation3], 1536
    $region85: #{forward.1} parent=1 // pred_fallthru
      _
    // Predicated region
    $region86: #{forward.1} parent=1 // pred_check
      _
    $region87: #{forward.1} parent=1 // pred_check_branch
      %196 = sbr.rel (0) target = $region89
    $region88: #{forward.1} parent=1 // pred_region
      %197 = dma.done [#allocation5], 32
    $region89: #{forward.1} parent=1 // pred_fallthru
      _
    // Predicated region
    $region90: #{forward.1} parent=1 // pred_check
      _
    $region91: #{forward.1} parent=1 // pred_check_branch
      %199 = sbr.rel (0) target = $region93
    $region92: #{forward.1} parent=1 // pred_region
      %200 = dma.done [#allocation5], 768
    $region93: #{forward.1} parent=1 // pred_fallthru
      _
    // Predicated region
    $region94: #{forward.1} parent=1 // pred_check
      _
    $region95: #{forward.1} parent=1 // pred_check_branch
      %202 = sbr.rel (0) target = $region97
    $region96: #{forward.1} parent=1 // pred_region
      %203 = dma.done [#allocation8], 32
    $region97: #{forward.1} parent=1 // pred_fallthru
      _
    // Predicated region
    $region98: #{forward.1} parent=1 // pred_check
      _
    $region99: #{forward.1} parent=1 // pred_check_branch
      %205 = sbr.rel (0) target = $region101
    $region100: #{forward.1} parent=1 // pred_region
      %206 = dma.done [#allocation8], 384
    $region101: #{forward.1} parent=1 // pred_fallthru
      _
    // Predicated region
    $region102: #{forward.1} parent=1 // pred_check
      _
    $region103: #{forward.1} parent=1 // pred_check_branch
      %208 = sbr.rel (0) target = $region105
    $region104: #{forward.1} parent=1 // pred_region
      %209 = dma.done [#allocation11], 32
    $region105: #{forward.1} parent=1 // pred_fallthru
      _
    // Predicated region
    $region106: #{forward.1} parent=1 // pred_check
      _
    $region107: #{forward.1} parent=1 // pred_check_branch
      %211 = sbr.rel (0) target = $region109
    $region108: #{forward.1} parent=1 // pred_region
      %212 = dma.done [#allocation11], 1536
    $region109: #{forward.1} parent=1 // pred_fallthru
      _
    // Predicated region
    $region110: #{forward.1} parent=1 // pred_check
      _
    $region111: #{forward.1} parent=1 // pred_check_branch
      %214 = sbr.rel (0) target = $region113
    $region112: #{forward.1} parent=1 // pred_region
      %215 = dma.done [#allocation14], 16
    $region113: #{forward.1} parent=1 // pred_fallthru
      _
    // Predicated region
    $region114: #{forward.1} parent=1 // pred_check
      _
    $region115: #{forward.1} parent=1 // pred_check_branch
      %217 = sbr.rel (0) target = $region117
    $region116: #{forward.1} parent=1 // pred_region
      %218 = dma.done [#allocation14], 768
    $region117: #{forward.1} parent=1 // pred_fallthru
      _
    // Predicated region
    $region118: #{forward.1} parent=1 // pred_check
      _
    $region119: #{forward.1} parent=1 // pred_check_branch
      %220 = sbr.rel (0) target = $region121
    $region120: #{forward.1} parent=1 // pred_region
      %221 = dma.done [#allocation17], 6144
    $region121: #{forward.1} parent=1 // pred_fallthru
      _
    // Predicated region
    $region122: #{forward.1} parent=1 // pred_check
      _
    $region123: #{forward.1} parent=1 // pred_check_branch
      %223 = sbr.rel (0) target = $region125
    $region124: #{forward.1} parent=1 // pred_region
      %224 = dma.done [#allocation17], 16
    $region125: #{forward.1} parent=1 // pred_fallthru
      _
    // Predicated region
    $region126: #{forward.1} parent=1 // pred_check
      _
    $region127: #{forward.1} parent=1 // pred_check_branch
      %226 = sbr.rel (0) target = $region129
    $region128: #{forward.1} parent=1 // pred_region
      %227 = dma.done [#allocation20], 64
    $region129: #{forward.1} parent=1 // pred_fallthru
      _
    // Predicated region
    $region130: #{forward.1} parent=1 // pred_check
      _
    $region131: #{forward.1} parent=1 // pred_check_branch
      %229 = sbr.rel (0) target = $region133
    $region132: #{forward.1} parent=1 // pred_region
      %230 = dma.done [#allocation20], 16
    $region133: #{forward.1} parent=1 // pred_fallthru
      _
    %v231 = vld [vmem:[%s0] sm:$0xff]
    %v232 = vld [vmem:[%s0 + $0x8] sm:$0xff]
    %v233 = vld [vmem:[%s0 + $0x10] sm:$0xff]
    %v234 = vld [vmem:[%s0 + $0x18] sm:$0xff]
    %v235 = vld [vmem:[#allocation2] sm:$0xff]
    %v236 = vld [vmem:[#allocation2 + $0x8] sm:$0xff]
    %v237 = vld [vmem:[#allocation2 + $0x10] sm:$0xff]
    %v238 = vld [vmem:[#allocation2 + $0x18] sm:$0xff]
    %vm239 = vcmask 261120
    %v241 = vsel %vm239, %v235, 0
    %v244 = vsel %vm239, %v236, 0
    %v247 = vsel %vm239, %v237, 0
    %v250 = vsel %vm239, %v238, 0
    %252 = vmatprep.subr.mxu0 0.0
    %253 = vmatpush1.msra.mxu0 0.0
    %254 = vmatprep.subr.mxu0 0.0
    %255 = vmatpush1.msra.mxu0 0.0
    %256 = vmatprep.subr.mxu0 0.0
    %257 = vmatpush1.msra.mxu0 0.0
    %258 = vmatprep.subr.mxu0 0.0
    %259 = vmatpush1.msra.mxu0 0.0
    %260 = vmatprep.subr.mxu0 0.0
    %261 = vmatpush1.msra.mxu0 0.0
    %262 = vmatprep.subr.mxu0 0.0
    %263 = vmatpush1.msra.mxu0 0.0
    %264 = vmatprep.subr.mxu0 0.0
    %265 = vmatpush1.msra.mxu0 0.0
    %266 = vmatprep.subr.mxu0 0.0
    %267 = vmatpush1.msra.mxu0 0.0
    %268 = vmatprep.subr.mxu0 0.0
    %269 = vmatpush1.msra.mxu0 0.0
    %270 = vmatprep.subr.mxu0 0.0
    %271 = vmatpush1.msra.mxu0 0.0
    %272 = vmatprep.subr.mxu0 0.0
    %273 = vmatpush1.msra.mxu0 0.0
    %274 = vmatprep.subr.mxu0 0.0
    %275 = vmatpush1.msra.mxu0 0.0
    %276 = vmatprep.subr.mxu0 0.0
    %277 = vmatpush1.msra.mxu0 %v234
    %278 = vmatprep.subr.mxu0 0.0
    %279 = vmatpush1.msra.mxu0 %v233
    %280 = vmatprep.subr.mxu0 0.0
    %281 = vmatpush1.msra.mxu0 %v232
    %282 = vmatprep.subr.mxu0 0.0
    %283 = vmatpush1.msra.mxu0 %v231
    %284 = vmatprep.subr.mxu0 0.0
    %285 = vmatpush2.msra.mxu0 0.0
    %286 = vmatprep.subr.mxu0 0.0
    %287 = vmatpush2.msra.mxu0 0.0
    %288 = vmatprep.subr.mxu0 0.0
    %289 = vmatpush2.msra.mxu0 0.0
    %290 = vmatprep.subr.mxu0 0.0
    %291 = vmatpush2.msra.mxu0 0.0
    %292 = vmatprep.subr.mxu0 0.0
    %293 = vmatpush2.msra.mxu0 0.0
    %294 = vmatprep.subr.mxu0 0.0
    %295 = vmatpush2.msra.mxu0 0.0
    %296 = vmatprep.subr.mxu0 0.0
    %297 = vmatpush2.msra.mxu0 0.0
    %298 = vmatprep.subr.mxu0 0.0
    %299 = vmatpush2.msra.mxu0 0.0
    %300 = vmatprep.subr.mxu0 0.0
    %301 = vmatpush2.msra.mxu0 0.0
    %302 = vmatprep.subr.mxu0 0.0
    %303 = vmatpush2.msra.mxu0 0.0
    %304 = vmatprep.subr.mxu0 0.0
    %305 = vmatpush2.msra.mxu0 0.0
    %306 = vmatprep.subr.mxu0 0.0
    %307 = vmatpush2.msra.mxu0 0.0
    %308 = vmatprep.subr.mxu0 0.0
    %309 = vmatpush2.msra.mxu0 0.0
    %310 = vmatprep.subr.mxu0 0.0
    %311 = vmatpush2.msra.mxu0 0.0
    %312 = vmatprep.subr.mxu0 0.0
    %313 = vmatpush2.msra.mxu0 0.0
    %314 = vmatprep.subr.mxu0 0.0
    %315 = vmatpush2.msra.mxu0 0.0
    %316 = vmatprep.mubr.f32.mxu0 0.0
    %317 = vmatmul.mubr.f32.gmra.mxu0 %v241
    %v318 = vpop.f32.mrf.mxu0
    %v319 = vadd.f32 0.0, %v318
    %v320 = vpop.f32.mrf.mxu0
    %321 = vmatprep.mubr.f32.mxu0 0.0
    %322 = vmatmul.mubr.f32.gmra.mxu0 %v244
    %v323 = vpop.f32.mrf.mxu0
    %v324 = vadd.f32 0.0, %v323
    %v325 = vpop.f32.mrf.mxu0
    %326 = vmatprep.mubr.f32.mxu0 0.0
    %327 = vmatmul.mubr.f32.gmra.mxu0 %v247
    %v328 = vpop.f32.mrf.mxu0
    %v329 = vadd.f32 0.0, %v328
    %v330 = vpop.f32.mrf.mxu0
    %331 = vmatprep.mubr.f32.mxu0 0.0
    %332 = vmatmul.mubr.f32.gmra.mxu0 %v250
    %v333 = vpop.f32.mrf.mxu0
    %v334 = vadd.f32 0.0, %v333
    %v335 = vpop.f32.mrf.mxu0
    %336 = vdwg.mxu0
    %v337 = vld [vmem:[%s3] sm:$0xff]
    %v338 = vld [vmem:[%s3 + $0x8] sm:$0xff]
    %v339 = vld [vmem:[%s3 + $0x10] sm:$0xff]
    %v340 = vld [vmem:[%s3 + $0x18] sm:$0xff]
    %v341 = vld [vmem:[%s3 + $0x20] sm:$0xff]
    %v342 = vld [vmem:[%s3 + $0x28] sm:$0xff]
    %v343 = vld [vmem:[%s3 + $0x30] sm:$0xff]
    %v344 = vld [vmem:[%s3 + $0x38] sm:$0xff]
    %v345 = vld [vmem:[%s3 + $0x40] sm:$0xff]
    %v346 = vld [vmem:[%s3 + $0x48] sm:$0xff]
    %v347 = vld [vmem:[%s3 + $0x50] sm:$0xff]
    %v348 = vld [vmem:[%s3 + $0x58] sm:$0xff]
    %v349 = vld [vmem:[%s3 + $0x60] sm:$0xff]
    %v350 = vld [vmem:[%s3 + $0x68] sm:$0xff]
    %v351 = vld [vmem:[%s3 + $0x70] sm:$0xff]
    %v352 = vld [vmem:[%s3 + $0x78] sm:$0xff]
    %v353 = vld [vmem:[%s3 + $0x80] sm:$0xff]
    %v354 = vld [vmem:[%s3 + $0x88] sm:$0xff]
    %v355 = vld [vmem:[%s3 + $0x90] sm:$0xff]
    %v356 = vld [vmem:[%s3 + $0x98] sm:$0xff]
    %v357 = vld [vmem:[%s3 + $0xa0] sm:$0xff]
    %v358 = vld [vmem:[%s3 + $0xa8] sm:$0xff]
    %v359 = vld [vmem:[%s3 + $0xb0] sm:$0xff]
    %v360 = vld [vmem:[%s3 + $0xb8] sm:$0xff]
    %v361 = vld [vmem:[%s3 + $0xc0] sm:$0xff]
    %v362 = vld [vmem:[%s3 + $0xc8] sm:$0xff]
    %v363 = vld [vmem:[%s3 + $0xd0] sm:$0xff]
    %v364 = vld [vmem:[%s3 + $0xd8] sm:$0xff]
    %v365 = vld [vmem:[%s3 + $0xe0] sm:$0xff]
    %v366 = vld [vmem:[%s3 + $0xe8] sm:$0xff]
    %v367 = vld [vmem:[%s3 + $0xf0] sm:$0xff]
    %v368 = vld [vmem:[%s3 + $0xf8] sm:$0xff]
    %s369 = scalar_lea.vmem [#allocation2], 32
    %v370 = vld [vmem:[%s369] sm:$0xff]
    %v371 = vld [vmem:[%s369 + $0x8] sm:$0xff]
    %v372 = vld [vmem:[%s369 + $0x10] sm:$0xff]
    %v373 = vld [vmem:[%s369 + $0x18] sm:$0xff]
    %v375 = vsel %vm239, %v370, 0
    %v378 = vsel %vm239, %v371, 0
    %v381 = vsel %vm239, %v372, 0
    %v384 = vsel %vm239, %v373, 0
    %386 = vmatprep.subr.mxu0 0.0
    %387 = vmatpush1.msra.mxu0 0.0
    %388 = vmatprep.subr.mxu0 0.0
    %389 = vmatpush1.msra.mxu0 0.0
    %390 = vmatprep.subr.mxu0 0.0
    %391 = vmatpush1.msra.mxu0 0.0
    %392 = vmatprep.subr.mxu0 0.0
    %393 = vmatpush1.msra.mxu0 0.0
    %394 = vmatprep.subr.mxu0 0.0
    %395 = vmatpush1.msra.mxu0 0.0
    %396 = vmatprep.subr.mxu0 0.0
    %397 = vmatpush1.msra.mxu0 0.0
    %398 = vmatprep.subr.mxu0 0.0
    %399 = vmatpush1.msra.mxu0 0.0
    %400 = vmatprep.subr.mxu0 0.0
    %401 = vmatpush1.msra.mxu0 0.0
    %402 = vmatprep.subr.mxu0 0.0
    %403 = vmatpush1.msra.mxu0 0.0
    %404 = vmatprep.subr.mxu0 0.0
    %405 = vmatpush1.msra.mxu0 0.0
    %406 = vmatprep.subr.mxu0 0.0
    %407 = vmatpush1.msra.mxu0 0.0
    %408 = vmatprep.subr.mxu0 0.0
    %409 = vmatpush1.msra.mxu0 0.0
    %410 = vmatprep.subr.mxu0 0.0
    %411 = vmatpush1.msra.mxu0 %v234
    %412 = vmatprep.subr.mxu0 0.0
    %413 = vmatpush1.msra.mxu0 %v233
    %414 = vmatprep.subr.mxu0 0.0
    %415 = vmatpush1.msra.mxu0 %v232
    %416 = vmatprep.subr.mxu0 0.0
    %417 = vmatpush1.msra.mxu0 %v231
    %418 = vmatprep.subr.mxu0 0.0
    %419 = vmatpush2.msra.mxu0 0.0
    %420 = vmatprep.subr.mxu0 0.0
    %421 = vmatpush2.msra.mxu0 0.0
    %422 = vmatprep.subr.mxu0 0.0
    %423 = vmatpush2.msra.mxu0 0.0
    %424 = vmatprep.subr.mxu0 0.0
    %425 = vmatpush2.msra.mxu0 0.0
    %426 = vmatprep.subr.mxu0 0.0
    %427 = vmatpush2.msra.mxu0 0.0
    %428 = vmatprep.subr.mxu0 0.0
    %429 = vmatpush2.msra.mxu0 0.0
    %430 = vmatprep.subr.mxu0 0.0
    %431 = vmatpush2.msra.mxu0 0.0
    %432 = vmatprep.subr.mxu0 0.0
    %433 = vmatpush2.msra.mxu0 0.0
    %434 = vmatprep.subr.mxu0 0.0
    %435 = vmatpush2.msra.mxu0 0.0
    %436 = vmatprep.subr.mxu0 0.0
    %437 = vmatpush2.msra.mxu0 0.0
    %438 = vmatprep.subr.mxu0 0.0
    %439 = vmatpush2.msra.mxu0 0.0
    %440 = vmatprep.subr.mxu0 0.0
    %441 = vmatpush2.msra.mxu0 0.0
    %442 = vmatprep.subr.mxu0 0.0
    %443 = vmatpush2.msra.mxu0 0.0
    %444 = vmatprep.subr.mxu0 0.0
    %445 = vmatpush2.msra.mxu0 0.0
    %446 = vmatprep.subr.mxu0 0.0
    %447 = vmatpush2.msra.mxu0 0.0
    %448 = vmatprep.subr.mxu0 0.0
    %449 = vmatpush2.msra.mxu0 0.0
    %450 = vmatprep.mubr.f32.mxu0 0.0
    %451 = vmatmul.mubr.f32.gmra.mxu0 %v375
    %v452 = vpop.f32.mrf.mxu0
    %v453 = vadd.f32 0.0, %v452
    %v454 = vpop.f32.mrf.mxu0
    %455 = vmatprep.mubr.f32.mxu0 0.0
    %456 = vmatmul.mubr.f32.gmra.mxu0 %v378
    %v457 = vpop.f32.mrf.mxu0
    %v458 = vadd.f32 0.0, %v457
    %v459 = vpop.f32.mrf.mxu0
    %460 = vmatprep.mubr.f32.mxu0 0.0
    %461 = vmatmul.mubr.f32.gmra.mxu0 %v381
    %v462 = vpop.f32.mrf.mxu0
    %v463 = vadd.f32 0.0, %v462
    %v464 = vpop.f32.mrf.mxu0
    %465 = vmatprep.mubr.f32.mxu0 0.0
    %466 = vmatmul.mubr.f32.gmra.mxu0 %v384
    %v467 = vpop.f32.mrf.mxu0
    %v468 = vadd.f32 0.0, %v467
    %v469 = vpop.f32.mrf.mxu0
    %470 = vdwg.mxu0
    %s471 = scalar_lea.vmem %s3, 256
    %v472 = vld [vmem:[%s471] sm:$0xff]
    %v473 = vld [vmem:[%s471 + $0x8] sm:$0xff]
    %v474 = vld [vmem:[%s471 + $0x10] sm:$0xff]
    %v475 = vld [vmem:[%s471 + $0x18] sm:$0xff]
    %v476 = vld [vmem:[%s471 + $0x20] sm:$0xff]
    %v477 = vld [vmem:[%s471 + $0x28] sm:$0xff]
    %v478 = vld [vmem:[%s471 + $0x30] sm:$0xff]
    %v479 = vld [vmem:[%s471 + $0x38] sm:$0xff]
    %v480 = vld [vmem:[%s471 + $0x40] sm:$0xff]
    %v481 = vld [vmem:[%s471 + $0x48] sm:$0xff]
    %v482 = vld [vmem:[%s471 + $0x50] sm:$0xff]
    %v483 = vld [vmem:[%s471 + $0x58] sm:$0xff]
    %v484 = vld [vmem:[%s471 + $0x60] sm:$0xff]
    %v485 = vld [vmem:[%s471 + $0x68] sm:$0xff]
    %v486 = vld [vmem:[%s471 + $0x70] sm:$0xff]
    %v487 = vld [vmem:[%s471 + $0x78] sm:$0xff]
    %v488 = vld [vmem:[%s471 + $0x80] sm:$0xff]
    %v489 = vld [vmem:[%s471 + $0x88] sm:$0xff]
    %v490 = vld [vmem:[%s471 + $0x90] sm:$0xff]
    %v491 = vld [vmem:[%s471 + $0x98] sm:$0xff]
    %v492 = vld [vmem:[%s471 + $0xa0] sm:$0xff]
    %v493 = vld [vmem:[%s471 + $0xa8] sm:$0xff]
    %v494 = vld [vmem:[%s471 + $0xb0] sm:$0xff]
    %v495 = vld [vmem:[%s471 + $0xb8] sm:$0xff]
    %v496 = vld [vmem:[%s471 + $0xc0] sm:$0xff]
    %v497 = vld [vmem:[%s471 + $0xc8] sm:$0xff]
    %v498 = vld [vmem:[%s471 + $0xd0] sm:$0xff]
    %v499 = vld [vmem:[%s471 + $0xd8] sm:$0xff]
    %v500 = vld [vmem:[%s471 + $0xe0] sm:$0xff]
    %v501 = vld [vmem:[%s471 + $0xe8] sm:$0xff]
    %v502 = vld [vmem:[%s471 + $0xf0] sm:$0xff]
    %v503 = vld [vmem:[%s471 + $0xf8] sm:$0xff]
    %504 = vmatprep.subr.mxu0 %v503
    %505 = vmatpush1.msra.mxu0 %v502
    %506 = vmatprep.subr.mxu0 %v501
    %507 = vmatpush1.msra.mxu0 %v500
    %508 = vmatprep.subr.mxu0 %v499
    %509 = vmatpush1.msra.mxu0 %v498
    %510 = vmatprep.subr.mxu0 %v497
    %511 = vmatpush1.msra.mxu0 %v496
    %512 = vmatprep.subr.mxu0 %v495
    %513 = vmatpush1.msra.mxu0 %v494
    %514 = vmatprep.subr.mxu0 %v493
    %515 = vmatpush1.msra.mxu0 %v492
    %516 = vmatprep.subr.mxu0 %v491
    %517 = vmatpush1.msra.mxu0 %v490
    %518 = vmatprep.subr.mxu0 %v489
    %519 = vmatpush1.msra.mxu0 %v488
    %520 = vmatprep.subr.mxu0 %v487
    %521 = vmatpush1.msra.mxu0 %v486
    %522 = vmatprep.subr.mxu0 %v485
    %523 = vmatpush1.msra.mxu0 %v484
    %524 = vmatprep.subr.mxu0 %v483
    %525 = vmatpush1.msra.mxu0 %v482
    %526 = vmatprep.subr.mxu0 %v481
    %527 = vmatpush1.msra.mxu0 %v480
    %528 = vmatprep.subr.mxu0 %v479
    %529 = vmatpush1.msra.mxu0 %v478
    %530 = vmatprep.subr.mxu0 %v477
    %531 = vmatpush1.msra.mxu0 %v476
    %532 = vmatprep.subr.mxu0 %v475
    %533 = vmatpush1.msra.mxu0 %v474
    %534 = vmatprep.subr.mxu0 %v473
    %535 = vmatpush1.msra.mxu0 %v472
    %536 = vmatprep.subr.mxu0 0.0
    %537 = vmatpush2.msra.mxu0 0.0
    %538 = vmatprep.subr.mxu0 0.0
    %539 = vmatpush2.msra.mxu0 0.0
    %540 = vmatprep.subr.mxu0 0.0
    %541 = vmatpush2.msra.mxu0 0.0
    %542 = vmatprep.subr.mxu0 0.0
    %543 = vmatpush2.msra.mxu0 0.0
    %544 = vmatprep.subr.mxu0 0.0
    %545 = vmatpush2.msra.mxu0 0.0
    %546 = vmatprep.subr.mxu0 0.0
    %547 = vmatpush2.msra.mxu0 0.0
    %548 = vmatprep.subr.mxu0 0.0
    %549 = vmatpush2.msra.mxu0 0.0
    %550 = vmatprep.subr.mxu0 0.0
    %551 = vmatpush2.msra.mxu0 0.0
    %552 = vmatprep.subr.mxu0 0.0
    %553 = vmatpush2.msra.mxu0 0.0
    %554 = vmatprep.subr.mxu0 0.0
    %555 = vmatpush2.msra.mxu0 0.0
    %556 = vmatprep.subr.mxu0 0.0
    %557 = vmatpush2.msra.mxu0 0.0
    %558 = vmatprep.subr.mxu0 0.0
    %559 = vmatpush2.msra.mxu0 0.0
    %560 = vmatprep.subr.mxu0 0.0
    %561 = vmatpush2.msra.mxu0 0.0
    %562 = vmatprep.subr.mxu0 0.0
    %563 = vmatpush2.msra.mxu0 0.0
    %564 = vmatprep.subr.mxu0 0.0
    %565 = vmatpush2.msra.mxu0 0.0
    %566 = vmatprep.subr.mxu0 0.0
    %567 = vmatpush2.msra.mxu0 0.0
    %568 = vmatprep.mubr.f32.mxu0 0.0
    %569 = vmatmul.mubr.f32.gmra.mxu0 %v453
    %v570 = vpop.f32.mrf.mxu0
    %v571 = vadd.f32 0.0, %v570
    %v572 = vpop.f32.mrf.mxu0
    %v573 = vadd.f32 0.0, %v572
    %574 = vmatprep.mubr.f32.mxu0 0.0
    %575 = vmatmul.mubr.f32.gmra.mxu0 %v458
    %v576 = vpop.f32.mrf.mxu0
    %v577 = vadd.f32 0.0, %v576
    %v578 = vpop.f32.mrf.mxu0
    %v579 = vadd.f32 0.0, %v578
    %580 = vmatprep.mubr.f32.mxu0 0.0
    %581 = vmatmul.mubr.f32.gmra.mxu0 %v463
    %v582 = vpop.f32.mrf.mxu0
    %v583 = vadd.f32 0.0, %v582
    %v584 = vpop.f32.mrf.mxu0
    %v585 = vadd.f32 0.0, %v584
    %586 = vmatprep.mubr.f32.mxu0 0.0
    %587 = vmatmul.mubr.f32.gmra.mxu0 %v468
    %v588 = vpop.f32.mrf.mxu0
    %v589 = vadd.f32 0.0, %v588
    %v590 = vpop.f32.mrf.mxu0
    %v591 = vadd.f32 0.0, %v590
    %592 = vdwg.mxu0
    %593 = vmatprep.subr.mxu0 %v368
    %594 = vmatpush1.msra.mxu0 %v367
    %595 = vmatprep.subr.mxu0 %v366
    %596 = vmatpush1.msra.mxu0 %v365
    %597 = vmatprep.subr.mxu0 %v364
    %598 = vmatpush1.msra.mxu0 %v363
    %599 = vmatprep.subr.mxu0 %v362
    %600 = vmatpush1.msra.mxu0 %v361
    %601 = vmatprep.subr.mxu0 %v360
    %602 = vmatpush1.msra.mxu0 %v359
    %603 = vmatprep.subr.mxu0 %v358
    %604 = vmatpush1.msra.mxu0 %v357
    %605 = vmatprep.subr.mxu0 %v356
    %606 = vmatpush1.msra.mxu0 %v355
    %607 = vmatprep.subr.mxu0 %v354
    %608 = vmatpush1.msra.mxu0 %v353
    %609 = vmatprep.subr.mxu0 %v352
    %610 = vmatpush1.msra.mxu0 %v351
    %611 = vmatprep.subr.mxu0 %v350
    %612 = vmatpush1.msra.mxu0 %v349
    %613 = vmatprep.subr.mxu0 %v348
    %614 = vmatpush1.msra.mxu0 %v347
    %615 = vmatprep.subr.mxu0 %v346
    %616 = vmatpush1.msra.mxu0 %v345
    %617 = vmatprep.subr.mxu0 %v344
    %618 = vmatpush1.msra.mxu0 %v343
    %619 = vmatprep.subr.mxu0 %v342
    %620 = vmatpush1.msra.mxu0 %v341
    %621 = vmatprep.subr.mxu0 %v340
    %622 = vmatpush1.msra.mxu0 %v339
    %623 = vmatprep.subr.mxu0 %v338
    %624 = vmatpush1.msra.mxu0 %v337
    %625 = vmatprep.subr.mxu0 0.0
    %626 = vmatpush2.msra.mxu0 0.0
    %627 = vmatprep.subr.mxu0 0.0
    %628 = vmatpush2.msra.mxu0 0.0
    %629 = vmatprep.subr.mxu0 0.0
    %630 = vmatpush2.msra.mxu0 0.0
    %631 = vmatprep.subr.mxu0 0.0
    %632 = vmatpush2.msra.mxu0 0.0
    %633 = vmatprep.subr.mxu0 0.0
    %634 = vmatpush2.msra.mxu0 0.0
    %635 = vmatprep.subr.mxu0 0.0
    %636 = vmatpush2.msra.mxu0 0.0
    %637 = vmatprep.subr.mxu0 0.0
    %638 = vmatpush2.msra.mxu0 0.0
    %639 = vmatprep.subr.mxu0 0.0
    %640 = vmatpush2.msra.mxu0 0.0
    %641 = vmatprep.subr.mxu0 0.0
    %642 = vmatpush2.msra.mxu0 0.0
    %643 = vmatprep.subr.mxu0 0.0
    %644 = vmatpush2.msra.mxu0 0.0
    %645 = vmatprep.subr.mxu0 0.0
    %646 = vmatpush2.msra.mxu0 0.0
    %647 = vmatprep.subr.mxu0 0.0
    %648 = vmatpush2.msra.mxu0 0.0
    %649 = vmatprep.subr.mxu0 0.0
    %650 = vmatpush2.msra.mxu0 0.0
    %651 = vmatprep.subr.mxu0 0.0
    %652 = vmatpush2.msra.mxu0 0.0
    %653 = vmatprep.subr.mxu0 0.0
    %654 = vmatpush2.msra.mxu0 0.0
    %655 = vmatprep.subr.mxu0 0.0
    %656 = vmatpush2.msra.mxu0 0.0
    %657 = vmatprep.mubr.f32.mxu0 0.0
    %658 = vmatmul.mubr.f32.gmra.mxu0 %v319
    %v659 = vpop.f32.mrf.mxu0
    %v660 = vadd.f32 %v571, %v659
    %v661 = vpop.f32.mrf.mxu0
    %v662 = vadd.f32 %v573, %v661
    %663 = vmatprep.mubr.f32.mxu0 0.0
    %664 = vmatmul.mubr.f32.gmra.mxu0 %v324
    %v665 = vpop.f32.mrf.mxu0
    %v666 = vadd.f32 %v577, %v665
    %v667 = vpop.f32.mrf.mxu0
    %v668 = vadd.f32 %v579, %v667
    %669 = vmatprep.mubr.f32.mxu0 0.0
    %670 = vmatmul.mubr.f32.gmra.mxu0 %v329
    %v671 = vpop.f32.mrf.mxu0
    %v672 = vadd.f32 %v583, %v671
    %v673 = vpop.f32.mrf.mxu0
    %v674 = vadd.f32 %v585, %v673
    %675 = vmatprep.mubr.f32.mxu0 0.0
    %676 = vmatmul.mubr.f32.gmra.mxu0 %v334
    %v677 = vpop.f32.mrf.mxu0
    %v678 = vadd.f32 %v589, %v677
    %v679 = vpop.f32.mrf.mxu0
    %v680 = vadd.f32 %v591, %v679
    %681 = vdwg.mxu0
    %s682 = scalar_lea.vmem [#allocation2], 64
    %v683 = vld [vmem:[%s682] sm:$0xff]
    %v684 = vld [vmem:[%s682 + $0x8] sm:$0xff]
    %v685 = vld [vmem:[%s682 + $0x10] sm:$0xff]
    %v686 = vld [vmem:[%s682 + $0x18] sm:$0xff]
    %v688 = vsel %vm239, %v683, 0
    %v691 = vsel %vm239, %v684, 0
    %v694 = vsel %vm239, %v685, 0
    %v697 = vsel %vm239, %v686, 0
    %699 = vmatprep.subr.mxu0 0.0
    %700 = vmatpush1.msra.mxu0 0.0
    %701 = vmatprep.subr.mxu0 0.0
    %702 = vmatpush1.msra.mxu0 0.0
    %703 = vmatprep.subr.mxu0 0.0
    %704 = vmatpush1.msra.mxu0 0.0
    %705 = vmatprep.subr.mxu0 0.0
    %706 = vmatpush1.msra.mxu0 0.0
    %707 = vmatprep.subr.mxu0 0.0
    %708 = vmatpush1.msra.mxu0 0.0
    %709 = vmatprep.subr.mxu0 0.0
    %710 = vmatpush1.msra.mxu0 0.0
    %711 = vmatprep.subr.mxu0 0.0
    %712 = vmatpush1.msra.mxu0 0.0
    %713 = vmatprep.subr.mxu0 0.0
    %714 = vmatpush1.msra.mxu0 0.0
    %715 = vmatprep.subr.mxu0 0.0
    %716 = vmatpush1.msra.mxu0 0.0
    %717 = vmatprep.subr.mxu0 0.0
    %718 = vmatpush1.msra.mxu0 0.0
    %719 = vmatprep.subr.mxu0 0.0
    %720 = vmatpush1.msra.mxu0 0.0
    %721 = vmatprep.subr.mxu0 0.0
    %722 = vmatpush1.msra.mxu0 0.0
    %723 = vmatprep.subr.mxu0 0.0
    %724 = vmatpush1.msra.mxu0 %v234
    %725 = vmatprep.subr.mxu0 0.0
    %726 = vmatpush1.msra.mxu0 %v233
    %727 = vmatprep.subr.mxu0 0.0
    %728 = vmatpush1.msra.mxu0 %v232
    %729 = vmatprep.subr.mxu0 0.0
    %730 = vmatpush1.msra.mxu0 %v231
    %731 = vmatprep.subr.mxu0 0.0
    %732 = vmatpush2.msra.mxu0 0.0
    %733 = vmatprep.subr.mxu0 0.0
    %734 = vmatpush2.msra.mxu0 0.0
    %735 = vmatprep.subr.mxu0 0.0
    %736 = vmatpush2.msra.mxu0 0.0
    %737 = vmatprep.subr.mxu0 0.0
    %738 = vmatpush2.msra.mxu0 0.0
    %739 = vmatprep.subr.mxu0 0.0
    %740 = vmatpush2.msra.mxu0 0.0
    %741 = vmatprep.subr.mxu0 0.0
    %742 = vmatpush2.msra.mxu0 0.0
    %743 = vmatprep.subr.mxu0 0.0
    %744 = vmatpush2.msra.mxu0 0.0
    %745 = vmatprep.subr.mxu0 0.0
    %746 = vmatpush2.msra.mxu0 0.0
    %747 = vmatprep.subr.mxu0 0.0
    %748 = vmatpush2.msra.mxu0 0.0
    %749 = vmatprep.subr.mxu0 0.0
    %750 = vmatpush2.msra.mxu0 0.0
    %751 = vmatprep.subr.mxu0 0.0
    %752 = vmatpush2.msra.mxu0 0.0
    %753 = vmatprep.subr.mxu0 0.0
    %754 = vmatpush2.msra.mxu0 0.0
    %755 = vmatprep.subr.mxu0 0.0
    %756 = vmatpush2.msra.mxu0 0.0
    %757 = vmatprep.subr.mxu0 0.0
    %758 = vmatpush2.msra.mxu0 0.0
    %759 = vmatprep.subr.mxu0 0.0
    %760 = vmatpush2.msra.mxu0 0.0
    %761 = vmatprep.subr.mxu0 0.0
    %762 = vmatpush2.msra.mxu0 0.0
    %763 = vmatprep.mubr.f32.mxu0 0.0
    %764 = vmatmul.mubr.f32.gmra.mxu0 %v688
    %v765 = vpop.f32.mrf.mxu0
    %v766 = vadd.f32 0.0, %v765
    %v767 = vpop.f32.mrf.mxu0
    %768 = vmatprep.mubr.f32.mxu0 0.0
    %769 = vmatmul.mubr.f32.gmra.mxu0 %v691
    %v770 = vpop.f32.mrf.mxu0
    %v771 = vadd.f32 0.0, %v770
    %v772 = vpop.f32.mrf.mxu0
    %773 = vmatprep.mubr.f32.mxu0 0.0
    %774 = vmatmul.mubr.f32.gmra.mxu0 %v694
    %v775 = vpop.f32.mrf.mxu0
    %v776 = vadd.f32 0.0, %v775
    %v777 = vpop.f32.mrf.mxu0
    %778 = vmatprep.mubr.f32.mxu0 0.0
    %779 = vmatmul.mubr.f32.gmra.mxu0 %v697
    %v780 = vpop.f32.mrf.mxu0
    %v781 = vadd.f32 0.0, %v780
    %v782 = vpop.f32.mrf.mxu0
    %783 = vdwg.mxu0
    %s784 = scalar_lea.vmem %s3, 512
    %v785 = vld [vmem:[%s784] sm:$0xff]
    %v786 = vld [vmem:[%s784 + $0x8] sm:$0xff]
    %v787 = vld [vmem:[%s784 + $0x10] sm:$0xff]
    %v788 = vld [vmem:[%s784 + $0x18] sm:$0xff]
    %v789 = vld [vmem:[%s784 + $0x20] sm:$0xff]
    %v790 = vld [vmem:[%s784 + $0x28] sm:$0xff]
    %v791 = vld [vmem:[%s784 + $0x30] sm:$0xff]
    %v792 = vld [vmem:[%s784 + $0x38] sm:$0xff]
    %v793 = vld [vmem:[%s784 + $0x40] sm:$0xff]
    %v794 = vld [vmem:[%s784 + $0x48] sm:$0xff]
    %v795 = vld [vmem:[%s784 + $0x50] sm:$0xff]
    %v796 = vld [vmem:[%s784 + $0x58] sm:$0xff]
    %v797 = vld [vmem:[%s784 + $0x60] sm:$0xff]
    %v798 = vld [vmem:[%s784 + $0x68] sm:$0xff]
    %v799 = vld [vmem:[%s784 + $0x70] sm:$0xff]
    %v800 = vld [vmem:[%s784 + $0x78] sm:$0xff]
    %v801 = vld [vmem:[%s784 + $0x80] sm:$0xff]
    %v802 = vld [vmem:[%s784 + $0x88] sm:$0xff]
    %v803 = vld [vmem:[%s784 + $0x90] sm:$0xff]
    %v804 = vld [vmem:[%s784 + $0x98] sm:$0xff]
    %v805 = vld [vmem:[%s784 + $0xa0] sm:$0xff]
    %v806 = vld [vmem:[%s784 + $0xa8] sm:$0xff]
    %v807 = vld [vmem:[%s784 + $0xb0] sm:$0xff]
    %v808 = vld [vmem:[%s784 + $0xb8] sm:$0xff]
    %v809 = vld [vmem:[%s784 + $0xc0] sm:$0xff]
    %v810 = vld [vmem:[%s784 + $0xc8] sm:$0xff]
    %v811 = vld [vmem:[%s784 + $0xd0] sm:$0xff]
    %v812 = vld [vmem:[%s784 + $0xd8] sm:$0xff]
    %v813 = vld [vmem:[%s784 + $0xe0] sm:$0xff]
    %v814 = vld [vmem:[%s784 + $0xe8] sm:$0xff]
    %v815 = vld [vmem:[%s784 + $0xf0] sm:$0xff]
    %v816 = vld [vmem:[%s784 + $0xf8] sm:$0xff]
    %817 = vmatprep.subr.mxu0 %v816
    %818 = vmatpush1.msra.mxu0 %v815
    %819 = vmatprep.subr.mxu0 %v814
    %820 = vmatpush1.msra.mxu0 %v813
    %821 = vmatprep.subr.mxu0 %v812
    %822 = vmatpush1.msra.mxu0 %v811
    %823 = vmatprep.subr.mxu0 %v810
    %824 = vmatpush1.msra.mxu0 %v809
    %825 = vmatprep.subr.mxu0 %v808
    %826 = vmatpush1.msra.mxu0 %v807
    %827 = vmatprep.subr.mxu0 %v806
    %828 = vmatpush1.msra.mxu0 %v805
    %829 = vmatprep.subr.mxu0 %v804
    %830 = vmatpush1.msra.mxu0 %v803
    %831 = vmatprep.subr.mxu0 %v802
    %832 = vmatpush1.msra.mxu0 %v801
    %833 = vmatprep.subr.mxu0 %v800
    %834 = vmatpush1.msra.mxu0 %v799
    %835 = vmatprep.subr.mxu0 %v798
    %836 = vmatpush1.msra.mxu0 %v797
    %837 = vmatprep.subr.mxu0 %v796
    %838 = vmatpush1.msra.mxu0 %v795
    %839 = vmatprep.subr.mxu0 %v794
    %840 = vmatpush1.msra.mxu0 %v793
    %841 = vmatprep.subr.mxu0 %v792
    %842 = vmatpush1.msra.mxu0 %v791
    %843 = vmatprep.subr.mxu0 %v790
    %844 = vmatpush1.msra.mxu0 %v789
    %845 = vmatprep.subr.mxu0 %v788
    %846 = vmatpush1.msra.mxu0 %v787
    %847 = vmatprep.subr.mxu0 %v786
    %848 = vmatpush1.msra.mxu0 %v785
    %849 = vmatprep.subr.mxu0 0.0
    %850 = vmatpush2.msra.mxu0 0.0
    %851 = vmatprep.subr.mxu0 0.0
    %852 = vmatpush2.msra.mxu0 0.0
    %853 = vmatprep.subr.mxu0 0.0
    %854 = vmatpush2.msra.mxu0 0.0
    %855 = vmatprep.subr.mxu0 0.0
    %856 = vmatpush2.msra.mxu0 0.0
    %857 = vmatprep.subr.mxu0 0.0
    %858 = vmatpush2.msra.mxu0 0.0
    %859 = vmatprep.subr.mxu0 0.0
    %860 = vmatpush2.msra.mxu0 0.0
    %861 = vmatprep.subr.mxu0 0.0
    %862 = vmatpush2.msra.mxu0 0.0
    %863 = vmatprep.subr.mxu0 0.0
    %864 = vmatpush2.msra.mxu0 0.0
    %865 = vmatprep.subr.mxu0 0.0
    %866 = vmatpush2.msra.mxu0 0.0
    %867 = vmatprep.subr.mxu0 0.0
    %868 = vmatpush2.msra.mxu0 0.0
    %869 = vmatprep.subr.mxu0 0.0
    %870 = vmatpush2.msra.mxu0 0.0
    %871 = vmatprep.subr.mxu0 0.0
    %872 = vmatpush2.msra.mxu0 0.0
    %873 = vmatprep.subr.mxu0 0.0
    %874 = vmatpush2.msra.mxu0 0.0
    %875 = vmatprep.subr.mxu0 0.0
    %876 = vmatpush2.msra.mxu0 0.0
    %877 = vmatprep.subr.mxu0 0.0
    %878 = vmatpush2.msra.mxu0 0.0
    %879 = vmatprep.subr.mxu0 0.0
    %880 = vmatpush2.msra.mxu0 0.0
    %881 = vmatprep.mubr.f32.mxu0 0.0
    %882 = vmatmul.mubr.f32.gmra.mxu0 %v766
    %v883 = vpop.f32.mrf.mxu0
    %v884 = vadd.f32 0.0, %v883
    %v885 = vpop.f32.mrf.mxu0
    %v886 = vadd.f32 0.0, %v885
    %887 = vmatprep.mubr.f32.mxu0 0.0
    %888 = vmatmul.mubr.f32.gmra.mxu0 %v771
    %v889 = vpop.f32.mrf.mxu0
    %v890 = vadd.f32 0.0, %v889
    %v891 = vpop.f32.mrf.mxu0
    %v892 = vadd.f32 0.0, %v891
    %893 = vmatprep.mubr.f32.mxu0 0.0
    %894 = vmatmul.mubr.f32.gmra.mxu0 %v776
    %v895 = vpop.f32.mrf.mxu0
    %v896 = vadd.f32 0.0, %v895
    %v897 = vpop.f32.mrf.mxu0
    %v898 = vadd.f32 0.0, %v897
    %899 = vmatprep.mubr.f32.mxu0 0.0
    %900 = vmatmul.mubr.f32.gmra.mxu0 %v781
    %v901 = vpop.f32.mrf.mxu0
    %v902 = vadd.f32 0.0, %v901
    %v903 = vpop.f32.mrf.mxu0
    %v904 = vadd.f32 0.0, %v903
    %905 = vdwg.mxu0
    %v906 = vadd.f32 %v660, %v884
    %v907 = vadd.f32 %v662, %v886
    %v908 = vadd.f32 %v666, %v890
    %v909 = vadd.f32 %v668, %v892
    %v910 = vadd.f32 %v672, %v896
    %v911 = vadd.f32 %v674, %v898
    %v912 = vadd.f32 %v678, %v902
    %v913 = vadd.f32 %v680, %v904
    %v914 = vld [vmem:[#allocation4] sm:$0x3]
    %v916 = vlaneseq
    %v917 = vshrl.u32 %v916, 7
    %v918 = vsub.s32 0, %v917
    %v919 = vrot.slane %v914, %v918
    %v920 = vlaneseq
    %v921 = vshrl.u32 %v920, 7
    %v922 = vsub.s32 1, %v921
    %v923 = vrot.slane %v914, %v922
    %v926 = vadd.f32 %v906, %v919
    %v927 = vadd.f32 %v907, %v923
    %v928 = vadd.f32 %v908, %v919
    %v929 = vadd.f32 %v909, %v923
    %v930 = vadd.f32 %v910, %v919
    %v931 = vadd.f32 %v911, %v923
    %v932 = vadd.f32 %v912, %v919
    %v933 = vadd.f32 %v913, %v923
    %v934 = vmax.f32 %v926, 0.0
    %v935 = vmax.f32 %v927, 0.0
    %v936 = vmax.f32 %v928, 0.0
    %v937 = vmax.f32 %v929, 0.0
    %v938 = vmax.f32 %v930, 0.0
    %v939 = vmax.f32 %v931, 0.0
    %v940 = vmax.f32 %v932, 0.0
    %v941 = vmax.f32 %v933, 0.0
    %v942 = vld [vmem:[#allocation6] sm:$0xff]
    %v943 = vld [vmem:[#allocation6 + $0x8] sm:$0xff]
    %v945 = vsel %vm239, %v942, 0
    %v948 = vsel %vm239, %v943, 0
    %950 = vmatprep.subr.mxu0 0.0
    %951 = vmatpush1.msra.mxu0 0.0
    %952 = vmatprep.subr.mxu0 0.0
    %953 = vmatpush1.msra.mxu0 0.0
    %954 = vmatprep.subr.mxu0 0.0
    %955 = vmatpush1.msra.mxu0 0.0
    %956 = vmatprep.subr.mxu0 0.0
    %957 = vmatpush1.msra.mxu0 0.0
    %958 = vmatprep.subr.mxu0 0.0
    %959 = vmatpush1.msra.mxu0 0.0
    %960 = vmatprep.subr.mxu0 0.0
    %961 = vmatpush1.msra.mxu0 0.0
    %962 = vmatprep.subr.mxu0 0.0
    %963 = vmatpush1.msra.mxu0 0.0
    %964 = vmatprep.subr.mxu0 0.0
    %965 = vmatpush1.msra.mxu0 0.0
    %966 = vmatprep.subr.mxu0 0.0
    %967 = vmatpush1.msra.mxu0 0.0
    %968 = vmatprep.subr.mxu0 0.0
    %969 = vmatpush1.msra.mxu0 0.0
    %970 = vmatprep.subr.mxu0 0.0
    %971 = vmatpush1.msra.mxu0 0.0
    %972 = vmatprep.subr.mxu0 0.0
    %973 = vmatpush1.msra.mxu0 0.0
    %974 = vmatprep.subr.mxu0 %v941
    %975 = vmatpush1.msra.mxu0 %v940
    %976 = vmatprep.subr.mxu0 %v939
    %977 = vmatpush1.msra.mxu0 %v938
    %978 = vmatprep.subr.mxu0 %v937
    %979 = vmatpush1.msra.mxu0 %v936
    %980 = vmatprep.subr.mxu0 %v935
    %981 = vmatpush1.msra.mxu0 %v934
    %982 = vmatprep.subr.mxu0 0.0
    %983 = vmatpush2.msra.mxu0 0.0
    %984 = vmatprep.subr.mxu0 0.0
    %985 = vmatpush2.msra.mxu0 0.0
    %986 = vmatprep.subr.mxu0 0.0
    %987 = vmatpush2.msra.mxu0 0.0
    %988 = vmatprep.subr.mxu0 0.0
    %989 = vmatpush2.msra.mxu0 0.0
    %990 = vmatprep.subr.mxu0 0.0
    %991 = vmatpush2.msra.mxu0 0.0
    %992 = vmatprep.subr.mxu0 0.0
    %993 = vmatpush2.msra.mxu0 0.0
    %994 = vmatprep.subr.mxu0 0.0
    %995 = vmatpush2.msra.mxu0 0.0
    %996 = vmatprep.subr.mxu0 0.0
    %997 = vmatpush2.msra.mxu0 0.0
    %998 = vmatprep.subr.mxu0 0.0
    %999 = vmatpush2.msra.mxu0 0.0
    %1000 = vmatprep.subr.mxu0 0.0
    %1001 = vmatpush2.msra.mxu0 0.0
    %1002 = vmatprep.subr.mxu0 0.0
    %1003 = vmatpush2.msra.mxu0 0.0
    %1004 = vmatprep.subr.mxu0 0.0
    %1005 = vmatpush2.msra.mxu0 0.0
    %1006 = vmatprep.subr.mxu0 0.0
    %1007 = vmatpush2.msra.mxu0 0.0
    %1008 = vmatprep.subr.mxu0 0.0
    %1009 = vmatpush2.msra.mxu0 0.0
    %1010 = vmatprep.subr.mxu0 0.0
    %1011 = vmatpush2.msra.mxu0 0.0
    %1012 = vmatprep.subr.mxu0 0.0
    %1013 = vmatpush2.msra.mxu0 0.0
    %1014 = vmatprep.mubr.f32.mxu0 0.0
    %1015 = vmatmul.mubr.f32.gmra.mxu0 %v945
    %v1016 = vpop.f32.mrf.mxu0
    %v1017 = vadd.f32 0.0, %v1016
    %v1018 = vpop.f32.mrf.mxu0
    %v1019 = vadd.f32 0.0, %v1018
    %1020 = vmatprep.mubr.f32.mxu0 0.0
    %1021 = vmatmul.mubr.f32.gmra.mxu0 %v948
    %v1022 = vpop.f32.mrf.mxu0
    %v1023 = vadd.f32 0.0, %v1022
    %v1024 = vpop.f32.mrf.mxu0
    %v1025 = vadd.f32 0.0, %v1024
    %1026 = vdwg.mxu0
    %v1027 = vld [vmem:[%s6] sm:$0xff]
    %v1028 = vld [vmem:[%s6 + $0x8] sm:$0xff]
    %v1029 = vld [vmem:[%s6 + $0x10] sm:$0xff]
    %v1030 = vld [vmem:[%s6 + $0x18] sm:$0xff]
    %v1031 = vld [vmem:[%s6 + $0x20] sm:$0xff]
    %v1032 = vld [vmem:[%s6 + $0x28] sm:$0xff]
    %v1033 = vld [vmem:[%s6 + $0x30] sm:$0xff]
    %v1034 = vld [vmem:[%s6 + $0x38] sm:$0xff]
    %v1035 = vld [vmem:[%s6 + $0x40] sm:$0xff]
    %v1036 = vld [vmem:[%s6 + $0x48] sm:$0xff]
    %v1037 = vld [vmem:[%s6 + $0x50] sm:$0xff]
    %v1038 = vld [vmem:[%s6 + $0x58] sm:$0xff]
    %v1039 = vld [vmem:[%s6 + $0x60] sm:$0xff]
    %v1040 = vld [vmem:[%s6 + $0x68] sm:$0xff]
    %v1041 = vld [vmem:[%s6 + $0x70] sm:$0xff]
    %v1042 = vld [vmem:[%s6 + $0x78] sm:$0xff]
    %v1043 = vld [vmem:[%s6 + $0x80] sm:$0xff]
    %v1044 = vld [vmem:[%s6 + $0x88] sm:$0xff]
    %v1045 = vld [vmem:[%s6 + $0x90] sm:$0xff]
    %v1046 = vld [vmem:[%s6 + $0x98] sm:$0xff]
    %v1047 = vld [vmem:[%s6 + $0xa0] sm:$0xff]
    %v1048 = vld [vmem:[%s6 + $0xa8] sm:$0xff]
    %v1049 = vld [vmem:[%s6 + $0xb0] sm:$0xff]
    %v1050 = vld [vmem:[%s6 + $0xb8] sm:$0xff]
    %v1051 = vld [vmem:[%s6 + $0xc0] sm:$0xff]
    %v1052 = vld [vmem:[%s6 + $0xc8] sm:$0xff]
    %v1053 = vld [vmem:[%s6 + $0xd0] sm:$0xff]
    %v1054 = vld [vmem:[%s6 + $0xd8] sm:$0xff]
    %v1055 = vld [vmem:[%s6 + $0xe0] sm:$0xff]
    %v1056 = vld [vmem:[%s6 + $0xe8] sm:$0xff]
    %v1057 = vld [vmem:[%s6 + $0xf0] sm:$0xff]
    %v1058 = vld [vmem:[%s6 + $0xf8] sm:$0xff]
    %v1059 = vld [vmem:[%s6 + $0x100] sm:$0xff]
    %v1060 = vld [vmem:[%s6 + $0x108] sm:$0xff]
    %v1061 = vld [vmem:[%s6 + $0x110] sm:$0xff]
    %v1062 = vld [vmem:[%s6 + $0x118] sm:$0xff]
    %v1063 = vld [vmem:[%s6 + $0x120] sm:$0xff]
    %v1064 = vld [vmem:[%s6 + $0x128] sm:$0xff]
    %v1065 = vld [vmem:[%s6 + $0x130] sm:$0xff]
    %v1066 = vld [vmem:[%s6 + $0x138] sm:$0xff]
    %v1067 = vld [vmem:[%s6 + $0x140] sm:$0xff]
    %v1068 = vld [vmem:[%s6 + $0x148] sm:$0xff]
    %v1069 = vld [vmem:[%s6 + $0x150] sm:$0xff]
    %v1070 = vld [vmem:[%s6 + $0x158] sm:$0xff]
    %v1071 = vld [vmem:[%s6 + $0x160] sm:$0xff]
    %v1072 = vld [vmem:[%s6 + $0x168] sm:$0xff]
    %v1073 = vld [vmem:[%s6 + $0x170] sm:$0xff]
    %v1074 = vld [vmem:[%s6 + $0x178] sm:$0xff]
    %v1075 = vld [vmem:[%s6 + $0x180] sm:$0xff]
    %v1076 = vld [vmem:[%s6 + $0x188] sm:$0xff]
    %v1077 = vld [vmem:[%s6 + $0x190] sm:$0xff]
    %v1078 = vld [vmem:[%s6 + $0x198] sm:$0xff]
    %v1079 = vld [vmem:[%s6 + $0x1a0] sm:$0xff]
    %v1080 = vld [vmem:[%s6 + $0x1a8] sm:$0xff]
    %v1081 = vld [vmem:[%s6 + $0x1b0] sm:$0xff]
    %v1082 = vld [vmem:[%s6 + $0x1b8] sm:$0xff]
    %v1083 = vld [vmem:[%s6 + $0x1c0] sm:$0xff]
    %v1084 = vld [vmem:[%s6 + $0x1c8] sm:$0xff]
    %v1085 = vld [vmem:[%s6 + $0x1d0] sm:$0xff]
    %v1086 = vld [vmem:[%s6 + $0x1d8] sm:$0xff]
    %v1087 = vld [vmem:[%s6 + $0x1e0] sm:$0xff]
    %v1088 = vld [vmem:[%s6 + $0x1e8] sm:$0xff]
    %v1089 = vld [vmem:[%s6 + $0x1f0] sm:$0xff]
    %v1090 = vld [vmem:[%s6 + $0x1f8] sm:$0xff]
    %s1091 = scalar_lea.vmem [#allocation6], 16
    %v1092 = vld [vmem:[%s1091] sm:$0xff]
    %v1093 = vld [vmem:[%s1091 + $0x8] sm:$0xff]
    %v1095 = vsel %vm239, %v1092, 0
    %v1098 = vsel %vm239, %v1093, 0
    %1100 = vmatprep.subr.mxu0 0.0
    %1101 = vmatpush1.msra.mxu0 0.0
    %1102 = vmatprep.subr.mxu0 0.0
    %1103 = vmatpush1.msra.mxu0 0.0
    %1104 = vmatprep.subr.mxu0 0.0
    %1105 = vmatpush1.msra.mxu0 0.0
    %1106 = vmatprep.subr.mxu0 0.0
    %1107 = vmatpush1.msra.mxu0 0.0
    %1108 = vmatprep.subr.mxu0 0.0
    %1109 = vmatpush1.msra.mxu0 0.0
    %1110 = vmatprep.subr.mxu0 0.0
    %1111 = vmatpush1.msra.mxu0 0.0
    %1112 = vmatprep.subr.mxu0 0.0
    %1113 = vmatpush1.msra.mxu0 0.0
    %1114 = vmatprep.subr.mxu0 0.0
    %1115 = vmatpush1.msra.mxu0 0.0
    %1116 = vmatprep.subr.mxu0 0.0
    %1117 = vmatpush1.msra.mxu0 0.0
    %1118 = vmatprep.subr.mxu0 0.0
    %1119 = vmatpush1.msra.mxu0 0.0
    %1120 = vmatprep.subr.mxu0 0.0
    %1121 = vmatpush1.msra.mxu0 0.0
    %1122 = vmatprep.subr.mxu0 0.0
    %1123 = vmatpush1.msra.mxu0 0.0
    %1124 = vmatprep.subr.mxu0 %v941
    %1125 = vmatpush1.msra.mxu0 %v940
    %1126 = vmatprep.subr.mxu0 %v939
    %1127 = vmatpush1.msra.mxu0 %v938
    %1128 = vmatprep.subr.mxu0 %v937
    %1129 = vmatpush1.msra.mxu0 %v936
    %1130 = vmatprep.subr.mxu0 %v935
    %1131 = vmatpush1.msra.mxu0 %v934
    %1132 = vmatprep.subr.mxu0 0.0
    %1133 = vmatpush2.msra.mxu0 0.0
    %1134 = vmatprep.subr.mxu0 0.0
    %1135 = vmatpush2.msra.mxu0 0.0
    %1136 = vmatprep.subr.mxu0 0.0
    %1137 = vmatpush2.msra.mxu0 0.0
    %1138 = vmatprep.subr.mxu0 0.0
    %1139 = vmatpush2.msra.mxu0 0.0
    %1140 = vmatprep.subr.mxu0 0.0
    %1141 = vmatpush2.msra.mxu0 0.0
    %1142 = vmatprep.subr.mxu0 0.0
    %1143 = vmatpush2.msra.mxu0 0.0
    %1144 = vmatprep.subr.mxu0 0.0
    %1145 = vmatpush2.msra.mxu0 0.0
    %1146 = vmatprep.subr.mxu0 0.0
    %1147 = vmatpush2.msra.mxu0 0.0
    %1148 = vmatprep.subr.mxu0 0.0
    %1149 = vmatpush2.msra.mxu0 0.0
    %1150 = vmatprep.subr.mxu0 0.0
    %1151 = vmatpush2.msra.mxu0 0.0
    %1152 = vmatprep.subr.mxu0 0.0
    %1153 = vmatpush2.msra.mxu0 0.0
    %1154 = vmatprep.subr.mxu0 0.0
    %1155 = vmatpush2.msra.mxu0 0.0
    %1156 = vmatprep.subr.mxu0 0.0
    %1157 = vmatpush2.msra.mxu0 0.0
    %1158 = vmatprep.subr.mxu0 0.0
    %1159 = vmatpush2.msra.mxu0 0.0
    %1160 = vmatprep.subr.mxu0 0.0
    %1161 = vmatpush2.msra.mxu0 0.0
    %1162 = vmatprep.subr.mxu0 0.0
    %1163 = vmatpush2.msra.mxu0 0.0
    %1164 = vmatprep.mubr.f32.mxu0 0.0
    %1165 = vmatmul.mubr.f32.gmra.mxu0 %v1095
    %v1166 = vpop.f32.mrf.mxu0
    %v1167 = vadd.f32 0.0, %v1166
    %v1168 = vpop.f32.mrf.mxu0
    %v1169 = vadd.f32 0.0, %v1168
    %1170 = vmatprep.mubr.f32.mxu0 0.0
    %1171 = vmatmul.mubr.f32.gmra.mxu0 %v1098
    %v1172 = vpop.f32.mrf.mxu0
    %v1173 = vadd.f32 0.0, %v1172
    %v1174 = vpop.f32.mrf.mxu0
    %v1175 = vadd.f32 0.0, %v1174
    %1176 = vdwg.mxu0
    %s1177 = scalar_lea.vmem %s6, 512
    %v1178 = vld [vmem:[%s1177] sm:$0xff]
    %v1179 = vld [vmem:[%s1177 + $0x8] sm:$0xff]
    %v1180 = vld [vmem:[%s1177 + $0x10] sm:$0xff]
    %v1181 = vld [vmem:[%s1177 + $0x18] sm:$0xff]
    %v1182 = vld [vmem:[%s1177 + $0x20] sm:$0xff]
    %v1183 = vld [vmem:[%s1177 + $0x28] sm:$0xff]
    %v1184 = vld [vmem:[%s1177 + $0x30] sm:$0xff]
    %v1185 = vld [vmem:[%s1177 + $0x38] sm:$0xff]
    %v1186 = vld [vmem:[%s1177 + $0x40] sm:$0xff]
    %v1187 = vld [vmem:[%s1177 + $0x48] sm:$0xff]
    %v1188 = vld [vmem:[%s1177 + $0x50] sm:$0xff]
    %v1189 = vld [vmem:[%s1177 + $0x58] sm:$0xff]
    %v1190 = vld [vmem:[%s1177 + $0x60] sm:$0xff]
    %v1191 = vld [vmem:[%s1177 + $0x68] sm:$0xff]
    %v1192 = vld [vmem:[%s1177 + $0x70] sm:$0xff]
    %v1193 = vld [vmem:[%s1177 + $0x78] sm:$0xff]
    %v1194 = vld [vmem:[%s1177 + $0x80] sm:$0xff]
    %v1195 = vld [vmem:[%s1177 + $0x88] sm:$0xff]
    %v1196 = vld [vmem:[%s1177 + $0x90] sm:$0xff]
    %v1197 = vld [vmem:[%s1177 + $0x98] sm:$0xff]
    %v1198 = vld [vmem:[%s1177 + $0xa0] sm:$0xff]
    %v1199 = vld [vmem:[%s1177 + $0xa8] sm:$0xff]
    %v1200 = vld [vmem:[%s1177 + $0xb0] sm:$0xff]
    %v1201 = vld [vmem:[%s1177 + $0xb8] sm:$0xff]
    %v1202 = vld [vmem:[%s1177 + $0xc0] sm:$0xff]
    %v1203 = vld [vmem:[%s1177 + $0xc8] sm:$0xff]
    %v1204 = vld [vmem:[%s1177 + $0xd0] sm:$0xff]
    %v1205 = vld [vmem:[%s1177 + $0xd8] sm:$0xff]
    %v1206 = vld [vmem:[%s1177 + $0xe0] sm:$0xff]
    %v1207 = vld [vmem:[%s1177 + $0xe8] sm:$0xff]
    %v1208 = vld [vmem:[%s1177 + $0xf0] sm:$0xff]
    %v1209 = vld [vmem:[%s1177 + $0xf8] sm:$0xff]
    %v1210 = vld [vmem:[%s1177 + $0x100] sm:$0xff]
    %v1211 = vld [vmem:[%s1177 + $0x108] sm:$0xff]
    %v1212 = vld [vmem:[%s1177 + $0x110] sm:$0xff]
    %v1213 = vld [vmem:[%s1177 + $0x118] sm:$0xff]
    %v1214 = vld [vmem:[%s1177 + $0x120] sm:$0xff]
    %v1215 = vld [vmem:[%s1177 + $0x128] sm:$0xff]
    %v1216 = vld [vmem:[%s1177 + $0x130] sm:$0xff]
    %v1217 = vld [vmem:[%s1177 + $0x138] sm:$0xff]
    %v1218 = vld [vmem:[%s1177 + $0x140] sm:$0xff]
    %v1219 = vld [vmem:[%s1177 + $0x148] sm:$0xff]
    %v1220 = vld [vmem:[%s1177 + $0x150] sm:$0xff]
    %v1221 = vld [vmem:[%s1177 + $0x158] sm:$0xff]
    %v1222 = vld [vmem:[%s1177 + $0x160] sm:$0xff]
    %v1223 = vld [vmem:[%s1177 + $0x168] sm:$0xff]
    %v1224 = vld [vmem:[%s1177 + $0x170] sm:$0xff]
    %v1225 = vld [vmem:[%s1177 + $0x178] sm:$0xff]
    %v1226 = vld [vmem:[%s1177 + $0x180] sm:$0xff]
    %v1227 = vld [vmem:[%s1177 + $0x188] sm:$0xff]
    %v1228 = vld [vmem:[%s1177 + $0x190] sm:$0xff]
    %v1229 = vld [vmem:[%s1177 + $0x198] sm:$0xff]
    %v1230 = vld [vmem:[%s1177 + $0x1a0] sm:$0xff]
    %v1231 = vld [vmem:[%s1177 + $0x1a8] sm:$0xff]
    %v1232 = vld [vmem:[%s1177 + $0x1b0] sm:$0xff]
    %v1233 = vld [vmem:[%s1177 + $0x1b8] sm:$0xff]
    %v1234 = vld [vmem:[%s1177 + $0x1c0] sm:$0xff]
    %v1235 = vld [vmem:[%s1177 + $0x1c8] sm:$0xff]
    %v1236 = vld [vmem:[%s1177 + $0x1d0] sm:$0xff]
    %v1237 = vld [vmem:[%s1177 + $0x1d8] sm:$0xff]
    %v1238 = vld [vmem:[%s1177 + $0x1e0] sm:$0xff]
    %v1239 = vld [vmem:[%s1177 + $0x1e8] sm:$0xff]
    %v1240 = vld [vmem:[%s1177 + $0x1f0] sm:$0xff]
    %v1241 = vld [vmem:[%s1177 + $0x1f8] sm:$0xff]
    %1242 = vmatprep.subr.mxu0 %v1209
    %1243 = vmatpush1.msra.mxu0 %v1208
    %1244 = vmatprep.subr.mxu0 %v1207
    %1245 = vmatpush1.msra.mxu0 %v1206
    %1246 = vmatprep.subr.mxu0 %v1205
    %1247 = vmatpush1.msra.mxu0 %v1204
    %1248 = vmatprep.subr.mxu0 %v1203
    %1249 = vmatpush1.msra.mxu0 %v1202
    %1250 = vmatprep.subr.mxu0 %v1201
    %1251 = vmatpush1.msra.mxu0 %v1200
    %1252 = vmatprep.subr.mxu0 %v1199
    %1253 = vmatpush1.msra.mxu0 %v1198
    %1254 = vmatprep.subr.mxu0 %v1197
    %1255 = vmatpush1.msra.mxu0 %v1196
    %1256 = vmatprep.subr.mxu0 %v1195
    %1257 = vmatpush1.msra.mxu0 %v1194
    %1258 = vmatprep.subr.mxu0 %v1193
    %1259 = vmatpush1.msra.mxu0 %v1192
    %1260 = vmatprep.subr.mxu0 %v1191
    %1261 = vmatpush1.msra.mxu0 %v1190
    %1262 = vmatprep.subr.mxu0 %v1189
    %1263 = vmatpush1.msra.mxu0 %v1188
    %1264 = vmatprep.subr.mxu0 %v1187
    %1265 = vmatpush1.msra.mxu0 %v1186
    %1266 = vmatprep.subr.mxu0 %v1185
    %1267 = vmatpush1.msra.mxu0 %v1184
    %1268 = vmatprep.subr.mxu0 %v1183
    %1269 = vmatpush1.msra.mxu0 %v1182
    %1270 = vmatprep.subr.mxu0 %v1181
    %1271 = vmatpush1.msra.mxu0 %v1180
    %1272 = vmatprep.subr.mxu0 %v1179
    %1273 = vmatpush1.msra.mxu0 %v1178
    %1274 = vmatprep.subr.mxu0 %v1241
    %1275 = vmatpush2.msra.mxu0 %v1240
    %1276 = vmatprep.subr.mxu0 %v1239
    %1277 = vmatpush2.msra.mxu0 %v1238
    %1278 = vmatprep.subr.mxu0 %v1237
    %1279 = vmatpush2.msra.mxu0 %v1236
    %1280 = vmatprep.subr.mxu0 %v1235
    %1281 = vmatpush2.msra.mxu0 %v1234
    %1282 = vmatprep.subr.mxu0 %v1233
    %1283 = vmatpush2.msra.mxu0 %v1232
    %1284 = vmatprep.subr.mxu0 %v1231
    %1285 = vmatpush2.msra.mxu0 %v1230
    %1286 = vmatprep.subr.mxu0 %v1229
    %1287 = vmatpush2.msra.mxu0 %v1228
    %1288 = vmatprep.subr.mxu0 %v1227
    %1289 = vmatpush2.msra.mxu0 %v1226
    %1290 = vmatprep.subr.mxu0 %v1225
    %1291 = vmatpush2.msra.mxu0 %v1224
    %1292 = vmatprep.subr.mxu0 %v1223
    %1293 = vmatpush2.msra.mxu0 %v1222
    %1294 = vmatprep.subr.mxu0 %v1221
    %1295 = vmatpush2.msra.mxu0 %v1220
    %1296 = vmatprep.subr.mxu0 %v1219
    %1297 = vmatpush2.msra.mxu0 %v1218
    %1298 = vmatprep.subr.mxu0 %v1217
    %1299 = vmatpush2.msra.mxu0 %v1216
    %1300 = vmatprep.subr.mxu0 %v1215
    %1301 = vmatpush2.msra.mxu0 %v1214
    %1302 = vmatprep.subr.mxu0 %v1213
    %1303 = vmatpush2.msra.mxu0 %v1212
    %1304 = vmatprep.subr.mxu0 %v1211
    %1305 = vmatpush2.msra.mxu0 %v1210
    %1306 = vmatprep.mubr.f32.mxu0 %v1169
    %1307 = vmatmul.mubr.f32.gmra.mxu0 %v1167
    %v1308 = vpop.f32.mrf.mxu0
    %v1309 = vadd.f32 0.0, %v1308
    %v1310 = vpop.f32.mrf.mxu0
    %v1311 = vadd.f32 0.0, %v1310
    %1312 = vmatprep.mubr.f32.mxu0 %v1175
    %1313 = vmatmul.mubr.f32.gmra.mxu0 %v1173
    %v1314 = vpop.f32.mrf.mxu0
    %v1315 = vadd.f32 0.0, %v1314
    %v1316 = vpop.f32.mrf.mxu0
    %v1317 = vadd.f32 0.0, %v1316
    %1318 = vdwg.mxu0
    %1319 = vmatprep.subr.mxu0 %v1058
    %1320 = vmatpush1.msra.mxu0 %v1057
    %1321 = vmatprep.subr.mxu0 %v1056
    %1322 = vmatpush1.msra.mxu0 %v1055
    %1323 = vmatprep.subr.mxu0 %v1054
    %1324 = vmatpush1.msra.mxu0 %v1053
    %1325 = vmatprep.subr.mxu0 %v1052
    %1326 = vmatpush1.msra.mxu0 %v1051
    %1327 = vmatprep.subr.mxu0 %v1050
    %1328 = vmatpush1.msra.mxu0 %v1049
    %1329 = vmatprep.subr.mxu0 %v1048
    %1330 = vmatpush1.msra.mxu0 %v1047
    %1331 = vmatprep.subr.mxu0 %v1046
    %1332 = vmatpush1.msra.mxu0 %v1045
    %1333 = vmatprep.subr.mxu0 %v1044
    %1334 = vmatpush1.msra.mxu0 %v1043
    %1335 = vmatprep.subr.mxu0 %v1042
    %1336 = vmatpush1.msra.mxu0 %v1041
    %1337 = vmatprep.subr.mxu0 %v1040
    %1338 = vmatpush1.msra.mxu0 %v1039
    %1339 = vmatprep.subr.mxu0 %v1038
    %1340 = vmatpush1.msra.mxu0 %v1037
    %1341 = vmatprep.subr.mxu0 %v1036
    %1342 = vmatpush1.msra.mxu0 %v1035
    %1343 = vmatprep.subr.mxu0 %v1034
    %1344 = vmatpush1.msra.mxu0 %v1033
    %1345 = vmatprep.subr.mxu0 %v1032
    %1346 = vmatpush1.msra.mxu0 %v1031
    %1347 = vmatprep.subr.mxu0 %v1030
    %1348 = vmatpush1.msra.mxu0 %v1029
    %1349 = vmatprep.subr.mxu0 %v1028
    %1350 = vmatpush1.msra.mxu0 %v1027
    %1351 = vmatprep.subr.mxu0 %v1090
    %1352 = vmatpush2.msra.mxu0 %v1089
    %1353 = vmatprep.subr.mxu0 %v1088
    %1354 = vmatpush2.msra.mxu0 %v1087
    %1355 = vmatprep.subr.mxu0 %v1086
    %1356 = vmatpush2.msra.mxu0 %v1085
    %1357 = vmatprep.subr.mxu0 %v1084
    %1358 = vmatpush2.msra.mxu0 %v1083
    %1359 = vmatprep.subr.mxu0 %v1082
    %1360 = vmatpush2.msra.mxu0 %v1081
    %1361 = vmatprep.subr.mxu0 %v1080
    %1362 = vmatpush2.msra.mxu0 %v1079
    %1363 = vmatprep.subr.mxu0 %v1078
    %1364 = vmatpush2.msra.mxu0 %v1077
    %1365 = vmatprep.subr.mxu0 %v1076
    %1366 = vmatpush2.msra.mxu0 %v1075
    %1367 = vmatprep.subr.mxu0 %v1074
    %1368 = vmatpush2.msra.mxu0 %v1073
    %1369 = vmatprep.subr.mxu0 %v1072
    %1370 = vmatpush2.msra.mxu0 %v1071
    %1371 = vmatprep.subr.mxu0 %v1070
    %1372 = vmatpush2.msra.mxu0 %v1069
    %1373 = vmatprep.subr.mxu0 %v1068
    %1374 = vmatpush2.msra.mxu0 %v1067
    %1375 = vmatprep.subr.mxu0 %v1066
    %1376 = vmatpush2.msra.mxu0 %v1065
    %1377 = vmatprep.subr.mxu0 %v1064
    %1378 = vmatpush2.msra.mxu0 %v1063
    %1379 = vmatprep.subr.mxu0 %v1062
    %1380 = vmatpush2.msra.mxu0 %v1061
    %1381 = vmatprep.subr.mxu0 %v1060
    %1382 = vmatpush2.msra.mxu0 %v1059
    %1383 = vmatprep.mubr.f32.mxu0 %v1019
    %1384 = vmatmul.mubr.f32.gmra.mxu0 %v1017
    %v1385 = vpop.f32.mrf.mxu0
    %v1386 = vadd.f32 %v1309, %v1385
    %v1387 = vpop.f32.mrf.mxu0
    %v1388 = vadd.f32 %v1311, %v1387
    %1389 = vmatprep.mubr.f32.mxu0 %v1025
    %1390 = vmatmul.mubr.f32.gmra.mxu0 %v1023
    %v1391 = vpop.f32.mrf.mxu0
    %v1392 = vadd.f32 %v1315, %v1391
    %v1393 = vpop.f32.mrf.mxu0
    %v1394 = vadd.f32 %v1317, %v1393
    %1395 = vdwg.mxu0
    %s1396 = scalar_lea.vmem [#allocation6], 32
    %v1397 = vld [vmem:[%s1396] sm:$0xff]
    %v1398 = vld [vmem:[%s1396 + $0x8] sm:$0xff]
    %v1400 = vsel %vm239, %v1397, 0
    %v1403 = vsel %vm239, %v1398, 0
    %1405 = vmatprep.subr.mxu0 0.0
    %1406 = vmatpush1.msra.mxu0 0.0
    %1407 = vmatprep.subr.mxu0 0.0
    %1408 = vmatpush1.msra.mxu0 0.0
    %1409 = vmatprep.subr.mxu0 0.0
    %1410 = vmatpush1.msra.mxu0 0.0
    %1411 = vmatprep.subr.mxu0 0.0
    %1412 = vmatpush1.msra.mxu0 0.0
    %1413 = vmatprep.subr.mxu0 0.0
    %1414 = vmatpush1.msra.mxu0 0.0
    %1415 = vmatprep.subr.mxu0 0.0
    %1416 = vmatpush1.msra.mxu0 0.0
    %1417 = vmatprep.subr.mxu0 0.0
    %1418 = vmatpush1.msra.mxu0 0.0
    %1419 = vmatprep.subr.mxu0 0.0
    %1420 = vmatpush1.msra.mxu0 0.0
    %1421 = vmatprep.subr.mxu0 0.0
    %1422 = vmatpush1.msra.mxu0 0.0
    %1423 = vmatprep.subr.mxu0 0.0
    %1424 = vmatpush1.msra.mxu0 0.0
    %1425 = vmatprep.subr.mxu0 0.0
    %1426 = vmatpush1.msra.mxu0 0.0
    %1427 = vmatprep.subr.mxu0 0.0
    %1428 = vmatpush1.msra.mxu0 0.0
    %1429 = vmatprep.subr.mxu0 %v941
    %1430 = vmatpush1.msra.mxu0 %v940
    %1431 = vmatprep.subr.mxu0 %v939
    %1432 = vmatpush1.msra.mxu0 %v938
    %1433 = vmatprep.subr.mxu0 %v937
    %1434 = vmatpush1.msra.mxu0 %v936
    %1435 = vmatprep.subr.mxu0 %v935
    %1436 = vmatpush1.msra.mxu0 %v934
    %1437 = vmatprep.subr.mxu0 0.0
    %1438 = vmatpush2.msra.mxu0 0.0
    %1439 = vmatprep.subr.mxu0 0.0
    %1440 = vmatpush2.msra.mxu0 0.0
    %1441 = vmatprep.subr.mxu0 0.0
    %1442 = vmatpush2.msra.mxu0 0.0
    %1443 = vmatprep.subr.mxu0 0.0
    %1444 = vmatpush2.msra.mxu0 0.0
    %1445 = vmatprep.subr.mxu0 0.0
    %1446 = vmatpush2.msra.mxu0 0.0
    %1447 = vmatprep.subr.mxu0 0.0
    %1448 = vmatpush2.msra.mxu0 0.0
    %1449 = vmatprep.subr.mxu0 0.0
    %1450 = vmatpush2.msra.mxu0 0.0
    %1451 = vmatprep.subr.mxu0 0.0
    %1452 = vmatpush2.msra.mxu0 0.0
    %1453 = vmatprep.subr.mxu0 0.0
    %1454 = vmatpush2.msra.mxu0 0.0
    %1455 = vmatprep.subr.mxu0 0.0
    %1456 = vmatpush2.msra.mxu0 0.0
    %1457 = vmatprep.subr.mxu0 0.0
    %1458 = vmatpush2.msra.mxu0 0.0
    %1459 = vmatprep.subr.mxu0 0.0
    %1460 = vmatpush2.msra.mxu0 0.0
    %1461 = vmatprep.subr.mxu0 0.0
    %1462 = vmatpush2.msra.mxu0 0.0
    %1463 = vmatprep.subr.mxu0 0.0
    %1464 = vmatpush2.msra.mxu0 0.0
    %1465 = vmatprep.subr.mxu0 0.0
    %1466 = vmatpush2.msra.mxu0 0.0
    %1467 = vmatprep.subr.mxu0 0.0
    %1468 = vmatpush2.msra.mxu0 0.0
    %1469 = vmatprep.mubr.f32.mxu0 0.0
    %1470 = vmatmul.mubr.f32.gmra.mxu0 %v1400
    %v1471 = vpop.f32.mrf.mxu0
    %v1472 = vadd.f32 0.0, %v1471
    %v1473 = vpop.f32.mrf.mxu0
    %v1474 = vadd.f32 0.0, %v1473
    %1475 = vmatprep.mubr.f32.mxu0 0.0
    %1476 = vmatmul.mubr.f32.gmra.mxu0 %v1403
    %v1477 = vpop.f32.mrf.mxu0
    %v1478 = vadd.f32 0.0, %v1477
    %v1479 = vpop.f32.mrf.mxu0
    %v1480 = vadd.f32 0.0, %v1479
    %1481 = vdwg.mxu0
    %s1482 = scalar_lea.vmem %s6, 1024
    %v1483 = vld [vmem:[%s1482] sm:$0xff]
    %v1484 = vld [vmem:[%s1482 + $0x8] sm:$0xff]
    %v1485 = vld [vmem:[%s1482 + $0x10] sm:$0xff]
    %v1486 = vld [vmem:[%s1482 + $0x18] sm:$0xff]
    %v1487 = vld [vmem:[%s1482 + $0x20] sm:$0xff]
    %v1488 = vld [vmem:[%s1482 + $0x28] sm:$0xff]
    %v1489 = vld [vmem:[%s1482 + $0x30] sm:$0xff]
    %v1490 = vld [vmem:[%s1482 + $0x38] sm:$0xff]
    %v1491 = vld [vmem:[%s1482 + $0x40] sm:$0xff]
    %v1492 = vld [vmem:[%s1482 + $0x48] sm:$0xff]
    %v1493 = vld [vmem:[%s1482 + $0x50] sm:$0xff]
    %v1494 = vld [vmem:[%s1482 + $0x58] sm:$0xff]
    %v1495 = vld [vmem:[%s1482 + $0x60] sm:$0xff]
    %v1496 = vld [vmem:[%s1482 + $0x68] sm:$0xff]
    %v1497 = vld [vmem:[%s1482 + $0x70] sm:$0xff]
    %v1498 = vld [vmem:[%s1482 + $0x78] sm:$0xff]
    %v1499 = vld [vmem:[%s1482 + $0x80] sm:$0xff]
    %v1500 = vld [vmem:[%s1482 + $0x88] sm:$0xff]
    %v1501 = vld [vmem:[%s1482 + $0x90] sm:$0xff]
    %v1502 = vld [vmem:[%s1482 + $0x98] sm:$0xff]
    %v1503 = vld [vmem:[%s1482 + $0xa0] sm:$0xff]
    %v1504 = vld [vmem:[%s1482 + $0xa8] sm:$0xff]
    %v1505 = vld [vmem:[%s1482 + $0xb0] sm:$0xff]
    %v1506 = vld [vmem:[%s1482 + $0xb8] sm:$0xff]
    %v1507 = vld [vmem:[%s1482 + $0xc0] sm:$0xff]
    %v1508 = vld [vmem:[%s1482 + $0xc8] sm:$0xff]
    %v1509 = vld [vmem:[%s1482 + $0xd0] sm:$0xff]
    %v1510 = vld [vmem:[%s1482 + $0xd8] sm:$0xff]
    %v1511 = vld [vmem:[%s1482 + $0xe0] sm:$0xff]
    %v1512 = vld [vmem:[%s1482 + $0xe8] sm:$0xff]
    %v1513 = vld [vmem:[%s1482 + $0xf0] sm:$0xff]
    %v1514 = vld [vmem:[%s1482 + $0xf8] sm:$0xff]
    %v1515 = vld [vmem:[%s1482 + $0x100] sm:$0xff]
    %v1516 = vld [vmem:[%s1482 + $0x108] sm:$0xff]
    %v1517 = vld [vmem:[%s1482 + $0x110] sm:$0xff]
    %v1518 = vld [vmem:[%s1482 + $0x118] sm:$0xff]
    %v1519 = vld [vmem:[%s1482 + $0x120] sm:$0xff]
    %v1520 = vld [vmem:[%s1482 + $0x128] sm:$0xff]
    %v1521 = vld [vmem:[%s1482 + $0x130] sm:$0xff]
    %v1522 = vld [vmem:[%s1482 + $0x138] sm:$0xff]
    %v1523 = vld [vmem:[%s1482 + $0x140] sm:$0xff]
    %v1524 = vld [vmem:[%s1482 + $0x148] sm:$0xff]
    %v1525 = vld [vmem:[%s1482 + $0x150] sm:$0xff]
    %v1526 = vld [vmem:[%s1482 + $0x158] sm:$0xff]
    %v1527 = vld [vmem:[%s1482 + $0x160] sm:$0xff]
    %v1528 = vld [vmem:[%s1482 + $0x168] sm:$0xff]
    %v1529 = vld [vmem:[%s1482 + $0x170] sm:$0xff]
    %v1530 = vld [vmem:[%s1482 + $0x178] sm:$0xff]
    %v1531 = vld [vmem:[%s1482 + $0x180] sm:$0xff]
    %v1532 = vld [vmem:[%s1482 + $0x188] sm:$0xff]
    %v1533 = vld [vmem:[%s1482 + $0x190] sm:$0xff]
    %v1534 = vld [vmem:[%s1482 + $0x198] sm:$0xff]
    %v1535 = vld [vmem:[%s1482 + $0x1a0] sm:$0xff]
    %v1536 = vld [vmem:[%s1482 + $0x1a8] sm:$0xff]
    %v1537 = vld [vmem:[%s1482 + $0x1b0] sm:$0xff]
    %v1538 = vld [vmem:[%s1482 + $0x1b8] sm:$0xff]
    %v1539 = vld [vmem:[%s1482 + $0x1c0] sm:$0xff]
    %v1540 = vld [vmem:[%s1482 + $0x1c8] sm:$0xff]
    %v1541 = vld [vmem:[%s1482 + $0x1d0] sm:$0xff]
    %v1542 = vld [vmem:[%s1482 + $0x1d8] sm:$0xff]
    %v1543 = vld [vmem:[%s1482 + $0x1e0] sm:$0xff]
    %v1544 = vld [vmem:[%s1482 + $0x1e8] sm:$0xff]
    %v1545 = vld [vmem:[%s1482 + $0x1f0] sm:$0xff]
    %v1546 = vld [vmem:[%s1482 + $0x1f8] sm:$0xff]
    %1547 = vmatprep.subr.mxu0 %v1514
    %1548 = vmatpush1.msra.mxu0 %v1513
    %1549 = vmatprep.subr.mxu0 %v1512
    %1550 = vmatpush1.msra.mxu0 %v1511
    %1551 = vmatprep.subr.mxu0 %v1510
    %1552 = vmatpush1.msra.mxu0 %v1509
    %1553 = vmatprep.subr.mxu0 %v1508
    %1554 = vmatpush1.msra.mxu0 %v1507
    %1555 = vmatprep.subr.mxu0 %v1506
    %1556 = vmatpush1.msra.mxu0 %v1505
    %1557 = vmatprep.subr.mxu0 %v1504
    %1558 = vmatpush1.msra.mxu0 %v1503
    %1559 = vmatprep.subr.mxu0 %v1502
    %1560 = vmatpush1.msra.mxu0 %v1501
    %1561 = vmatprep.subr.mxu0 %v1500
    %1562 = vmatpush1.msra.mxu0 %v1499
    %1563 = vmatprep.subr.mxu0 %v1498
    %1564 = vmatpush1.msra.mxu0 %v1497
    %1565 = vmatprep.subr.mxu0 %v1496
    %1566 = vmatpush1.msra.mxu0 %v1495
    %1567 = vmatprep.subr.mxu0 %v1494
    %1568 = vmatpush1.msra.mxu0 %v1493
    %1569 = vmatprep.subr.mxu0 %v1492
    %1570 = vmatpush1.msra.mxu0 %v1491
    %1571 = vmatprep.subr.mxu0 %v1490
    %1572 = vmatpush1.msra.mxu0 %v1489
    %1573 = vmatprep.subr.mxu0 %v1488
    %1574 = vmatpush1.msra.mxu0 %v1487
    %1575 = vmatprep.subr.mxu0 %v1486
    %1576 = vmatpush1.msra.mxu0 %v1485
    %1577 = vmatprep.subr.mxu0 %v1484
    %1578 = vmatpush1.msra.mxu0 %v1483
    %1579 = vmatprep.subr.mxu0 %v1546
    %1580 = vmatpush2.msra.mxu0 %v1545
    %1581 = vmatprep.subr.mxu0 %v1544
    %1582 = vmatpush2.msra.mxu0 %v1543
    %1583 = vmatprep.subr.mxu0 %v1542
    %1584 = vmatpush2.msra.mxu0 %v1541
    %1585 = vmatprep.subr.mxu0 %v1540
    %1586 = vmatpush2.msra.mxu0 %v1539
    %1587 = vmatprep.subr.mxu0 %v1538
    %1588 = vmatpush2.msra.mxu0 %v1537
    %1589 = vmatprep.subr.mxu0 %v1536
    %1590 = vmatpush2.msra.mxu0 %v1535
    %1591 = vmatprep.subr.mxu0 %v1534
    %1592 = vmatpush2.msra.mxu0 %v1533
    %1593 = vmatprep.subr.mxu0 %v1532
    %1594 = vmatpush2.msra.mxu0 %v1531
    %1595 = vmatprep.subr.mxu0 %v1530
    %1596 = vmatpush2.msra.mxu0 %v1529
    %1597 = vmatprep.subr.mxu0 %v1528
    %1598 = vmatpush2.msra.mxu0 %v1527
    %1599 = vmatprep.subr.mxu0 %v1526
    %1600 = vmatpush2.msra.mxu0 %v1525
    %1601 = vmatprep.subr.mxu0 %v1524
    %1602 = vmatpush2.msra.mxu0 %v1523
    %1603 = vmatprep.subr.mxu0 %v1522
    %1604 = vmatpush2.msra.mxu0 %v1521
    %1605 = vmatprep.subr.mxu0 %v1520
    %1606 = vmatpush2.msra.mxu0 %v1519
    %1607 = vmatprep.subr.mxu0 %v1518
    %1608 = vmatpush2.msra.mxu0 %v1517
    %1609 = vmatprep.subr.mxu0 %v1516
    %1610 = vmatpush2.msra.mxu0 %v1515
    %1611 = vmatprep.mubr.f32.mxu0 %v1474
    %1612 = vmatmul.mubr.f32.gmra.mxu0 %v1472
    %v1613 = vpop.f32.mrf.mxu0
    %v1614 = vadd.f32 0.0, %v1613
    %v1615 = vpop.f32.mrf.mxu0
    %v1616 = vadd.f32 0.0, %v1615
    %1617 = vmatprep.mubr.f32.mxu0 %v1480
    %1618 = vmatmul.mubr.f32.gmra.mxu0 %v1478
    %v1619 = vpop.f32.mrf.mxu0
    %v1620 = vadd.f32 0.0, %v1619
    %v1621 = vpop.f32.mrf.mxu0
    %v1622 = vadd.f32 0.0, %v1621
    %1623 = vdwg.mxu0
    %v1624 = vadd.f32 %v1386, %v1614
    %v1625 = vadd.f32 %v1388, %v1616
    %v1626 = vadd.f32 %v1392, %v1620
    %v1627 = vadd.f32 %v1394, %v1622
    %v1628 = vld [vmem:[#allocation7] sm:$0x3]
    %v1630 = vlaneseq
    %v1631 = vshrl.u32 %v1630, 7
    %v1632 = vsub.s32 0, %v1631
    %v1633 = vrot.slane %v1628, %v1632
    %v1634 = vlaneseq
    %v1635 = vshrl.u32 %v1634, 7
    %v1636 = vsub.s32 1, %v1635
    %v1637 = vrot.slane %v1628, %v1636
    %v1640 = vadd.f32 %v1624, %v1633
    %v1641 = vadd.f32 %v1625, %v1637
    %v1642 = vadd.f32 %v1626, %v1633
    %v1643 = vadd.f32 %v1627, %v1637
    %v1644 = vmax.f32 %v1640, 0.0
    %v1645 = vmax.f32 %v1641, 0.0
    %v1646 = vmax.f32 %v1642, 0.0
    %v1647 = vmax.f32 %v1643, 0.0
    %v1648 = vld [vmem:[#allocation9] sm:$0xff]
    %vm1649 = vcmask 130048
    %v1651 = vsel %vm1649, %v1648, 0
    %1653 = vmatprep.subr.mxu0 0.0
    %1654 = vmatpush1.msra.mxu0 0.0
    %1655 = vmatprep.subr.mxu0 0.0
    %1656 = vmatpush1.msra.mxu0 0.0
    %1657 = vmatprep.subr.mxu0 0.0
    %1658 = vmatpush1.msra.mxu0 0.0
    %1659 = vmatprep.subr.mxu0 0.0
    %1660 = vmatpush1.msra.mxu0 0.0
    %1661 = vmatprep.subr.mxu0 0.0
    %1662 = vmatpush1.msra.mxu0 0.0
    %1663 = vmatprep.subr.mxu0 0.0
    %1664 = vmatpush1.msra.mxu0 0.0
    %1665 = vmatprep.subr.mxu0 0.0
    %1666 = vmatpush1.msra.mxu0 0.0
    %1667 = vmatprep.subr.mxu0 0.0
    %1668 = vmatpush1.msra.mxu0 0.0
    %1669 = vmatprep.subr.mxu0 0.0
    %1670 = vmatpush1.msra.mxu0 0.0
    %1671 = vmatprep.subr.mxu0 0.0
    %1672 = vmatpush1.msra.mxu0 0.0
    %1673 = vmatprep.subr.mxu0 0.0
    %1674 = vmatpush1.msra.mxu0 0.0
    %1675 = vmatprep.subr.mxu0 0.0
    %1676 = vmatpush1.msra.mxu0 0.0
    %1677 = vmatprep.subr.mxu0 0.0
    %1678 = vmatpush1.msra.mxu0 0.0
    %1679 = vmatprep.subr.mxu0 0.0
    %1680 = vmatpush1.msra.mxu0 0.0
    %1681 = vmatprep.subr.mxu0 %v1647
    %1682 = vmatpush1.msra.mxu0 %v1646
    %1683 = vmatprep.subr.mxu0 %v1645
    %1684 = vmatpush1.msra.mxu0 %v1644
    %1685 = vmatprep.subr.mxu0 0.0
    %1686 = vmatpush2.msra.mxu0 0.0
    %1687 = vmatprep.subr.mxu0 0.0
    %1688 = vmatpush2.msra.mxu0 0.0
    %1689 = vmatprep.subr.mxu0 0.0
    %1690 = vmatpush2.msra.mxu0 0.0
    %1691 = vmatprep.subr.mxu0 0.0
    %1692 = vmatpush2.msra.mxu0 0.0
    %1693 = vmatprep.subr.mxu0 0.0
    %1694 = vmatpush2.msra.mxu0 0.0
    %1695 = vmatprep.subr.mxu0 0.0
    %1696 = vmatpush2.msra.mxu0 0.0
    %1697 = vmatprep.subr.mxu0 0.0
    %1698 = vmatpush2.msra.mxu0 0.0
    %1699 = vmatprep.subr.mxu0 0.0
    %1700 = vmatpush2.msra.mxu0 0.0
    %1701 = vmatprep.subr.mxu0 0.0
    %1702 = vmatpush2.msra.mxu0 0.0
    %1703 = vmatprep.subr.mxu0 0.0
    %1704 = vmatpush2.msra.mxu0 0.0
    %1705 = vmatprep.subr.mxu0 0.0
    %1706 = vmatpush2.msra.mxu0 0.0
    %1707 = vmatprep.subr.mxu0 0.0
    %1708 = vmatpush2.msra.mxu0 0.0
    %1709 = vmatprep.subr.mxu0 0.0
    %1710 = vmatpush2.msra.mxu0 0.0
    %1711 = vmatprep.subr.mxu0 0.0
    %1712 = vmatpush2.msra.mxu0 0.0
    %1713 = vmatprep.subr.mxu0 0.0
    %1714 = vmatpush2.msra.mxu0 0.0
    %1715 = vmatprep.subr.mxu0 0.0
    %1716 = vmatpush2.msra.mxu0 0.0
    %1717 = vmatprep.mubr.f32.mxu0 0.0
    %1718 = vmatmul.mubr.f32.gmra.mxu0 %v1651
    %v1719 = vpop.f32.mrf.mxu0
    %v1720 = vadd.f32 0.0, %v1719
    %v1721 = vpop.f32.mrf.mxu0
    %v1722 = vadd.f32 0.0, %v1721
    %1723 = vdwg.mxu0
    %v1724 = vld [vmem:[%s9] sm:$0xff]
    %v1725 = vld [vmem:[%s9 + $0x8] sm:$0xff]
    %v1726 = vld [vmem:[%s9 + $0x10] sm:$0xff]
    %v1727 = vld [vmem:[%s9 + $0x18] sm:$0xff]
    %v1728 = vld [vmem:[%s9 + $0x20] sm:$0xff]
    %v1729 = vld [vmem:[%s9 + $0x28] sm:$0xff]
    %v1730 = vld [vmem:[%s9 + $0x30] sm:$0xff]
    %v1731 = vld [vmem:[%s9 + $0x38] sm:$0xff]
    %v1732 = vld [vmem:[%s9 + $0x40] sm:$0xff]
    %v1733 = vld [vmem:[%s9 + $0x48] sm:$0xff]
    %v1734 = vld [vmem:[%s9 + $0x50] sm:$0xff]
    %v1735 = vld [vmem:[%s9 + $0x58] sm:$0xff]
    %v1736 = vld [vmem:[%s9 + $0x60] sm:$0xff]
    %v1737 = vld [vmem:[%s9 + $0x68] sm:$0xff]
    %v1738 = vld [vmem:[%s9 + $0x70] sm:$0xff]
    %v1739 = vld [vmem:[%s9 + $0x78] sm:$0xff]
    %v1740 = vld [vmem:[%s9 + $0x80] sm:$0xff]
    %v1741 = vld [vmem:[%s9 + $0x88] sm:$0xff]
    %v1742 = vld [vmem:[%s9 + $0x90] sm:$0xff]
    %v1743 = vld [vmem:[%s9 + $0x98] sm:$0xff]
    %v1744 = vld [vmem:[%s9 + $0xa0] sm:$0xff]
    %v1745 = vld [vmem:[%s9 + $0xa8] sm:$0xff]
    %v1746 = vld [vmem:[%s9 + $0xb0] sm:$0xff]
    %v1747 = vld [vmem:[%s9 + $0xb8] sm:$0xff]
    %v1748 = vld [vmem:[%s9 + $0xc0] sm:$0xff]
    %v1749 = vld [vmem:[%s9 + $0xc8] sm:$0xff]
    %v1750 = vld [vmem:[%s9 + $0xd0] sm:$0xff]
    %v1751 = vld [vmem:[%s9 + $0xd8] sm:$0xff]
    %v1752 = vld [vmem:[%s9 + $0xe0] sm:$0xff]
    %v1753 = vld [vmem:[%s9 + $0xe8] sm:$0xff]
    %v1754 = vld [vmem:[%s9 + $0xf0] sm:$0xff]
    %v1755 = vld [vmem:[%s9 + $0xf8] sm:$0xff]
    %v1756 = vld [vmem:[%s9 + $0x100] sm:$0xff]
    %v1757 = vld [vmem:[%s9 + $0x108] sm:$0xff]
    %v1758 = vld [vmem:[%s9 + $0x110] sm:$0xff]
    %v1759 = vld [vmem:[%s9 + $0x118] sm:$0xff]
    %v1760 = vld [vmem:[%s9 + $0x120] sm:$0xff]
    %v1761 = vld [vmem:[%s9 + $0x128] sm:$0xff]
    %v1762 = vld [vmem:[%s9 + $0x130] sm:$0xff]
    %v1763 = vld [vmem:[%s9 + $0x138] sm:$0xff]
    %v1764 = vld [vmem:[%s9 + $0x140] sm:$0xff]
    %v1765 = vld [vmem:[%s9 + $0x148] sm:$0xff]
    %v1766 = vld [vmem:[%s9 + $0x150] sm:$0xff]
    %v1767 = vld [vmem:[%s9 + $0x158] sm:$0xff]
    %v1768 = vld [vmem:[%s9 + $0x160] sm:$0xff]
    %v1769 = vld [vmem:[%s9 + $0x168] sm:$0xff]
    %v1770 = vld [vmem:[%s9 + $0x170] sm:$0xff]
    %v1771 = vld [vmem:[%s9 + $0x178] sm:$0xff]
    %v1772 = vld [vmem:[%s9 + $0x180] sm:$0xff]
    %v1773 = vld [vmem:[%s9 + $0x188] sm:$0xff]
    %v1774 = vld [vmem:[%s9 + $0x190] sm:$0xff]
    %v1775 = vld [vmem:[%s9 + $0x198] sm:$0xff]
    %v1776 = vld [vmem:[%s9 + $0x1a0] sm:$0xff]
    %v1777 = vld [vmem:[%s9 + $0x1a8] sm:$0xff]
    %v1778 = vld [vmem:[%s9 + $0x1b0] sm:$0xff]
    %v1779 = vld [vmem:[%s9 + $0x1b8] sm:$0xff]
    %v1780 = vld [vmem:[%s9 + $0x1c0] sm:$0xff]
    %v1781 = vld [vmem:[%s9 + $0x1c8] sm:$0xff]
    %v1782 = vld [vmem:[%s9 + $0x1d0] sm:$0xff]
    %v1783 = vld [vmem:[%s9 + $0x1d8] sm:$0xff]
    %v1784 = vld [vmem:[%s9 + $0x1e0] sm:$0xff]
    %v1785 = vld [vmem:[%s9 + $0x1e8] sm:$0xff]
    %v1786 = vld [vmem:[%s9 + $0x1f0] sm:$0xff]
    %v1787 = vld [vmem:[%s9 + $0x1f8] sm:$0xff]
    %s1788 = scalar_lea.vmem [#allocation9], 8
    %v1789 = vld [vmem:[%s1788] sm:$0xff]
    %v1791 = vsel %vm1649, %v1789, 0
    %1793 = vmatprep.subr.mxu0 0.0
    %1794 = vmatpush1.msra.mxu0 0.0
    %1795 = vmatprep.subr.mxu0 0.0
    %1796 = vmatpush1.msra.mxu0 0.0
    %1797 = vmatprep.subr.mxu0 0.0
    %1798 = vmatpush1.msra.mxu0 0.0
    %1799 = vmatprep.subr.mxu0 0.0
    %1800 = vmatpush1.msra.mxu0 0.0
    %1801 = vmatprep.subr.mxu0 0.0
    %1802 = vmatpush1.msra.mxu0 0.0
    %1803 = vmatprep.subr.mxu0 0.0
    %1804 = vmatpush1.msra.mxu0 0.0
    %1805 = vmatprep.subr.mxu0 0.0
    %1806 = vmatpush1.msra.mxu0 0.0
    %1807 = vmatprep.subr.mxu0 0.0
    %1808 = vmatpush1.msra.mxu0 0.0
    %1809 = vmatprep.subr.mxu0 0.0
    %1810 = vmatpush1.msra.mxu0 0.0
    %1811 = vmatprep.subr.mxu0 0.0
    %1812 = vmatpush1.msra.mxu0 0.0
    %1813 = vmatprep.subr.mxu0 0.0
    %1814 = vmatpush1.msra.mxu0 0.0
    %1815 = vmatprep.subr.mxu0 0.0
    %1816 = vmatpush1.msra.mxu0 0.0
    %1817 = vmatprep.subr.mxu0 0.0
    %1818 = vmatpush1.msra.mxu0 0.0
    %1819 = vmatprep.subr.mxu0 0.0
    %1820 = vmatpush1.msra.mxu0 0.0
    %1821 = vmatprep.subr.mxu0 %v1647
    %1822 = vmatpush1.msra.mxu0 %v1646
    %1823 = vmatprep.subr.mxu0 %v1645
    %1824 = vmatpush1.msra.mxu0 %v1644
    %1825 = vmatprep.subr.mxu0 0.0
    %1826 = vmatpush2.msra.mxu0 0.0
    %1827 = vmatprep.subr.mxu0 0.0
    %1828 = vmatpush2.msra.mxu0 0.0
    %1829 = vmatprep.subr.mxu0 0.0
    %1830 = vmatpush2.msra.mxu0 0.0
    %1831 = vmatprep.subr.mxu0 0.0
    %1832 = vmatpush2.msra.mxu0 0.0
    %1833 = vmatprep.subr.mxu0 0.0
    %1834 = vmatpush2.msra.mxu0 0.0
    %1835 = vmatprep.subr.mxu0 0.0
    %1836 = vmatpush2.msra.mxu0 0.0
    %1837 = vmatprep.subr.mxu0 0.0
    %1838 = vmatpush2.msra.mxu0 0.0
    %1839 = vmatprep.subr.mxu0 0.0
    %1840 = vmatpush2.msra.mxu0 0.0
    %1841 = vmatprep.subr.mxu0 0.0
    %1842 = vmatpush2.msra.mxu0 0.0
    %1843 = vmatprep.subr.mxu0 0.0
    %1844 = vmatpush2.msra.mxu0 0.0
    %1845 = vmatprep.subr.mxu0 0.0
    %1846 = vmatpush2.msra.mxu0 0.0
    %1847 = vmatprep.subr.mxu0 0.0
    %1848 = vmatpush2.msra.mxu0 0.0
    %1849 = vmatprep.subr.mxu0 0.0
    %1850 = vmatpush2.msra.mxu0 0.0
    %1851 = vmatprep.subr.mxu0 0.0
    %1852 = vmatpush2.msra.mxu0 0.0
    %1853 = vmatprep.subr.mxu0 0.0
    %1854 = vmatpush2.msra.mxu0 0.0
    %1855 = vmatprep.subr.mxu0 0.0
    %1856 = vmatpush2.msra.mxu0 0.0
    %1857 = vmatprep.mubr.f32.mxu0 0.0
    %1858 = vmatmul.mubr.f32.gmra.mxu0 %v1791
    %v1859 = vpop.f32.mrf.mxu0
    %v1860 = vadd.f32 0.0, %v1859
    %v1861 = vpop.f32.mrf.mxu0
    %v1862 = vadd.f32 0.0, %v1861
    %1863 = vdwg.mxu0
    %s1864 = scalar_lea.vmem %s9, 512
    %v1865 = vld [vmem:[%s1864] sm:$0xff]
    %v1866 = vld [vmem:[%s1864 + $0x8] sm:$0xff]
    %v1867 = vld [vmem:[%s1864 + $0x10] sm:$0xff]
    %v1868 = vld [vmem:[%s1864 + $0x18] sm:$0xff]
    %v1869 = vld [vmem:[%s1864 + $0x20] sm:$0xff]
    %v1870 = vld [vmem:[%s1864 + $0x28] sm:$0xff]
    %v1871 = vld [vmem:[%s1864 + $0x30] sm:$0xff]
    %v1872 = vld [vmem:[%s1864 + $0x38] sm:$0xff]
    %v1873 = vld [vmem:[%s1864 + $0x40] sm:$0xff]
    %v1874 = vld [vmem:[%s1864 + $0x48] sm:$0xff]
    %v1875 = vld [vmem:[%s1864 + $0x50] sm:$0xff]
    %v1876 = vld [vmem:[%s1864 + $0x58] sm:$0xff]
    %v1877 = vld [vmem:[%s1864 + $0x60] sm:$0xff]
    %v1878 = vld [vmem:[%s1864 + $0x68] sm:$0xff]
    %v1879 = vld [vmem:[%s1864 + $0x70] sm:$0xff]
    %v1880 = vld [vmem:[%s1864 + $0x78] sm:$0xff]
    %v1881 = vld [vmem:[%s1864 + $0x80] sm:$0xff]
    %v1882 = vld [vmem:[%s1864 + $0x88] sm:$0xff]
    %v1883 = vld [vmem:[%s1864 + $0x90] sm:$0xff]
    %v1884 = vld [vmem:[%s1864 + $0x98] sm:$0xff]
    %v1885 = vld [vmem:[%s1864 + $0xa0] sm:$0xff]
    %v1886 = vld [vmem:[%s1864 + $0xa8] sm:$0xff]
    %v1887 = vld [vmem:[%s1864 + $0xb0] sm:$0xff]
    %v1888 = vld [vmem:[%s1864 + $0xb8] sm:$0xff]
    %v1889 = vld [vmem:[%s1864 + $0xc0] sm:$0xff]
    %v1890 = vld [vmem:[%s1864 + $0xc8] sm:$0xff]
    %v1891 = vld [vmem:[%s1864 + $0xd0] sm:$0xff]
    %v1892 = vld [vmem:[%s1864 + $0xd8] sm:$0xff]
    %v1893 = vld [vmem:[%s1864 + $0xe0] sm:$0xff]
    %v1894 = vld [vmem:[%s1864 + $0xe8] sm:$0xff]
    %v1895 = vld [vmem:[%s1864 + $0xf0] sm:$0xff]
    %v1896 = vld [vmem:[%s1864 + $0xf8] sm:$0xff]
    %v1897 = vld [vmem:[%s1864 + $0x100] sm:$0xff]
    %v1898 = vld [vmem:[%s1864 + $0x108] sm:$0xff]
    %v1899 = vld [vmem:[%s1864 + $0x110] sm:$0xff]
    %v1900 = vld [vmem:[%s1864 + $0x118] sm:$0xff]
    %v1901 = vld [vmem:[%s1864 + $0x120] sm:$0xff]
    %v1902 = vld [vmem:[%s1864 + $0x128] sm:$0xff]
    %v1903 = vld [vmem:[%s1864 + $0x130] sm:$0xff]
    %v1904 = vld [vmem:[%s1864 + $0x138] sm:$0xff]
    %v1905 = vld [vmem:[%s1864 + $0x140] sm:$0xff]
    %v1906 = vld [vmem:[%s1864 + $0x148] sm:$0xff]
    %v1907 = vld [vmem:[%s1864 + $0x150] sm:$0xff]
    %v1908 = vld [vmem:[%s1864 + $0x158] sm:$0xff]
    %v1909 = vld [vmem:[%s1864 + $0x160] sm:$0xff]
    %v1910 = vld [vmem:[%s1864 + $0x168] sm:$0xff]
    %v1911 = vld [vmem:[%s1864 + $0x170] sm:$0xff]
    %v1912 = vld [vmem:[%s1864 + $0x178] sm:$0xff]
    %v1913 = vld [vmem:[%s1864 + $0x180] sm:$0xff]
    %v1914 = vld [vmem:[%s1864 + $0x188] sm:$0xff]
    %v1915 = vld [vmem:[%s1864 + $0x190] sm:$0xff]
    %v1916 = vld [vmem:[%s1864 + $0x198] sm:$0xff]
    %v1917 = vld [vmem:[%s1864 + $0x1a0] sm:$0xff]
    %v1918 = vld [vmem:[%s1864 + $0x1a8] sm:$0xff]
    %v1919 = vld [vmem:[%s1864 + $0x1b0] sm:$0xff]
    %v1920 = vld [vmem:[%s1864 + $0x1b8] sm:$0xff]
    %v1921 = vld [vmem:[%s1864 + $0x1c0] sm:$0xff]
    %v1922 = vld [vmem:[%s1864 + $0x1c8] sm:$0xff]
    %v1923 = vld [vmem:[%s1864 + $0x1d0] sm:$0xff]
    %v1924 = vld [vmem:[%s1864 + $0x1d8] sm:$0xff]
    %v1925 = vld [vmem:[%s1864 + $0x1e0] sm:$0xff]
    %v1926 = vld [vmem:[%s1864 + $0x1e8] sm:$0xff]
    %v1927 = vld [vmem:[%s1864 + $0x1f0] sm:$0xff]
    %v1928 = vld [vmem:[%s1864 + $0x1f8] sm:$0xff]
    %1929 = vmatprep.subr.mxu0 %v1896
    %1930 = vmatpush1.msra.mxu0 %v1895
    %1931 = vmatprep.subr.mxu0 %v1894
    %1932 = vmatpush1.msra.mxu0 %v1893
    %1933 = vmatprep.subr.mxu0 %v1892
    %1934 = vmatpush1.msra.mxu0 %v1891
    %1935 = vmatprep.subr.mxu0 %v1890
    %1936 = vmatpush1.msra.mxu0 %v1889
    %1937 = vmatprep.subr.mxu0 %v1888
    %1938 = vmatpush1.msra.mxu0 %v1887
    %1939 = vmatprep.subr.mxu0 %v1886
    %1940 = vmatpush1.msra.mxu0 %v1885
    %1941 = vmatprep.subr.mxu0 %v1884
    %1942 = vmatpush1.msra.mxu0 %v1883
    %1943 = vmatprep.subr.mxu0 %v1882
    %1944 = vmatpush1.msra.mxu0 %v1881
    %1945 = vmatprep.subr.mxu0 %v1880
    %1946 = vmatpush1.msra.mxu0 %v1879
    %1947 = vmatprep.subr.mxu0 %v1878
    %1948 = vmatpush1.msra.mxu0 %v1877
    %1949 = vmatprep.subr.mxu0 %v1876
    %1950 = vmatpush1.msra.mxu0 %v1875
    %1951 = vmatprep.subr.mxu0 %v1874
    %1952 = vmatpush1.msra.mxu0 %v1873
    %1953 = vmatprep.subr.mxu0 %v1872
    %1954 = vmatpush1.msra.mxu0 %v1871
    %1955 = vmatprep.subr.mxu0 %v1870
    %1956 = vmatpush1.msra.mxu0 %v1869
    %1957 = vmatprep.subr.mxu0 %v1868
    %1958 = vmatpush1.msra.mxu0 %v1867
    %1959 = vmatprep.subr.mxu0 %v1866
    %1960 = vmatpush1.msra.mxu0 %v1865
    %1961 = vmatprep.subr.mxu0 %v1928
    %1962 = vmatpush2.msra.mxu0 %v1927
    %1963 = vmatprep.subr.mxu0 %v1926
    %1964 = vmatpush2.msra.mxu0 %v1925
    %1965 = vmatprep.subr.mxu0 %v1924
    %1966 = vmatpush2.msra.mxu0 %v1923
    %1967 = vmatprep.subr.mxu0 %v1922
    %1968 = vmatpush2.msra.mxu0 %v1921
    %1969 = vmatprep.subr.mxu0 %v1920
    %1970 = vmatpush2.msra.mxu0 %v1919
    %1971 = vmatprep.subr.mxu0 %v1918
    %1972 = vmatpush2.msra.mxu0 %v1917
    %1973 = vmatprep.subr.mxu0 %v1916
    %1974 = vmatpush2.msra.mxu0 %v1915
    %1975 = vmatprep.subr.mxu0 %v1914
    %1976 = vmatpush2.msra.mxu0 %v1913
    %1977 = vmatprep.subr.mxu0 %v1912
    %1978 = vmatpush2.msra.mxu0 %v1911
    %1979 = vmatprep.subr.mxu0 %v1910
    %1980 = vmatpush2.msra.mxu0 %v1909
    %1981 = vmatprep.subr.mxu0 %v1908
    %1982 = vmatpush2.msra.mxu0 %v1907
    %1983 = vmatprep.subr.mxu0 %v1906
    %1984 = vmatpush2.msra.mxu0 %v1905
    %1985 = vmatprep.subr.mxu0 %v1904
    %1986 = vmatpush2.msra.mxu0 %v1903
    %1987 = vmatprep.subr.mxu0 %v1902
    %1988 = vmatpush2.msra.mxu0 %v1901
    %1989 = vmatprep.subr.mxu0 %v1900
    %1990 = vmatpush2.msra.mxu0 %v1899
    %1991 = vmatprep.subr.mxu0 %v1898
    %1992 = vmatpush2.msra.mxu0 %v1897
    %1993 = vmatprep.mubr.f32.mxu0 %v1862
    %1994 = vmatmul.mubr.f32.gmra.mxu0 %v1860
    %v1995 = vpop.f32.mrf.mxu0
    %v1996 = vadd.f32 0.0, %v1995
    %v1997 = vpop.f32.mrf.mxu0
    %v1998 = vadd.f32 0.0, %v1997
    %1999 = vdwg.mxu0
    %2000 = vmatprep.subr.mxu0 %v1755
    %2001 = vmatpush1.msra.mxu0 %v1754
    %2002 = vmatprep.subr.mxu0 %v1753
    %2003 = vmatpush1.msra.mxu0 %v1752
    %2004 = vmatprep.subr.mxu0 %v1751
    %2005 = vmatpush1.msra.mxu0 %v1750
    %2006 = vmatprep.subr.mxu0 %v1749
    %2007 = vmatpush1.msra.mxu0 %v1748
    %2008 = vmatprep.subr.mxu0 %v1747
    %2009 = vmatpush1.msra.mxu0 %v1746
    %2010 = vmatprep.subr.mxu0 %v1745
    %2011 = vmatpush1.msra.mxu0 %v1744
    %2012 = vmatprep.subr.mxu0 %v1743
    %2013 = vmatpush1.msra.mxu0 %v1742
    %2014 = vmatprep.subr.mxu0 %v1741
    %2015 = vmatpush1.msra.mxu0 %v1740
    %2016 = vmatprep.subr.mxu0 %v1739
    %2017 = vmatpush1.msra.mxu0 %v1738
    %2018 = vmatprep.subr.mxu0 %v1737
    %2019 = vmatpush1.msra.mxu0 %v1736
    %2020 = vmatprep.subr.mxu0 %v1735
    %2021 = vmatpush1.msra.mxu0 %v1734
    %2022 = vmatprep.subr.mxu0 %v1733
    %2023 = vmatpush1.msra.mxu0 %v1732
    %2024 = vmatprep.subr.mxu0 %v1731
    %2025 = vmatpush1.msra.mxu0 %v1730
    %2026 = vmatprep.subr.mxu0 %v1729
    %2027 = vmatpush1.msra.mxu0 %v1728
    %2028 = vmatprep.subr.mxu0 %v1727
    %2029 = vmatpush1.msra.mxu0 %v1726
    %2030 = vmatprep.subr.mxu0 %v1725
    %2031 = vmatpush1.msra.mxu0 %v1724
    %2032 = vmatprep.subr.mxu0 %v1787
    %2033 = vmatpush2.msra.mxu0 %v1786
    %2034 = vmatprep.subr.mxu0 %v1785
    %2035 = vmatpush2.msra.mxu0 %v1784
    %2036 = vmatprep.subr.mxu0 %v1783
    %2037 = vmatpush2.msra.mxu0 %v1782
    %2038 = vmatprep.subr.mxu0 %v1781
    %2039 = vmatpush2.msra.mxu0 %v1780
    %2040 = vmatprep.subr.mxu0 %v1779
    %2041 = vmatpush2.msra.mxu0 %v1778
    %2042 = vmatprep.subr.mxu0 %v1777
    %2043 = vmatpush2.msra.mxu0 %v1776
    %2044 = vmatprep.subr.mxu0 %v1775
    %2045 = vmatpush2.msra.mxu0 %v1774
    %2046 = vmatprep.subr.mxu0 %v1773
    %2047 = vmatpush2.msra.mxu0 %v1772
    %2048 = vmatprep.subr.mxu0 %v1771
    %2049 = vmatpush2.msra.mxu0 %v1770
    %2050 = vmatprep.subr.mxu0 %v1769
    %2051 = vmatpush2.msra.mxu0 %v1768
    %2052 = vmatprep.subr.mxu0 %v1767
    %2053 = vmatpush2.msra.mxu0 %v1766
    %2054 = vmatprep.subr.mxu0 %v1765
    %2055 = vmatpush2.msra.mxu0 %v1764
    %2056 = vmatprep.subr.mxu0 %v1763
    %2057 = vmatpush2.msra.mxu0 %v1762
    %2058 = vmatprep.subr.mxu0 %v1761
    %2059 = vmatpush2.msra.mxu0 %v1760
    %2060 = vmatprep.subr.mxu0 %v1759
    %2061 = vmatpush2.msra.mxu0 %v1758
    %2062 = vmatprep.subr.mxu0 %v1757
    %2063 = vmatpush2.msra.mxu0 %v1756
    %2064 = vmatprep.mubr.f32.mxu0 %v1722
    %2065 = vmatmul.mubr.f32.gmra.mxu0 %v1720
    %v2066 = vpop.f32.mrf.mxu0
    %v2067 = vadd.f32 %v1996, %v2066
    %v2068 = vpop.f32.mrf.mxu0
    %v2069 = vadd.f32 %v1998, %v2068
    %2070 = vdwg.mxu0
    %s2071 = scalar_lea.vmem [#allocation9], 16
    %v2072 = vld [vmem:[%s2071] sm:$0xff]
    %v2074 = vsel %vm1649, %v2072, 0
    %2076 = vmatprep.subr.mxu0 0.0
    %2077 = vmatpush1.msra.mxu0 0.0
    %2078 = vmatprep.subr.mxu0 0.0
    %2079 = vmatpush1.msra.mxu0 0.0
    %2080 = vmatprep.subr.mxu0 0.0
    %2081 = vmatpush1.msra.mxu0 0.0
    %2082 = vmatprep.subr.mxu0 0.0
    %2083 = vmatpush1.msra.mxu0 0.0
    %2084 = vmatprep.subr.mxu0 0.0
    %2085 = vmatpush1.msra.mxu0 0.0
    %2086 = vmatprep.subr.mxu0 0.0
    %2087 = vmatpush1.msra.mxu0 0.0
    %2088 = vmatprep.subr.mxu0 0.0
    %2089 = vmatpush1.msra.mxu0 0.0
    %2090 = vmatprep.subr.mxu0 0.0
    %2091 = vmatpush1.msra.mxu0 0.0
    %2092 = vmatprep.subr.mxu0 0.0
    %2093 = vmatpush1.msra.mxu0 0.0
    %2094 = vmatprep.subr.mxu0 0.0
    %2095 = vmatpush1.msra.mxu0 0.0
    %2096 = vmatprep.subr.mxu0 0.0
    %2097 = vmatpush1.msra.mxu0 0.0
    %2098 = vmatprep.subr.mxu0 0.0
    %2099 = vmatpush1.msra.mxu0 0.0
    %2100 = vmatprep.subr.mxu0 0.0
    %2101 = vmatpush1.msra.mxu0 0.0
    %2102 = vmatprep.subr.mxu0 0.0
    %2103 = vmatpush1.msra.mxu0 0.0
    %2104 = vmatprep.subr.mxu0 %v1647
    %2105 = vmatpush1.msra.mxu0 %v1646
    %2106 = vmatprep.subr.mxu0 %v1645
    %2107 = vmatpush1.msra.mxu0 %v1644
    %2108 = vmatprep.subr.mxu0 0.0
    %2109 = vmatpush2.msra.mxu0 0.0
    %2110 = vmatprep.subr.mxu0 0.0
    %2111 = vmatpush2.msra.mxu0 0.0
    %2112 = vmatprep.subr.mxu0 0.0
    %2113 = vmatpush2.msra.mxu0 0.0
    %2114 = vmatprep.subr.mxu0 0.0
    %2115 = vmatpush2.msra.mxu0 0.0
    %2116 = vmatprep.subr.mxu0 0.0
    %2117 = vmatpush2.msra.mxu0 0.0
    %2118 = vmatprep.subr.mxu0 0.0
    %2119 = vmatpush2.msra.mxu0 0.0
    %2120 = vmatprep.subr.mxu0 0.0
    %2121 = vmatpush2.msra.mxu0 0.0
    %2122 = vmatprep.subr.mxu0 0.0
    %2123 = vmatpush2.msra.mxu0 0.0
    %2124 = vmatprep.subr.mxu0 0.0
    %2125 = vmatpush2.msra.mxu0 0.0
    %2126 = vmatprep.subr.mxu0 0.0
    %2127 = vmatpush2.msra.mxu0 0.0
    %2128 = vmatprep.subr.mxu0 0.0
    %2129 = vmatpush2.msra.mxu0 0.0
    %2130 = vmatprep.subr.mxu0 0.0
    %2131 = vmatpush2.msra.mxu0 0.0
    %2132 = vmatprep.subr.mxu0 0.0
    %2133 = vmatpush2.msra.mxu0 0.0
    %2134 = vmatprep.subr.mxu0 0.0
    %2135 = vmatpush2.msra.mxu0 0.0
    %2136 = vmatprep.subr.mxu0 0.0
    %2137 = vmatpush2.msra.mxu0 0.0
    %2138 = vmatprep.subr.mxu0 0.0
    %2139 = vmatpush2.msra.mxu0 0.0
    %2140 = vmatprep.mubr.f32.mxu0 0.0
    %2141 = vmatmul.mubr.f32.gmra.mxu0 %v2074
    %v2142 = vpop.f32.mrf.mxu0
    %v2143 = vadd.f32 0.0, %v2142
    %v2144 = vpop.f32.mrf.mxu0
    %v2145 = vadd.f32 0.0, %v2144
    %2146 = vdwg.mxu0
    %s2147 = scalar_lea.vmem %s9, 1024
    %v2148 = vld [vmem:[%s2147] sm:$0xff]
    %v2149 = vld [vmem:[%s2147 + $0x8] sm:$0xff]
    %v2150 = vld [vmem:[%s2147 + $0x10] sm:$0xff]
    %v2151 = vld [vmem:[%s2147 + $0x18] sm:$0xff]
    %v2152 = vld [vmem:[%s2147 + $0x20] sm:$0xff]
    %v2153 = vld [vmem:[%s2147 + $0x28] sm:$0xff]
    %v2154 = vld [vmem:[%s2147 + $0x30] sm:$0xff]
    %v2155 = vld [vmem:[%s2147 + $0x38] sm:$0xff]
    %v2156 = vld [vmem:[%s2147 + $0x40] sm:$0xff]
    %v2157 = vld [vmem:[%s2147 + $0x48] sm:$0xff]
    %v2158 = vld [vmem:[%s2147 + $0x50] sm:$0xff]
    %v2159 = vld [vmem:[%s2147 + $0x58] sm:$0xff]
    %v2160 = vld [vmem:[%s2147 + $0x60] sm:$0xff]
    %v2161 = vld [vmem:[%s2147 + $0x68] sm:$0xff]
    %v2162 = vld [vmem:[%s2147 + $0x70] sm:$0xff]
    %v2163 = vld [vmem:[%s2147 + $0x78] sm:$0xff]
    %v2164 = vld [vmem:[%s2147 + $0x80] sm:$0xff]
    %v2165 = vld [vmem:[%s2147 + $0x88] sm:$0xff]
    %v2166 = vld [vmem:[%s2147 + $0x90] sm:$0xff]
    %v2167 = vld [vmem:[%s2147 + $0x98] sm:$0xff]
    %v2168 = vld [vmem:[%s2147 + $0xa0] sm:$0xff]
    %v2169 = vld [vmem:[%s2147 + $0xa8] sm:$0xff]
    %v2170 = vld [vmem:[%s2147 + $0xb0] sm:$0xff]
    %v2171 = vld [vmem:[%s2147 + $0xb8] sm:$0xff]
    %v2172 = vld [vmem:[%s2147 + $0xc0] sm:$0xff]
    %v2173 = vld [vmem:[%s2147 + $0xc8] sm:$0xff]
    %v2174 = vld [vmem:[%s2147 + $0xd0] sm:$0xff]
    %v2175 = vld [vmem:[%s2147 + $0xd8] sm:$0xff]
    %v2176 = vld [vmem:[%s2147 + $0xe0] sm:$0xff]
    %v2177 = vld [vmem:[%s2147 + $0xe8] sm:$0xff]
    %v2178 = vld [vmem:[%s2147 + $0xf0] sm:$0xff]
    %v2179 = vld [vmem:[%s2147 + $0xf8] sm:$0xff]
    %v2180 = vld [vmem:[%s2147 + $0x100] sm:$0xff]
    %v2181 = vld [vmem:[%s2147 + $0x108] sm:$0xff]
    %v2182 = vld [vmem:[%s2147 + $0x110] sm:$0xff]
    %v2183 = vld [vmem:[%s2147 + $0x118] sm:$0xff]
    %v2184 = vld [vmem:[%s2147 + $0x120] sm:$0xff]
    %v2185 = vld [vmem:[%s2147 + $0x128] sm:$0xff]
    %v2186 = vld [vmem:[%s2147 + $0x130] sm:$0xff]
    %v2187 = vld [vmem:[%s2147 + $0x138] sm:$0xff]
    %v2188 = vld [vmem:[%s2147 + $0x140] sm:$0xff]
    %v2189 = vld [vmem:[%s2147 + $0x148] sm:$0xff]
    %v2190 = vld [vmem:[%s2147 + $0x150] sm:$0xff]
    %v2191 = vld [vmem:[%s2147 + $0x158] sm:$0xff]
    %v2192 = vld [vmem:[%s2147 + $0x160] sm:$0xff]
    %v2193 = vld [vmem:[%s2147 + $0x168] sm:$0xff]
    %v2194 = vld [vmem:[%s2147 + $0x170] sm:$0xff]
    %v2195 = vld [vmem:[%s2147 + $0x178] sm:$0xff]
    %v2196 = vld [vmem:[%s2147 + $0x180] sm:$0xff]
    %v2197 = vld [vmem:[%s2147 + $0x188] sm:$0xff]
    %v2198 = vld [vmem:[%s2147 + $0x190] sm:$0xff]
    %v2199 = vld [vmem:[%s2147 + $0x198] sm:$0xff]
    %v2200 = vld [vmem:[%s2147 + $0x1a0] sm:$0xff]
    %v2201 = vld [vmem:[%s2147 + $0x1a8] sm:$0xff]
    %v2202 = vld [vmem:[%s2147 + $0x1b0] sm:$0xff]
    %v2203 = vld [vmem:[%s2147 + $0x1b8] sm:$0xff]
    %v2204 = vld [vmem:[%s2147 + $0x1c0] sm:$0xff]
    %v2205 = vld [vmem:[%s2147 + $0x1c8] sm:$0xff]
    %v2206 = vld [vmem:[%s2147 + $0x1d0] sm:$0xff]
    %v2207 = vld [vmem:[%s2147 + $0x1d8] sm:$0xff]
    %v2208 = vld [vmem:[%s2147 + $0x1e0] sm:$0xff]
    %v2209 = vld [vmem:[%s2147 + $0x1e8] sm:$0xff]
    %v2210 = vld [vmem:[%s2147 + $0x1f0] sm:$0xff]
    %v2211 = vld [vmem:[%s2147 + $0x1f8] sm:$0xff]
    %2212 = vmatprep.subr.mxu0 %v2179
    %2213 = vmatpush1.msra.mxu0 %v2178
    %2214 = vmatprep.subr.mxu0 %v2177
    %2215 = vmatpush1.msra.mxu0 %v2176
    %2216 = vmatprep.subr.mxu0 %v2175
    %2217 = vmatpush1.msra.mxu0 %v2174
    %2218 = vmatprep.subr.mxu0 %v2173
    %2219 = vmatpush1.msra.mxu0 %v2172
    %2220 = vmatprep.subr.mxu0 %v2171
    %2221 = vmatpush1.msra.mxu0 %v2170
    %2222 = vmatprep.subr.mxu0 %v2169
    %2223 = vmatpush1.msra.mxu0 %v2168
    %2224 = vmatprep.subr.mxu0 %v2167
    %2225 = vmatpush1.msra.mxu0 %v2166
    %2226 = vmatprep.subr.mxu0 %v2165
    %2227 = vmatpush1.msra.mxu0 %v2164
    %2228 = vmatprep.subr.mxu0 %v2163
    %2229 = vmatpush1.msra.mxu0 %v2162
    %2230 = vmatprep.subr.mxu0 %v2161
    %2231 = vmatpush1.msra.mxu0 %v2160
    %2232 = vmatprep.subr.mxu0 %v2159
    %2233 = vmatpush1.msra.mxu0 %v2158
    %2234 = vmatprep.subr.mxu0 %v2157
    %2235 = vmatpush1.msra.mxu0 %v2156
    %2236 = vmatprep.subr.mxu0 %v2155
    %2237 = vmatpush1.msra.mxu0 %v2154
    %2238 = vmatprep.subr.mxu0 %v2153
    %2239 = vmatpush1.msra.mxu0 %v2152
    %2240 = vmatprep.subr.mxu0 %v2151
    %2241 = vmatpush1.msra.mxu0 %v2150
    %2242 = vmatprep.subr.mxu0 %v2149
    %2243 = vmatpush1.msra.mxu0 %v2148
    %2244 = vmatprep.subr.mxu0 %v2211
    %2245 = vmatpush2.msra.mxu0 %v2210
    %2246 = vmatprep.subr.mxu0 %v2209
    %2247 = vmatpush2.msra.mxu0 %v2208
    %2248 = vmatprep.subr.mxu0 %v2207
    %2249 = vmatpush2.msra.mxu0 %v2206
    %2250 = vmatprep.subr.mxu0 %v2205
    %2251 = vmatpush2.msra.mxu0 %v2204
    %2252 = vmatprep.subr.mxu0 %v2203
    %2253 = vmatpush2.msra.mxu0 %v2202
    %2254 = vmatprep.subr.mxu0 %v2201
    %2255 = vmatpush2.msra.mxu0 %v2200
    %2256 = vmatprep.subr.mxu0 %v2199
    %2257 = vmatpush2.msra.mxu0 %v2198
    %2258 = vmatprep.subr.mxu0 %v2197
    %2259 = vmatpush2.msra.mxu0 %v2196
    %2260 = vmatprep.subr.mxu0 %v2195
    %2261 = vmatpush2.msra.mxu0 %v2194
    %2262 = vmatprep.subr.mxu0 %v2193
    %2263 = vmatpush2.msra.mxu0 %v2192
    %2264 = vmatprep.subr.mxu0 %v2191
    %2265 = vmatpush2.msra.mxu0 %v2190
    %2266 = vmatprep.subr.mxu0 %v2189
    %2267 = vmatpush2.msra.mxu0 %v2188
    %2268 = vmatprep.subr.mxu0 %v2187
    %2269 = vmatpush2.msra.mxu0 %v2186
    %2270 = vmatprep.subr.mxu0 %v2185
    %2271 = vmatpush2.msra.mxu0 %v2184
    %2272 = vmatprep.subr.mxu0 %v2183
    %2273 = vmatpush2.msra.mxu0 %v2182
    %2274 = vmatprep.subr.mxu0 %v2181
    %2275 = vmatpush2.msra.mxu0 %v2180
    %2276 = vmatprep.mubr.f32.mxu0 %v2145
    %2277 = vmatmul.mubr.f32.gmra.mxu0 %v2143
    %v2278 = vpop.f32.mrf.mxu0
    %v2279 = vadd.f32 0.0, %v2278
    %v2280 = vpop.f32.mrf.mxu0
    %v2281 = vadd.f32 0.0, %v2280
    %2282 = vdwg.mxu0
    %v2283 = vadd.f32 %v2067, %v2279
    %v2284 = vadd.f32 %v2069, %v2281
    %v2285 = vld [vmem:[#allocation10] sm:$0x3]
    %v2287 = vlaneseq
    %v2288 = vshrl.u32 %v2287, 7
    %v2289 = vsub.s32 0, %v2288
    %v2290 = vrot.slane %v2285, %v2289
    %v2291 = vlaneseq
    %v2292 = vshrl.u32 %v2291, 7
    %v2293 = vsub.s32 1, %v2292
    %v2294 = vrot.slane %v2285, %v2293
    %v2297 = vadd.f32 %v2283, %v2290
    %v2298 = vadd.f32 %v2284, %v2294
    %v2299 = vmax.f32 %v2297, 0.0
    %v2300 = vmax.f32 %v2298, 0.0
    %2301 = vst [vmem:[%s20] sm:$0xff] %v934
    %2302 = vst [vmem:[%s20 + $0x8] sm:$0xff] %v935
    %2303 = vst [vmem:[%s20 + $0x10] sm:$0xff] %v936
    %2304 = vst [vmem:[%s20 + $0x18] sm:$0xff] %v937
    %2305 = vst [vmem:[%s20 + $0x20] sm:$0xff] %v938
    %2306 = vst [vmem:[%s20 + $0x28] sm:$0xff] %v939
    %2307 = vst [vmem:[%s20 + $0x30] sm:$0xff] %v940
    %2308 = vst [vmem:[%s20 + $0x38] sm:$0xff] %v941
    %2309 = vst [vmem:[%s21] sm:$0xff] %v1644
    %2310 = vst [vmem:[%s21 + $0x8] sm:$0xff] %v1645
    %2311 = vst [vmem:[%s21 + $0x10] sm:$0xff] %v1646
    %2312 = vst [vmem:[%s21 + $0x18] sm:$0xff] %v1647
    %2313 = vst [vmem:[%s22] sm:$0xff] %v2299
    %2314 = vst [vmem:[%s22 + $0x8] sm:$0xff] %v2300
    %v2315 = vld [vmem:[%s1] sm:$0xff]
    %v2316 = vld [vmem:[%s1 + $0x8] sm:$0xff]
    %v2317 = vld [vmem:[%s1 + $0x10] sm:$0xff]
    %v2318 = vld [vmem:[%s1 + $0x18] sm:$0xff]
    %v2319 = vld [vmem:[%s1 + $0x20] sm:$0xff]
    %v2320 = vld [vmem:[%s1 + $0x28] sm:$0xff]
    %v2321 = vld [vmem:[%s1 + $0x30] sm:$0xff]
    %v2322 = vld [vmem:[%s1 + $0x38] sm:$0xff]
    %v2323 = vld [vmem:[#allocation12] sm:$0xff]
    %v2324 = vld [vmem:[#allocation12 + $0x8] sm:$0xff]
    %v2325 = vld [vmem:[#allocation12 + $0x10] sm:$0xff]
    %v2326 = vld [vmem:[#allocation12 + $0x18] sm:$0xff]
    %vm2327 = vcmask 523264
    %v2329 = vsel %vm2327, %v2323, 0
    %v2332 = vsel %vm2327, %v2324, 0
    %v2335 = vsel %vm2327, %v2325, 0
    %v2338 = vsel %vm2327, %v2326, 0
    %2340 = vmatprep.subr.mxu0 0.0
    %2341 = vmatpush1.msra.mxu0 0.0
    %2342 = vmatprep.subr.mxu0 0.0
    %2343 = vmatpush1.msra.mxu0 0.0
    %2344 = vmatprep.subr.mxu0 0.0
    %2345 = vmatpush1.msra.mxu0 0.0
    %2346 = vmatprep.subr.mxu0 0.0
    %2347 = vmatpush1.msra.mxu0 0.0
    %2348 = vmatprep.subr.mxu0 0.0
    %2349 = vmatpush1.msra.mxu0 0.0
    %2350 = vmatprep.subr.mxu0 0.0
    %2351 = vmatpush1.msra.mxu0 0.0
    %2352 = vmatprep.subr.mxu0 0.0
    %2353 = vmatpush1.msra.mxu0 0.0
    %2354 = vmatprep.subr.mxu0 0.0
    %2355 = vmatpush1.msra.mxu0 0.0
    %2356 = vmatprep.subr.mxu0 0.0
    %2357 = vmatpush1.msra.mxu0 %v2322
    %2358 = vmatprep.subr.mxu0 0.0
    %2359 = vmatpush1.msra.mxu0 %v2321
    %2360 = vmatprep.subr.mxu0 0.0
    %2361 = vmatpush1.msra.mxu0 %v2320
    %2362 = vmatprep.subr.mxu0 0.0
    %2363 = vmatpush1.msra.mxu0 %v2319
    %2364 = vmatprep.subr.mxu0 0.0
    %2365 = vmatpush1.msra.mxu0 %v2318
    %2366 = vmatprep.subr.mxu0 0.0
    %2367 = vmatpush1.msra.mxu0 %v2317
    %2368 = vmatprep.subr.mxu0 0.0
    %2369 = vmatpush1.msra.mxu0 %v2316
    %2370 = vmatprep.subr.mxu0 0.0
    %2371 = vmatpush1.msra.mxu0 %v2315
    %2372 = vmatprep.subr.mxu0 0.0
    %2373 = vmatpush2.msra.mxu0 0.0
    %2374 = vmatprep.subr.mxu0 0.0
    %2375 = vmatpush2.msra.mxu0 0.0
    %2376 = vmatprep.subr.mxu0 0.0
    %2377 = vmatpush2.msra.mxu0 0.0
    %2378 = vmatprep.subr.mxu0 0.0
    %2379 = vmatpush2.msra.mxu0 0.0
    %2380 = vmatprep.subr.mxu0 0.0
    %2381 = vmatpush2.msra.mxu0 0.0
    %2382 = vmatprep.subr.mxu0 0.0
    %2383 = vmatpush2.msra.mxu0 0.0
    %2384 = vmatprep.subr.mxu0 0.0
    %2385 = vmatpush2.msra.mxu0 0.0
    %2386 = vmatprep.subr.mxu0 0.0
    %2387 = vmatpush2.msra.mxu0 0.0
    %2388 = vmatprep.subr.mxu0 0.0
    %2389 = vmatpush2.msra.mxu0 0.0
    %2390 = vmatprep.subr.mxu0 0.0
    %2391 = vmatpush2.msra.mxu0 0.0
    %2392 = vmatprep.subr.mxu0 0.0
    %2393 = vmatpush2.msra.mxu0 0.0
    %2394 = vmatprep.subr.mxu0 0.0
    %2395 = vmatpush2.msra.mxu0 0.0
    %2396 = vmatprep.subr.mxu0 0.0
    %2397 = vmatpush2.msra.mxu0 0.0
    %2398 = vmatprep.subr.mxu0 0.0
    %2399 = vmatpush2.msra.mxu0 0.0
    %2400 = vmatprep.subr.mxu0 0.0
    %2401 = vmatpush2.msra.mxu0 0.0
    %2402 = vmatprep.subr.mxu0 0.0
    %2403 = vmatpush2.msra.mxu0 0.0
    %2404 = vmatprep.mubr.f32.mxu0 0.0
    %2405 = vmatmul.mubr.f32.gmra.mxu0 %v2329
    %v2406 = vpop.f32.mrf.mxu0
    %v2407 = vadd.f32 0.0, %v2406
    %v2408 = vpop.f32.mrf.mxu0
    %2409 = vmatprep.mubr.f32.mxu0 0.0
    %2410 = vmatmul.mubr.f32.gmra.mxu0 %v2332
    %v2411 = vpop.f32.mrf.mxu0
    %v2412 = vadd.f32 0.0, %v2411
    %v2413 = vpop.f32.mrf.mxu0
    %2414 = vmatprep.mubr.f32.mxu0 0.0
    %2415 = vmatmul.mubr.f32.gmra.mxu0 %v2335
    %v2416 = vpop.f32.mrf.mxu0
    %v2417 = vadd.f32 0.0, %v2416
    %v2418 = vpop.f32.mrf.mxu0
    %2419 = vmatprep.mubr.f32.mxu0 0.0
    %2420 = vmatmul.mubr.f32.gmra.mxu0 %v2338
    %v2421 = vpop.f32.mrf.mxu0
    %v2422 = vadd.f32 0.0, %v2421
    %v2423 = vpop.f32.mrf.mxu0
    %2424 = vdwg.mxu0
    %v2425 = vld [vmem:[%s12] sm:$0xff]
    %v2426 = vld [vmem:[%s12 + $0x8] sm:$0xff]
    %v2427 = vld [vmem:[%s12 + $0x10] sm:$0xff]
    %v2428 = vld [vmem:[%s12 + $0x18] sm:$0xff]
    %v2429 = vld [vmem:[%s12 + $0x20] sm:$0xff]
    %v2430 = vld [vmem:[%s12 + $0x28] sm:$0xff]
    %v2431 = vld [vmem:[%s12 + $0x30] sm:$0xff]
    %v2432 = vld [vmem:[%s12 + $0x38] sm:$0xff]
    %v2433 = vld [vmem:[%s12 + $0x40] sm:$0xff]
    %v2434 = vld [vmem:[%s12 + $0x48] sm:$0xff]
    %v2435 = vld [vmem:[%s12 + $0x50] sm:$0xff]
    %v2436 = vld [vmem:[%s12 + $0x58] sm:$0xff]
    %v2437 = vld [vmem:[%s12 + $0x60] sm:$0xff]
    %v2438 = vld [vmem:[%s12 + $0x68] sm:$0xff]
    %v2439 = vld [vmem:[%s12 + $0x70] sm:$0xff]
    %v2440 = vld [vmem:[%s12 + $0x78] sm:$0xff]
    %s2441 = scalar_lea.vmem [#allocation12], 32
    %v2442 = vld [vmem:[%s2441] sm:$0xff]
    %v2443 = vld [vmem:[%s2441 + $0x8] sm:$0xff]
    %v2444 = vld [vmem:[%s2441 + $0x10] sm:$0xff]
    %v2445 = vld [vmem:[%s2441 + $0x18] sm:$0xff]
    %v2447 = vsel %vm2327, %v2442, 0
    %v2450 = vsel %vm2327, %v2443, 0
    %v2453 = vsel %vm2327, %v2444, 0
    %v2456 = vsel %vm2327, %v2445, 0
    %2458 = vmatprep.subr.mxu0 0.0
    %2459 = vmatpush1.msra.mxu0 0.0
    %2460 = vmatprep.subr.mxu0 0.0
    %2461 = vmatpush1.msra.mxu0 0.0
    %2462 = vmatprep.subr.mxu0 0.0
    %2463 = vmatpush1.msra.mxu0 0.0
    %2464 = vmatprep.subr.mxu0 0.0
    %2465 = vmatpush1.msra.mxu0 0.0
    %2466 = vmatprep.subr.mxu0 0.0
    %2467 = vmatpush1.msra.mxu0 0.0
    %2468 = vmatprep.subr.mxu0 0.0
    %2469 = vmatpush1.msra.mxu0 0.0
    %2470 = vmatprep.subr.mxu0 0.0
    %2471 = vmatpush1.msra.mxu0 0.0
    %2472 = vmatprep.subr.mxu0 0.0
    %2473 = vmatpush1.msra.mxu0 0.0
    %2474 = vmatprep.subr.mxu0 0.0
    %2475 = vmatpush1.msra.mxu0 %v2322
    %2476 = vmatprep.subr.mxu0 0.0
    %2477 = vmatpush1.msra.mxu0 %v2321
    %2478 = vmatprep.subr.mxu0 0.0
    %2479 = vmatpush1.msra.mxu0 %v2320
    %2480 = vmatprep.subr.mxu0 0.0
    %2481 = vmatpush1.msra.mxu0 %v2319
    %2482 = vmatprep.subr.mxu0 0.0
    %2483 = vmatpush1.msra.mxu0 %v2318
    %2484 = vmatprep.subr.mxu0 0.0
    %2485 = vmatpush1.msra.mxu0 %v2317
    %2486 = vmatprep.subr.mxu0 0.0
    %2487 = vmatpush1.msra.mxu0 %v2316
    %2488 = vmatprep.subr.mxu0 0.0
    %2489 = vmatpush1.msra.mxu0 %v2315
    %2490 = vmatprep.subr.mxu0 0.0
    %2491 = vmatpush2.msra.mxu0 0.0
    %2492 = vmatprep.subr.mxu0 0.0
    %2493 = vmatpush2.msra.mxu0 0.0
    %2494 = vmatprep.subr.mxu0 0.0
    %2495 = vmatpush2.msra.mxu0 0.0
    %2496 = vmatprep.subr.mxu0 0.0
    %2497 = vmatpush2.msra.mxu0 0.0
    %2498 = vmatprep.subr.mxu0 0.0
    %2499 = vmatpush2.msra.mxu0 0.0
    %2500 = vmatprep.subr.mxu0 0.0
    %2501 = vmatpush2.msra.mxu0 0.0
    %2502 = vmatprep.subr.mxu0 0.0
    %2503 = vmatpush2.msra.mxu0 0.0
    %2504 = vmatprep.subr.mxu0 0.0
    %2505 = vmatpush2.msra.mxu0 0.0
    %2506 = vmatprep.subr.mxu0 0.0
    %2507 = vmatpush2.msra.mxu0 0.0
    %2508 = vmatprep.subr.mxu0 0.0
    %2509 = vmatpush2.msra.mxu0 0.0
    %2510 = vmatprep.subr.mxu0 0.0
    %2511 = vmatpush2.msra.mxu0 0.0
    %2512 = vmatprep.subr.mxu0 0.0
    %2513 = vmatpush2.msra.mxu0 0.0
    %2514 = vmatprep.subr.mxu0 0.0
    %2515 = vmatpush2.msra.mxu0 0.0
    %2516 = vmatprep.subr.mxu0 0.0
    %2517 = vmatpush2.msra.mxu0 0.0
    %2518 = vmatprep.subr.mxu0 0.0
    %2519 = vmatpush2.msra.mxu0 0.0
    %2520 = vmatprep.subr.mxu0 0.0
    %2521 = vmatpush2.msra.mxu0 0.0
    %2522 = vmatprep.mubr.f32.mxu0 0.0
    %2523 = vmatmul.mubr.f32.gmra.mxu0 %v2447
    %v2524 = vpop.f32.mrf.mxu0
    %v2525 = vadd.f32 0.0, %v2524
    %v2526 = vpop.f32.mrf.mxu0
    %2527 = vmatprep.mubr.f32.mxu0 0.0
    %2528 = vmatmul.mubr.f32.gmra.mxu0 %v2450
    %v2529 = vpop.f32.mrf.mxu0
    %v2530 = vadd.f32 0.0, %v2529
    %v2531 = vpop.f32.mrf.mxu0
    %2532 = vmatprep.mubr.f32.mxu0 0.0
    %2533 = vmatmul.mubr.f32.gmra.mxu0 %v2453
    %v2534 = vpop.f32.mrf.mxu0
    %v2535 = vadd.f32 0.0, %v2534
    %v2536 = vpop.f32.mrf.mxu0
    %2537 = vmatprep.mubr.f32.mxu0 0.0
    %2538 = vmatmul.mubr.f32.gmra.mxu0 %v2456
    %v2539 = vpop.f32.mrf.mxu0
    %v2540 = vadd.f32 0.0, %v2539
    %v2541 = vpop.f32.mrf.mxu0
    %2542 = vdwg.mxu0
    %s2543 = scalar_lea.vmem %s12, 128
    %v2544 = vld [vmem:[%s2543] sm:$0xff]
    %v2545 = vld [vmem:[%s2543 + $0x8] sm:$0xff]
    %v2546 = vld [vmem:[%s2543 + $0x10] sm:$0xff]
    %v2547 = vld [vmem:[%s2543 + $0x18] sm:$0xff]
    %v2548 = vld [vmem:[%s2543 + $0x20] sm:$0xff]
    %v2549 = vld [vmem:[%s2543 + $0x28] sm:$0xff]
    %v2550 = vld [vmem:[%s2543 + $0x30] sm:$0xff]
    %v2551 = vld [vmem:[%s2543 + $0x38] sm:$0xff]
    %v2552 = vld [vmem:[%s2543 + $0x40] sm:$0xff]
    %v2553 = vld [vmem:[%s2543 + $0x48] sm:$0xff]
    %v2554 = vld [vmem:[%s2543 + $0x50] sm:$0xff]
    %v2555 = vld [vmem:[%s2543 + $0x58] sm:$0xff]
    %v2556 = vld [vmem:[%s2543 + $0x60] sm:$0xff]
    %v2557 = vld [vmem:[%s2543 + $0x68] sm:$0xff]
    %v2558 = vld [vmem:[%s2543 + $0x70] sm:$0xff]
    %v2559 = vld [vmem:[%s2543 + $0x78] sm:$0xff]
    %2560 = vmatprep.subr.mxu0 0.0
    %2561 = vmatpush1.msra.mxu0 %v2559
    %2562 = vmatprep.subr.mxu0 0.0
    %2563 = vmatpush1.msra.mxu0 %v2558
    %2564 = vmatprep.subr.mxu0 0.0
    %2565 = vmatpush1.msra.mxu0 %v2557
    %2566 = vmatprep.subr.mxu0 0.0
    %2567 = vmatpush1.msra.mxu0 %v2556
    %2568 = vmatprep.subr.mxu0 0.0
    %2569 = vmatpush1.msra.mxu0 %v2555
    %2570 = vmatprep.subr.mxu0 0.0
    %2571 = vmatpush1.msra.mxu0 %v2554
    %2572 = vmatprep.subr.mxu0 0.0
    %2573 = vmatpush1.msra.mxu0 %v2553
    %2574 = vmatprep.subr.mxu0 0.0
    %2575 = vmatpush1.msra.mxu0 %v2552
    %2576 = vmatprep.subr.mxu0 0.0
    %2577 = vmatpush1.msra.mxu0 %v2551
    %2578 = vmatprep.subr.mxu0 0.0
    %2579 = vmatpush1.msra.mxu0 %v2550
    %2580 = vmatprep.subr.mxu0 0.0
    %2581 = vmatpush1.msra.mxu0 %v2549
    %2582 = vmatprep.subr.mxu0 0.0
    %2583 = vmatpush1.msra.mxu0 %v2548
    %2584 = vmatprep.subr.mxu0 0.0
    %2585 = vmatpush1.msra.mxu0 %v2547
    %2586 = vmatprep.subr.mxu0 0.0
    %2587 = vmatpush1.msra.mxu0 %v2546
    %2588 = vmatprep.subr.mxu0 0.0
    %2589 = vmatpush1.msra.mxu0 %v2545
    %2590 = vmatprep.subr.mxu0 0.0
    %2591 = vmatpush1.msra.mxu0 %v2544
    %2592 = vmatprep.subr.mxu0 0.0
    %2593 = vmatpush2.msra.mxu0 0.0
    %2594 = vmatprep.subr.mxu0 0.0
    %2595 = vmatpush2.msra.mxu0 0.0
    %2596 = vmatprep.subr.mxu0 0.0
    %2597 = vmatpush2.msra.mxu0 0.0
    %2598 = vmatprep.subr.mxu0 0.0
    %2599 = vmatpush2.msra.mxu0 0.0
    %2600 = vmatprep.subr.mxu0 0.0
    %2601 = vmatpush2.msra.mxu0 0.0
    %2602 = vmatprep.subr.mxu0 0.0
    %2603 = vmatpush2.msra.mxu0 0.0
    %2604 = vmatprep.subr.mxu0 0.0
    %2605 = vmatpush2.msra.mxu0 0.0
    %2606 = vmatprep.subr.mxu0 0.0
    %2607 = vmatpush2.msra.mxu0 0.0
    %2608 = vmatprep.subr.mxu0 0.0
    %2609 = vmatpush2.msra.mxu0 0.0
    %2610 = vmatprep.subr.mxu0 0.0
    %2611 = vmatpush2.msra.mxu0 0.0
    %2612 = vmatprep.subr.mxu0 0.0
    %2613 = vmatpush2.msra.mxu0 0.0
    %2614 = vmatprep.subr.mxu0 0.0
    %2615 = vmatpush2.msra.mxu0 0.0
    %2616 = vmatprep.subr.mxu0 0.0
    %2617 = vmatpush2.msra.mxu0 0.0
    %2618 = vmatprep.subr.mxu0 0.0
    %2619 = vmatpush2.msra.mxu0 0.0
    %2620 = vmatprep.subr.mxu0 0.0
    %2621 = vmatpush2.msra.mxu0 0.0
    %2622 = vmatprep.subr.mxu0 0.0
    %2623 = vmatpush2.msra.mxu0 0.0
    %2624 = vmatprep.mubr.f32.mxu0 0.0
    %2625 = vmatmul.mubr.f32.gmra.mxu0 %v2525
    %v2626 = vpop.f32.mrf.mxu0
    %v2627 = vadd.f32 0.0, %v2626
    %v2628 = vpop.f32.mrf.mxu0
    %2629 = vmatprep.mubr.f32.mxu0 0.0
    %2630 = vmatmul.mubr.f32.gmra.mxu0 %v2530
    %v2631 = vpop.f32.mrf.mxu0
    %v2632 = vadd.f32 0.0, %v2631
    %v2633 = vpop.f32.mrf.mxu0
    %2634 = vmatprep.mubr.f32.mxu0 0.0
    %2635 = vmatmul.mubr.f32.gmra.mxu0 %v2535
    %v2636 = vpop.f32.mrf.mxu0
    %v2637 = vadd.f32 0.0, %v2636
    %v2638 = vpop.f32.mrf.mxu0
    %2639 = vmatprep.mubr.f32.mxu0 0.0
    %2640 = vmatmul.mubr.f32.gmra.mxu0 %v2540
    %v2641 = vpop.f32.mrf.mxu0
    %v2642 = vadd.f32 0.0, %v2641
    %v2643 = vpop.f32.mrf.mxu0
    %2644 = vdwg.mxu0
    %2645 = vmatprep.subr.mxu0 0.0
    %2646 = vmatpush1.msra.mxu0 %v2440
    %2647 = vmatprep.subr.mxu0 0.0
    %2648 = vmatpush1.msra.mxu0 %v2439
    %2649 = vmatprep.subr.mxu0 0.0
    %2650 = vmatpush1.msra.mxu0 %v2438
    %2651 = vmatprep.subr.mxu0 0.0
    %2652 = vmatpush1.msra.mxu0 %v2437
    %2653 = vmatprep.subr.mxu0 0.0
    %2654 = vmatpush1.msra.mxu0 %v2436
    %2655 = vmatprep.subr.mxu0 0.0
    %2656 = vmatpush1.msra.mxu0 %v2435
    %2657 = vmatprep.subr.mxu0 0.0
    %2658 = vmatpush1.msra.mxu0 %v2434
    %2659 = vmatprep.subr.mxu0 0.0
    %2660 = vmatpush1.msra.mxu0 %v2433
    %2661 = vmatprep.subr.mxu0 0.0
    %2662 = vmatpush1.msra.mxu0 %v2432
    %2663 = vmatprep.subr.mxu0 0.0
    %2664 = vmatpush1.msra.mxu0 %v2431
    %2665 = vmatprep.subr.mxu0 0.0
    %2666 = vmatpush1.msra.mxu0 %v2430
    %2667 = vmatprep.subr.mxu0 0.0
    %2668 = vmatpush1.msra.mxu0 %v2429
    %2669 = vmatprep.subr.mxu0 0.0
    %2670 = vmatpush1.msra.mxu0 %v2428
    %2671 = vmatprep.subr.mxu0 0.0
    %2672 = vmatpush1.msra.mxu0 %v2427
    %2673 = vmatprep.subr.mxu0 0.0
    %2674 = vmatpush1.msra.mxu0 %v2426
    %2675 = vmatprep.subr.mxu0 0.0
    %2676 = vmatpush1.msra.mxu0 %v2425
    %2677 = vmatprep.subr.mxu0 0.0
    %2678 = vmatpush2.msra.mxu0 0.0
    %2679 = vmatprep.subr.mxu0 0.0
    %2680 = vmatpush2.msra.mxu0 0.0
    %2681 = vmatprep.subr.mxu0 0.0
    %2682 = vmatpush2.msra.mxu0 0.0
    %2683 = vmatprep.subr.mxu0 0.0
    %2684 = vmatpush2.msra.mxu0 0.0
    %2685 = vmatprep.subr.mxu0 0.0
    %2686 = vmatpush2.msra.mxu0 0.0
    %2687 = vmatprep.subr.mxu0 0.0
    %2688 = vmatpush2.msra.mxu0 0.0
    %2689 = vmatprep.subr.mxu0 0.0
    %2690 = vmatpush2.msra.mxu0 0.0
    %2691 = vmatprep.subr.mxu0 0.0
    %2692 = vmatpush2.msra.mxu0 0.0
    %2693 = vmatprep.subr.mxu0 0.0
    %2694 = vmatpush2.msra.mxu0 0.0
    %2695 = vmatprep.subr.mxu0 0.0
    %2696 = vmatpush2.msra.mxu0 0.0
    %2697 = vmatprep.subr.mxu0 0.0
    %2698 = vmatpush2.msra.mxu0 0.0
    %2699 = vmatprep.subr.mxu0 0.0
    %2700 = vmatpush2.msra.mxu0 0.0
    %2701 = vmatprep.subr.mxu0 0.0
    %2702 = vmatpush2.msra.mxu0 0.0
    %2703 = vmatprep.subr.mxu0 0.0
    %2704 = vmatpush2.msra.mxu0 0.0
    %2705 = vmatprep.subr.mxu0 0.0
    %2706 = vmatpush2.msra.mxu0 0.0
    %2707 = vmatprep.subr.mxu0 0.0
    %2708 = vmatpush2.msra.mxu0 0.0
    %2709 = vmatprep.mubr.f32.mxu0 0.0
    %2710 = vmatmul.mubr.f32.gmra.mxu0 %v2407
    %v2711 = vpop.f32.mrf.mxu0
    %v2712 = vadd.f32 %v2627, %v2711
    %v2713 = vpop.f32.mrf.mxu0
    %2714 = vmatprep.mubr.f32.mxu0 0.0
    %2715 = vmatmul.mubr.f32.gmra.mxu0 %v2412
    %v2716 = vpop.f32.mrf.mxu0
    %v2717 = vadd.f32 %v2632, %v2716
    %v2718 = vpop.f32.mrf.mxu0
    %2719 = vmatprep.mubr.f32.mxu0 0.0
    %2720 = vmatmul.mubr.f32.gmra.mxu0 %v2417
    %v2721 = vpop.f32.mrf.mxu0
    %v2722 = vadd.f32 %v2637, %v2721
    %v2723 = vpop.f32.mrf.mxu0
    %2724 = vmatprep.mubr.f32.mxu0 0.0
    %2725 = vmatmul.mubr.f32.gmra.mxu0 %v2422
    %v2726 = vpop.f32.mrf.mxu0
    %v2727 = vadd.f32 %v2642, %v2726
    %v2728 = vpop.f32.mrf.mxu0
    %2729 = vdwg.mxu0
    %s2730 = scalar_lea.vmem [#allocation12], 64
    %v2731 = vld [vmem:[%s2730] sm:$0xff]
    %v2732 = vld [vmem:[%s2730 + $0x8] sm:$0xff]
    %v2733 = vld [vmem:[%s2730 + $0x10] sm:$0xff]
    %v2734 = vld [vmem:[%s2730 + $0x18] sm:$0xff]
    %v2736 = vsel %vm2327, %v2731, 0
    %v2739 = vsel %vm2327, %v2732, 0
    %v2742 = vsel %vm2327, %v2733, 0
    %v2745 = vsel %vm2327, %v2734, 0
    %2747 = vmatprep.subr.mxu0 0.0
    %2748 = vmatpush1.msra.mxu0 0.0
    %2749 = vmatprep.subr.mxu0 0.0
    %2750 = vmatpush1.msra.mxu0 0.0
    %2751 = vmatprep.subr.mxu0 0.0
    %2752 = vmatpush1.msra.mxu0 0.0
    %2753 = vmatprep.subr.mxu0 0.0
    %2754 = vmatpush1.msra.mxu0 0.0
    %2755 = vmatprep.subr.mxu0 0.0
    %2756 = vmatpush1.msra.mxu0 0.0
    %2757 = vmatprep.subr.mxu0 0.0
    %2758 = vmatpush1.msra.mxu0 0.0
    %2759 = vmatprep.subr.mxu0 0.0
    %2760 = vmatpush1.msra.mxu0 0.0
    %2761 = vmatprep.subr.mxu0 0.0
    %2762 = vmatpush1.msra.mxu0 0.0
    %2763 = vmatprep.subr.mxu0 0.0
    %2764 = vmatpush1.msra.mxu0 %v2322
    %2765 = vmatprep.subr.mxu0 0.0
    %2766 = vmatpush1.msra.mxu0 %v2321
    %2767 = vmatprep.subr.mxu0 0.0
    %2768 = vmatpush1.msra.mxu0 %v2320
    %2769 = vmatprep.subr.mxu0 0.0
    %2770 = vmatpush1.msra.mxu0 %v2319
    %2771 = vmatprep.subr.mxu0 0.0
    %2772 = vmatpush1.msra.mxu0 %v2318
    %2773 = vmatprep.subr.mxu0 0.0
    %2774 = vmatpush1.msra.mxu0 %v2317
    %2775 = vmatprep.subr.mxu0 0.0
    %2776 = vmatpush1.msra.mxu0 %v2316
    %2777 = vmatprep.subr.mxu0 0.0
    %2778 = vmatpush1.msra.mxu0 %v2315
    %2779 = vmatprep.subr.mxu0 0.0
    %2780 = vmatpush2.msra.mxu0 0.0
    %2781 = vmatprep.subr.mxu0 0.0
    %2782 = vmatpush2.msra.mxu0 0.0
    %2783 = vmatprep.subr.mxu0 0.0
    %2784 = vmatpush2.msra.mxu0 0.0
    %2785 = vmatprep.subr.mxu0 0.0
    %2786 = vmatpush2.msra.mxu0 0.0
    %2787 = vmatprep.subr.mxu0 0.0
    %2788 = vmatpush2.msra.mxu0 0.0
    %2789 = vmatprep.subr.mxu0 0.0
    %2790 = vmatpush2.msra.mxu0 0.0
    %2791 = vmatprep.subr.mxu0 0.0
    %2792 = vmatpush2.msra.mxu0 0.0
    %2793 = vmatprep.subr.mxu0 0.0
    %2794 = vmatpush2.msra.mxu0 0.0
    %2795 = vmatprep.subr.mxu0 0.0
    %2796 = vmatpush2.msra.mxu0 0.0
    %2797 = vmatprep.subr.mxu0 0.0
    %2798 = vmatpush2.msra.mxu0 0.0
    %2799 = vmatprep.subr.mxu0 0.0
    %2800 = vmatpush2.msra.mxu0 0.0
    %2801 = vmatprep.subr.mxu0 0.0
    %2802 = vmatpush2.msra.mxu0 0.0
    %2803 = vmatprep.subr.mxu0 0.0
    %2804 = vmatpush2.msra.mxu0 0.0
    %2805 = vmatprep.subr.mxu0 0.0
    %2806 = vmatpush2.msra.mxu0 0.0
    %2807 = vmatprep.subr.mxu0 0.0
    %2808 = vmatpush2.msra.mxu0 0.0
    %2809 = vmatprep.subr.mxu0 0.0
    %2810 = vmatpush2.msra.mxu0 0.0
    %2811 = vmatprep.mubr.f32.mxu0 0.0
    %2812 = vmatmul.mubr.f32.gmra.mxu0 %v2736
    %v2813 = vpop.f32.mrf.mxu0
    %v2814 = vadd.f32 0.0, %v2813
    %v2815 = vpop.f32.mrf.mxu0
    %2816 = vmatprep.mubr.f32.mxu0 0.0
    %2817 = vmatmul.mubr.f32.gmra.mxu0 %v2739
    %v2818 = vpop.f32.mrf.mxu0
    %v2819 = vadd.f32 0.0, %v2818
    %v2820 = vpop.f32.mrf.mxu0
    %2821 = vmatprep.mubr.f32.mxu0 0.0
    %2822 = vmatmul.mubr.f32.gmra.mxu0 %v2742
    %v2823 = vpop.f32.mrf.mxu0
    %v2824 = vadd.f32 0.0, %v2823
    %v2825 = vpop.f32.mrf.mxu0
    %2826 = vmatprep.mubr.f32.mxu0 0.0
    %2827 = vmatmul.mubr.f32.gmra.mxu0 %v2745
    %v2828 = vpop.f32.mrf.mxu0
    %v2829 = vadd.f32 0.0, %v2828
    %v2830 = vpop.f32.mrf.mxu0
    %2831 = vdwg.mxu0
    %s2832 = scalar_lea.vmem %s12, 256
    %v2833 = vld [vmem:[%s2832] sm:$0xff]
    %v2834 = vld [vmem:[%s2832 + $0x8] sm:$0xff]
    %v2835 = vld [vmem:[%s2832 + $0x10] sm:$0xff]
    %v2836 = vld [vmem:[%s2832 + $0x18] sm:$0xff]
    %v2837 = vld [vmem:[%s2832 + $0x20] sm:$0xff]
    %v2838 = vld [vmem:[%s2832 + $0x28] sm:$0xff]
    %v2839 = vld [vmem:[%s2832 + $0x30] sm:$0xff]
    %v2840 = vld [vmem:[%s2832 + $0x38] sm:$0xff]
    %v2841 = vld [vmem:[%s2832 + $0x40] sm:$0xff]
    %v2842 = vld [vmem:[%s2832 + $0x48] sm:$0xff]
    %v2843 = vld [vmem:[%s2832 + $0x50] sm:$0xff]
    %v2844 = vld [vmem:[%s2832 + $0x58] sm:$0xff]
    %v2845 = vld [vmem:[%s2832 + $0x60] sm:$0xff]
    %v2846 = vld [vmem:[%s2832 + $0x68] sm:$0xff]
    %v2847 = vld [vmem:[%s2832 + $0x70] sm:$0xff]
    %v2848 = vld [vmem:[%s2832 + $0x78] sm:$0xff]
    %2849 = vmatprep.subr.mxu0 0.0
    %2850 = vmatpush1.msra.mxu0 %v2848
    %2851 = vmatprep.subr.mxu0 0.0
    %2852 = vmatpush1.msra.mxu0 %v2847
    %2853 = vmatprep.subr.mxu0 0.0
    %2854 = vmatpush1.msra.mxu0 %v2846
    %2855 = vmatprep.subr.mxu0 0.0
    %2856 = vmatpush1.msra.mxu0 %v2845
    %2857 = vmatprep.subr.mxu0 0.0
    %2858 = vmatpush1.msra.mxu0 %v2844
    %2859 = vmatprep.subr.mxu0 0.0
    %2860 = vmatpush1.msra.mxu0 %v2843
    %2861 = vmatprep.subr.mxu0 0.0
    %2862 = vmatpush1.msra.mxu0 %v2842
    %2863 = vmatprep.subr.mxu0 0.0
    %2864 = vmatpush1.msra.mxu0 %v2841
    %2865 = vmatprep.subr.mxu0 0.0
    %2866 = vmatpush1.msra.mxu0 %v2840
    %2867 = vmatprep.subr.mxu0 0.0
    %2868 = vmatpush1.msra.mxu0 %v2839
    %2869 = vmatprep.subr.mxu0 0.0
    %2870 = vmatpush1.msra.mxu0 %v2838
    %2871 = vmatprep.subr.mxu0 0.0
    %2872 = vmatpush1.msra.mxu0 %v2837
    %2873 = vmatprep.subr.mxu0 0.0
    %2874 = vmatpush1.msra.mxu0 %v2836
    %2875 = vmatprep.subr.mxu0 0.0
    %2876 = vmatpush1.msra.mxu0 %v2835
    %2877 = vmatprep.subr.mxu0 0.0
    %2878 = vmatpush1.msra.mxu0 %v2834
    %2879 = vmatprep.subr.mxu0 0.0
    %2880 = vmatpush1.msra.mxu0 %v2833
    %2881 = vmatprep.subr.mxu0 0.0
    %2882 = vmatpush2.msra.mxu0 0.0
    %2883 = vmatprep.subr.mxu0 0.0
    %2884 = vmatpush2.msra.mxu0 0.0
    %2885 = vmatprep.subr.mxu0 0.0
    %2886 = vmatpush2.msra.mxu0 0.0
    %2887 = vmatprep.subr.mxu0 0.0
    %2888 = vmatpush2.msra.mxu0 0.0
    %2889 = vmatprep.subr.mxu0 0.0
    %2890 = vmatpush2.msra.mxu0 0.0
    %2891 = vmatprep.subr.mxu0 0.0
    %2892 = vmatpush2.msra.mxu0 0.0
    %2893 = vmatprep.subr.mxu0 0.0
    %2894 = vmatpush2.msra.mxu0 0.0
    %2895 = vmatprep.subr.mxu0 0.0
    %2896 = vmatpush2.msra.mxu0 0.0
    %2897 = vmatprep.subr.mxu0 0.0
    %2898 = vmatpush2.msra.mxu0 0.0
    %2899 = vmatprep.subr.mxu0 0.0
    %2900 = vmatpush2.msra.mxu0 0.0
    %2901 = vmatprep.subr.mxu0 0.0
    %2902 = vmatpush2.msra.mxu0 0.0
    %2903 = vmatprep.subr.mxu0 0.0
    %2904 = vmatpush2.msra.mxu0 0.0
    %2905 = vmatprep.subr.mxu0 0.0
    %2906 = vmatpush2.msra.mxu0 0.0
    %2907 = vmatprep.subr.mxu0 0.0
    %2908 = vmatpush2.msra.mxu0 0.0
    %2909 = vmatprep.subr.mxu0 0.0
    %2910 = vmatpush2.msra.mxu0 0.0
    %2911 = vmatprep.subr.mxu0 0.0
    %2912 = vmatpush2.msra.mxu0 0.0
    %2913 = vmatprep.mubr.f32.mxu0 0.0
    %2914 = vmatmul.mubr.f32.gmra.mxu0 %v2814
    %v2915 = vpop.f32.mrf.mxu0
    %v2916 = vadd.f32 0.0, %v2915
    %v2917 = vpop.f32.mrf.mxu0
    %2918 = vmatprep.mubr.f32.mxu0 0.0
    %2919 = vmatmul.mubr.f32.gmra.mxu0 %v2819
    %v2920 = vpop.f32.mrf.mxu0
    %v2921 = vadd.f32 0.0, %v2920
    %v2922 = vpop.f32.mrf.mxu0
    %2923 = vmatprep.mubr.f32.mxu0 0.0
    %2924 = vmatmul.mubr.f32.gmra.mxu0 %v2824
    %v2925 = vpop.f32.mrf.mxu0
    %v2926 = vadd.f32 0.0, %v2925
    %v2927 = vpop.f32.mrf.mxu0
    %2928 = vmatprep.mubr.f32.mxu0 0.0
    %2929 = vmatmul.mubr.f32.gmra.mxu0 %v2829
    %v2930 = vpop.f32.mrf.mxu0
    %v2931 = vadd.f32 0.0, %v2930
    %v2932 = vpop.f32.mrf.mxu0
    %2933 = vdwg.mxu0
    %v2934 = vadd.f32 %v2712, %v2916
    %v2935 = vadd.f32 %v2717, %v2921
    %v2936 = vadd.f32 %v2722, %v2926
    %v2937 = vadd.f32 %v2727, %v2931
    %v2938 = vld [vmem:[#allocation13] sm:$0x1]
    %v2940 = vlaneseq
    %v2941 = vshrl.u32 %v2940, 7
    %v2942 = vsub.s32 0, %v2941
    %v2943 = vrot.slane %v2938, %v2942
    %v2945 = vadd.f32 %v2934, %v2943
    %v2946 = vadd.f32 %v2935, %v2943
    %v2947 = vadd.f32 %v2936, %v2943
    %v2948 = vadd.f32 %v2937, %v2943
    %v2949 = vmax.f32 %v2945, 0.0
    %v2950 = vmax.f32 %v2946, 0.0
    %v2951 = vmax.f32 %v2947, 0.0
    %v2952 = vmax.f32 %v2948, 0.0
    %v2953 = vld [vmem:[#allocation15] sm:$0xff]
    %v2954 = vld [vmem:[#allocation15 + $0x8] sm:$0xff]
    %v2956 = vsel %vm239, %v2953, 0
    %v2959 = vsel %vm239, %v2954, 0
    %2961 = vmatprep.subr.mxu0 0.0
    %2962 = vmatpush1.msra.mxu0 0.0
    %2963 = vmatprep.subr.mxu0 0.0
    %2964 = vmatpush1.msra.mxu0 0.0
    %2965 = vmatprep.subr.mxu0 0.0
    %2966 = vmatpush1.msra.mxu0 0.0
    %2967 = vmatprep.subr.mxu0 0.0
    %2968 = vmatpush1.msra.mxu0 0.0
    %2969 = vmatprep.subr.mxu0 0.0
    %2970 = vmatpush1.msra.mxu0 0.0
    %2971 = vmatprep.subr.mxu0 0.0
    %2972 = vmatpush1.msra.mxu0 0.0
    %2973 = vmatprep.subr.mxu0 0.0
    %2974 = vmatpush1.msra.mxu0 0.0
    %2975 = vmatprep.subr.mxu0 0.0
    %2976 = vmatpush1.msra.mxu0 0.0
    %2977 = vmatprep.subr.mxu0 0.0
    %2978 = vmatpush1.msra.mxu0 0.0
    %2979 = vmatprep.subr.mxu0 0.0
    %2980 = vmatpush1.msra.mxu0 0.0
    %2981 = vmatprep.subr.mxu0 0.0
    %2982 = vmatpush1.msra.mxu0 0.0
    %2983 = vmatprep.subr.mxu0 0.0
    %2984 = vmatpush1.msra.mxu0 0.0
    %2985 = vmatprep.subr.mxu0 0.0
    %2986 = vmatpush1.msra.mxu0 %v2952
    %2987 = vmatprep.subr.mxu0 0.0
    %2988 = vmatpush1.msra.mxu0 %v2951
    %2989 = vmatprep.subr.mxu0 0.0
    %2990 = vmatpush1.msra.mxu0 %v2950
    %2991 = vmatprep.subr.mxu0 0.0
    %2992 = vmatpush1.msra.mxu0 %v2949
    %2993 = vmatprep.subr.mxu0 0.0
    %2994 = vmatpush2.msra.mxu0 0.0
    %2995 = vmatprep.subr.mxu0 0.0
    %2996 = vmatpush2.msra.mxu0 0.0
    %2997 = vmatprep.subr.mxu0 0.0
    %2998 = vmatpush2.msra.mxu0 0.0
    %2999 = vmatprep.subr.mxu0 0.0
    %3000 = vmatpush2.msra.mxu0 0.0
    %3001 = vmatprep.subr.mxu0 0.0
    %3002 = vmatpush2.msra.mxu0 0.0
    %3003 = vmatprep.subr.mxu0 0.0
    %3004 = vmatpush2.msra.mxu0 0.0
    %3005 = vmatprep.subr.mxu0 0.0
    %3006 = vmatpush2.msra.mxu0 0.0
    %3007 = vmatprep.subr.mxu0 0.0
    %3008 = vmatpush2.msra.mxu0 0.0
    %3009 = vmatprep.subr.mxu0 0.0
    %3010 = vmatpush2.msra.mxu0 0.0
    %3011 = vmatprep.subr.mxu0 0.0
    %3012 = vmatpush2.msra.mxu0 0.0
    %3013 = vmatprep.subr.mxu0 0.0
    %3014 = vmatpush2.msra.mxu0 0.0
    %3015 = vmatprep.subr.mxu0 0.0
    %3016 = vmatpush2.msra.mxu0 0.0
    %3017 = vmatprep.subr.mxu0 0.0
    %3018 = vmatpush2.msra.mxu0 0.0
    %3019 = vmatprep.subr.mxu0 0.0
    %3020 = vmatpush2.msra.mxu0 0.0
    %3021 = vmatprep.subr.mxu0 0.0
    %3022 = vmatpush2.msra.mxu0 0.0
    %3023 = vmatprep.subr.mxu0 0.0
    %3024 = vmatpush2.msra.mxu0 0.0
    %3025 = vmatprep.mubr.f32.mxu0 0.0
    %3026 = vmatmul.mubr.f32.gmra.mxu0 %v2956
    %v3027 = vpop.f32.mrf.mxu0
    %v3028 = vadd.f32 0.0, %v3027
    %v3029 = vpop.f32.mrf.mxu0
    %3030 = vmatprep.mubr.f32.mxu0 0.0
    %3031 = vmatmul.mubr.f32.gmra.mxu0 %v2959
    %v3032 = vpop.f32.mrf.mxu0
    %v3033 = vadd.f32 0.0, %v3032
    %v3034 = vpop.f32.mrf.mxu0
    %3035 = vdwg.mxu0
    %v3036 = vld [vmem:[#allocation16] sm:$0xff]
    %v3037 = vld [vmem:[#allocation16 + $0x8] sm:$0xff]
    %v3038 = vld [vmem:[#allocation16 + $0x10] sm:$0xff]
    %v3039 = vld [vmem:[#allocation16 + $0x18] sm:$0xff]
    %v3040 = vld [vmem:[#allocation16 + $0x20] sm:$0xff]
    %v3041 = vld [vmem:[#allocation16 + $0x28] sm:$0xff]
    %v3042 = vld [vmem:[#allocation16 + $0x30] sm:$0xff]
    %v3043 = vld [vmem:[#allocation16 + $0x38] sm:$0xff]
    %v3044 = vld [vmem:[#allocation16 + $0x40] sm:$0xff]
    %v3045 = vld [vmem:[#allocation16 + $0x48] sm:$0xff]
    %v3046 = vld [vmem:[#allocation16 + $0x50] sm:$0xff]
    %v3047 = vld [vmem:[#allocation16 + $0x58] sm:$0xff]
    %v3048 = vld [vmem:[#allocation16 + $0x60] sm:$0xff]
    %v3049 = vld [vmem:[#allocation16 + $0x68] sm:$0xff]
    %v3050 = vld [vmem:[#allocation16 + $0x70] sm:$0xff]
    %v3051 = vld [vmem:[#allocation16 + $0x78] sm:$0xff]
    %s3052 = scalar_lea.vmem [#allocation15], 16
    %v3053 = vld [vmem:[%s3052] sm:$0xff]
    %v3054 = vld [vmem:[%s3052 + $0x8] sm:$0xff]
    %v3056 = vsel %vm239, %v3053, 0
    %v3059 = vsel %vm239, %v3054, 0
    %3061 = vmatprep.subr.mxu0 0.0
    %3062 = vmatpush1.msra.mxu0 0.0
    %3063 = vmatprep.subr.mxu0 0.0
    %3064 = vmatpush1.msra.mxu0 0.0
    %3065 = vmatprep.subr.mxu0 0.0
    %3066 = vmatpush1.msra.mxu0 0.0
    %3067 = vmatprep.subr.mxu0 0.0
    %3068 = vmatpush1.msra.mxu0 0.0
    %3069 = vmatprep.subr.mxu0 0.0
    %3070 = vmatpush1.msra.mxu0 0.0
    %3071 = vmatprep.subr.mxu0 0.0
    %3072 = vmatpush1.msra.mxu0 0.0
    %3073 = vmatprep.subr.mxu0 0.0
    %3074 = vmatpush1.msra.mxu0 0.0
    %3075 = vmatprep.subr.mxu0 0.0
    %3076 = vmatpush1.msra.mxu0 0.0
    %3077 = vmatprep.subr.mxu0 0.0
    %3078 = vmatpush1.msra.mxu0 0.0
    %3079 = vmatprep.subr.mxu0 0.0
    %3080 = vmatpush1.msra.mxu0 0.0
    %3081 = vmatprep.subr.mxu0 0.0
    %3082 = vmatpush1.msra.mxu0 0.0
    %3083 = vmatprep.subr.mxu0 0.0
    %3084 = vmatpush1.msra.mxu0 0.0
    %3085 = vmatprep.subr.mxu0 0.0
    %3086 = vmatpush1.msra.mxu0 %v2952
    %3087 = vmatprep.subr.mxu0 0.0
    %3088 = vmatpush1.msra.mxu0 %v2951
    %3089 = vmatprep.subr.mxu0 0.0
    %3090 = vmatpush1.msra.mxu0 %v2950
    %3091 = vmatprep.subr.mxu0 0.0
    %3092 = vmatpush1.msra.mxu0 %v2949
    %3093 = vmatprep.subr.mxu0 0.0
    %3094 = vmatpush2.msra.mxu0 0.0
    %3095 = vmatprep.subr.mxu0 0.0
    %3096 = vmatpush2.msra.mxu0 0.0
    %3097 = vmatprep.subr.mxu0 0.0
    %3098 = vmatpush2.msra.mxu0 0.0
    %3099 = vmatprep.subr.mxu0 0.0
    %3100 = vmatpush2.msra.mxu0 0.0
    %3101 = vmatprep.subr.mxu0 0.0
    %3102 = vmatpush2.msra.mxu0 0.0
    %3103 = vmatprep.subr.mxu0 0.0
    %3104 = vmatpush2.msra.mxu0 0.0
    %3105 = vmatprep.subr.mxu0 0.0
    %3106 = vmatpush2.msra.mxu0 0.0
    %3107 = vmatprep.subr.mxu0 0.0
    %3108 = vmatpush2.msra.mxu0 0.0
    %3109 = vmatprep.subr.mxu0 0.0
    %3110 = vmatpush2.msra.mxu0 0.0
    %3111 = vmatprep.subr.mxu0 0.0
    %3112 = vmatpush2.msra.mxu0 0.0
    %3113 = vmatprep.subr.mxu0 0.0
    %3114 = vmatpush2.msra.mxu0 0.0
    %3115 = vmatprep.subr.mxu0 0.0
    %3116 = vmatpush2.msra.mxu0 0.0
    %3117 = vmatprep.subr.mxu0 0.0
    %3118 = vmatpush2.msra.mxu0 0.0
    %3119 = vmatprep.subr.mxu0 0.0
    %3120 = vmatpush2.msra.mxu0 0.0
    %3121 = vmatprep.subr.mxu0 0.0
    %3122 = vmatpush2.msra.mxu0 0.0
    %3123 = vmatprep.subr.mxu0 0.0
    %3124 = vmatpush2.msra.mxu0 0.0
    %3125 = vmatprep.mubr.f32.mxu0 0.0
    %3126 = vmatmul.mubr.f32.gmra.mxu0 %v3056
    %v3127 = vpop.f32.mrf.mxu0
    %v3128 = vadd.f32 0.0, %v3127
    %v3129 = vpop.f32.mrf.mxu0
    %3130 = vmatprep.mubr.f32.mxu0 0.0
    %3131 = vmatmul.mubr.f32.gmra.mxu0 %v3059
    %v3132 = vpop.f32.mrf.mxu0
    %v3133 = vadd.f32 0.0, %v3132
    %v3134 = vpop.f32.mrf.mxu0
    %3135 = vdwg.mxu0
    %s3136 = scalar_lea.vmem [#allocation16], 128
    %v3137 = vld [vmem:[%s3136] sm:$0xff]
    %v3138 = vld [vmem:[%s3136 + $0x8] sm:$0xff]
    %v3139 = vld [vmem:[%s3136 + $0x10] sm:$0xff]
    %v3140 = vld [vmem:[%s3136 + $0x18] sm:$0xff]
    %v3141 = vld [vmem:[%s3136 + $0x20] sm:$0xff]
    %v3142 = vld [vmem:[%s3136 + $0x28] sm:$0xff]
    %v3143 = vld [vmem:[%s3136 + $0x30] sm:$0xff]
    %v3144 = vld [vmem:[%s3136 + $0x38] sm:$0xff]
    %v3145 = vld [vmem:[%s3136 + $0x40] sm:$0xff]
    %v3146 = vld [vmem:[%s3136 + $0x48] sm:$0xff]
    %v3147 = vld [vmem:[%s3136 + $0x50] sm:$0xff]
    %v3148 = vld [vmem:[%s3136 + $0x58] sm:$0xff]
    %v3149 = vld [vmem:[%s3136 + $0x60] sm:$0xff]
    %v3150 = vld [vmem:[%s3136 + $0x68] sm:$0xff]
    %v3151 = vld [vmem:[%s3136 + $0x70] sm:$0xff]
    %v3152 = vld [vmem:[%s3136 + $0x78] sm:$0xff]
    %3153 = vmatprep.subr.mxu0 0.0
    %3154 = vmatpush1.msra.mxu0 %v3152
    %3155 = vmatprep.subr.mxu0 0.0
    %3156 = vmatpush1.msra.mxu0 %v3151
    %3157 = vmatprep.subr.mxu0 0.0
    %3158 = vmatpush1.msra.mxu0 %v3150
    %3159 = vmatprep.subr.mxu0 0.0
    %3160 = vmatpush1.msra.mxu0 %v3149
    %3161 = vmatprep.subr.mxu0 0.0
    %3162 = vmatpush1.msra.mxu0 %v3148
    %3163 = vmatprep.subr.mxu0 0.0
    %3164 = vmatpush1.msra.mxu0 %v3147
    %3165 = vmatprep.subr.mxu0 0.0
    %3166 = vmatpush1.msra.mxu0 %v3146
    %3167 = vmatprep.subr.mxu0 0.0
    %3168 = vmatpush1.msra.mxu0 %v3145
    %3169 = vmatprep.subr.mxu0 0.0
    %3170 = vmatpush1.msra.mxu0 %v3144
    %3171 = vmatprep.subr.mxu0 0.0
    %3172 = vmatpush1.msra.mxu0 %v3143
    %3173 = vmatprep.subr.mxu0 0.0
    %3174 = vmatpush1.msra.mxu0 %v3142
    %3175 = vmatprep.subr.mxu0 0.0
    %3176 = vmatpush1.msra.mxu0 %v3141
    %3177 = vmatprep.subr.mxu0 0.0
    %3178 = vmatpush1.msra.mxu0 %v3140
    %3179 = vmatprep.subr.mxu0 0.0
    %3180 = vmatpush1.msra.mxu0 %v3139
    %3181 = vmatprep.subr.mxu0 0.0
    %3182 = vmatpush1.msra.mxu0 %v3138
    %3183 = vmatprep.subr.mxu0 0.0
    %3184 = vmatpush1.msra.mxu0 %v3137
    %3185 = vmatprep.subr.mxu0 0.0
    %3186 = vmatpush2.msra.mxu0 0.0
    %3187 = vmatprep.subr.mxu0 0.0
    %3188 = vmatpush2.msra.mxu0 0.0
    %3189 = vmatprep.subr.mxu0 0.0
    %3190 = vmatpush2.msra.mxu0 0.0
    %3191 = vmatprep.subr.mxu0 0.0
    %3192 = vmatpush2.msra.mxu0 0.0
    %3193 = vmatprep.subr.mxu0 0.0
    %3194 = vmatpush2.msra.mxu0 0.0
    %3195 = vmatprep.subr.mxu0 0.0
    %3196 = vmatpush2.msra.mxu0 0.0
    %3197 = vmatprep.subr.mxu0 0.0
    %3198 = vmatpush2.msra.mxu0 0.0
    %3199 = vmatprep.subr.mxu0 0.0
    %3200 = vmatpush2.msra.mxu0 0.0
    %3201 = vmatprep.subr.mxu0 0.0
    %3202 = vmatpush2.msra.mxu0 0.0
    %3203 = vmatprep.subr.mxu0 0.0
    %3204 = vmatpush2.msra.mxu0 0.0
    %3205 = vmatprep.subr.mxu0 0.0
    %3206 = vmatpush2.msra.mxu0 0.0
    %3207 = vmatprep.subr.mxu0 0.0
    %3208 = vmatpush2.msra.mxu0 0.0
    %3209 = vmatprep.subr.mxu0 0.0
    %3210 = vmatpush2.msra.mxu0 0.0
    %3211 = vmatprep.subr.mxu0 0.0
    %3212 = vmatpush2.msra.mxu0 0.0
    %3213 = vmatprep.subr.mxu0 0.0
    %3214 = vmatpush2.msra.mxu0 0.0
    %3215 = vmatprep.subr.mxu0 0.0
    %3216 = vmatpush2.msra.mxu0 0.0
    %3217 = vmatprep.mubr.f32.mxu0 0.0
    %3218 = vmatmul.mubr.f32.gmra.mxu0 %v3128
    %v3219 = vpop.f32.mrf.mxu0
    %v3220 = vadd.f32 0.0, %v3219
    %v3221 = vpop.f32.mrf.mxu0
    %3222 = vmatprep.mubr.f32.mxu0 0.0
    %3223 = vmatmul.mubr.f32.gmra.mxu0 %v3133
    %v3224 = vpop.f32.mrf.mxu0
    %v3225 = vadd.f32 0.0, %v3224
    %v3226 = vpop.f32.mrf.mxu0
    %3227 = vdwg.mxu0
    %3228 = vmatprep.subr.mxu0 0.0
    %3229 = vmatpush1.msra.mxu0 %v3051
    %3230 = vmatprep.subr.mxu0 0.0
    %3231 = vmatpush1.msra.mxu0 %v3050
    %3232 = vmatprep.subr.mxu0 0.0
    %3233 = vmatpush1.msra.mxu0 %v3049
    %3234 = vmatprep.subr.mxu0 0.0
    %3235 = vmatpush1.msra.mxu0 %v3048
    %3236 = vmatprep.subr.mxu0 0.0
    %3237 = vmatpush1.msra.mxu0 %v3047
    %3238 = vmatprep.subr.mxu0 0.0
    %3239 = vmatpush1.msra.mxu0 %v3046
    %3240 = vmatprep.subr.mxu0 0.0
    %3241 = vmatpush1.msra.mxu0 %v3045
    %3242 = vmatprep.subr.mxu0 0.0
    %3243 = vmatpush1.msra.mxu0 %v3044
    %3244 = vmatprep.subr.mxu0 0.0
    %3245 = vmatpush1.msra.mxu0 %v3043
    %3246 = vmatprep.subr.mxu0 0.0
    %3247 = vmatpush1.msra.mxu0 %v3042
    %3248 = vmatprep.subr.mxu0 0.0
    %3249 = vmatpush1.msra.mxu0 %v3041
    %3250 = vmatprep.subr.mxu0 0.0
    %3251 = vmatpush1.msra.mxu0 %v3040
    %3252 = vmatprep.subr.mxu0 0.0
    %3253 = vmatpush1.msra.mxu0 %v3039
    %3254 = vmatprep.subr.mxu0 0.0
    %3255 = vmatpush1.msra.mxu0 %v3038
    %3256 = vmatprep.subr.mxu0 0.0
    %3257 = vmatpush1.msra.mxu0 %v3037
    %3258 = vmatprep.subr.mxu0 0.0
    %3259 = vmatpush1.msra.mxu0 %v3036
    %3260 = vmatprep.subr.mxu0 0.0
    %3261 = vmatpush2.msra.mxu0 0.0
    %3262 = vmatprep.subr.mxu0 0.0
    %3263 = vmatpush2.msra.mxu0 0.0
    %3264 = vmatprep.subr.mxu0 0.0
    %3265 = vmatpush2.msra.mxu0 0.0
    %3266 = vmatprep.subr.mxu0 0.0
    %3267 = vmatpush2.msra.mxu0 0.0
    %3268 = vmatprep.subr.mxu0 0.0
    %3269 = vmatpush2.msra.mxu0 0.0
    %3270 = vmatprep.subr.mxu0 0.0
    %3271 = vmatpush2.msra.mxu0 0.0
    %3272 = vmatprep.subr.mxu0 0.0
    %3273 = vmatpush2.msra.mxu0 0.0
    %3274 = vmatprep.subr.mxu0 0.0
    %3275 = vmatpush2.msra.mxu0 0.0
    %3276 = vmatprep.subr.mxu0 0.0
    %3277 = vmatpush2.msra.mxu0 0.0
    %3278 = vmatprep.subr.mxu0 0.0
    %3279 = vmatpush2.msra.mxu0 0.0
    %3280 = vmatprep.subr.mxu0 0.0
    %3281 = vmatpush2.msra.mxu0 0.0
    %3282 = vmatprep.subr.mxu0 0.0
    %3283 = vmatpush2.msra.mxu0 0.0
    %3284 = vmatprep.subr.mxu0 0.0
    %3285 = vmatpush2.msra.mxu0 0.0
    %3286 = vmatprep.subr.mxu0 0.0
    %3287 = vmatpush2.msra.mxu0 0.0
    %3288 = vmatprep.subr.mxu0 0.0
    %3289 = vmatpush2.msra.mxu0 0.0
    %3290 = vmatprep.subr.mxu0 0.0
    %3291 = vmatpush2.msra.mxu0 0.0
    %3292 = vmatprep.mubr.f32.mxu0 0.0
    %3293 = vmatmul.mubr.f32.gmra.mxu0 %v3028
    %v3294 = vpop.f32.mrf.mxu0
    %v3295 = vadd.f32 %v3220, %v3294
    %v3296 = vpop.f32.mrf.mxu0
    %3297 = vmatprep.mubr.f32.mxu0 0.0
    %3298 = vmatmul.mubr.f32.gmra.mxu0 %v3033
    %v3299 = vpop.f32.mrf.mxu0
    %v3300 = vadd.f32 %v3225, %v3299
    %v3301 = vpop.f32.mrf.mxu0
    %3302 = vdwg.mxu0
    %s3303 = scalar_lea.vmem [#allocation15], 32
    %v3304 = vld [vmem:[%s3303] sm:$0xff]
    %v3305 = vld [vmem:[%s3303 + $0x8] sm:$0xff]
    %v3307 = vsel %vm239, %v3304, 0
    %v3310 = vsel %vm239, %v3305, 0
    %3312 = vmatprep.subr.mxu0 0.0
    %3313 = vmatpush1.msra.mxu0 0.0
    %3314 = vmatprep.subr.mxu0 0.0
    %3315 = vmatpush1.msra.mxu0 0.0
    %3316 = vmatprep.subr.mxu0 0.0
    %3317 = vmatpush1.msra.mxu0 0.0
    %3318 = vmatprep.subr.mxu0 0.0
    %3319 = vmatpush1.msra.mxu0 0.0
    %3320 = vmatprep.subr.mxu0 0.0
    %3321 = vmatpush1.msra.mxu0 0.0
    %3322 = vmatprep.subr.mxu0 0.0
    %3323 = vmatpush1.msra.mxu0 0.0
    %3324 = vmatprep.subr.mxu0 0.0
    %3325 = vmatpush1.msra.mxu0 0.0
    %3326 = vmatprep.subr.mxu0 0.0
    %3327 = vmatpush1.msra.mxu0 0.0
    %3328 = vmatprep.subr.mxu0 0.0
    %3329 = vmatpush1.msra.mxu0 0.0
    %3330 = vmatprep.subr.mxu0 0.0
    %3331 = vmatpush1.msra.mxu0 0.0
    %3332 = vmatprep.subr.mxu0 0.0
    %3333 = vmatpush1.msra.mxu0 0.0
    %3334 = vmatprep.subr.mxu0 0.0
    %3335 = vmatpush1.msra.mxu0 0.0
    %3336 = vmatprep.subr.mxu0 0.0
    %3337 = vmatpush1.msra.mxu0 %v2952
    %3338 = vmatprep.subr.mxu0 0.0
    %3339 = vmatpush1.msra.mxu0 %v2951
    %3340 = vmatprep.subr.mxu0 0.0
    %3341 = vmatpush1.msra.mxu0 %v2950
    %3342 = vmatprep.subr.mxu0 0.0
    %3343 = vmatpush1.msra.mxu0 %v2949
    %3344 = vmatprep.subr.mxu0 0.0
    %3345 = vmatpush2.msra.mxu0 0.0
    %3346 = vmatprep.subr.mxu0 0.0
    %3347 = vmatpush2.msra.mxu0 0.0
    %3348 = vmatprep.subr.mxu0 0.0
    %3349 = vmatpush2.msra.mxu0 0.0
    %3350 = vmatprep.subr.mxu0 0.0
    %3351 = vmatpush2.msra.mxu0 0.0
    %3352 = vmatprep.subr.mxu0 0.0
    %3353 = vmatpush2.msra.mxu0 0.0
    %3354 = vmatprep.subr.mxu0 0.0
    %3355 = vmatpush2.msra.mxu0 0.0
    %3356 = vmatprep.subr.mxu0 0.0
    %3357 = vmatpush2.msra.mxu0 0.0
    %3358 = vmatprep.subr.mxu0 0.0
    %3359 = vmatpush2.msra.mxu0 0.0
    %3360 = vmatprep.subr.mxu0 0.0
    %3361 = vmatpush2.msra.mxu0 0.0
    %3362 = vmatprep.subr.mxu0 0.0
    %3363 = vmatpush2.msra.mxu0 0.0
    %3364 = vmatprep.subr.mxu0 0.0
    %3365 = vmatpush2.msra.mxu0 0.0
    %3366 = vmatprep.subr.mxu0 0.0
    %3367 = vmatpush2.msra.mxu0 0.0
    %3368 = vmatprep.subr.mxu0 0.0
    %3369 = vmatpush2.msra.mxu0 0.0
    %3370 = vmatprep.subr.mxu0 0.0
    %3371 = vmatpush2.msra.mxu0 0.0
    %3372 = vmatprep.subr.mxu0 0.0
    %3373 = vmatpush2.msra.mxu0 0.0
    %3374 = vmatprep.subr.mxu0 0.0
    %3375 = vmatpush2.msra.mxu0 0.0
    %3376 = vmatprep.mubr.f32.mxu0 0.0
    %3377 = vmatmul.mubr.f32.gmra.mxu0 %v3307
    %v3378 = vpop.f32.mrf.mxu0
    %v3379 = vadd.f32 0.0, %v3378
    %v3380 = vpop.f32.mrf.mxu0
    %3381 = vmatprep.mubr.f32.mxu0 0.0
    %3382 = vmatmul.mubr.f32.gmra.mxu0 %v3310
    %v3383 = vpop.f32.mrf.mxu0
    %v3384 = vadd.f32 0.0, %v3383
    %v3385 = vpop.f32.mrf.mxu0
    %3386 = vdwg.mxu0
    %s3387 = scalar_lea.vmem [#allocation16], 256
    %v3388 = vld [vmem:[%s3387] sm:$0xff]
    %v3389 = vld [vmem:[%s3387 + $0x8] sm:$0xff]
    %v3390 = vld [vmem:[%s3387 + $0x10] sm:$0xff]
    %v3391 = vld [vmem:[%s3387 + $0x18] sm:$0xff]
    %v3392 = vld [vmem:[%s3387 + $0x20] sm:$0xff]
    %v3393 = vld [vmem:[%s3387 + $0x28] sm:$0xff]
    %v3394 = vld [vmem:[%s3387 + $0x30] sm:$0xff]
    %v3395 = vld [vmem:[%s3387 + $0x38] sm:$0xff]
    %v3396 = vld [vmem:[%s3387 + $0x40] sm:$0xff]
    %v3397 = vld [vmem:[%s3387 + $0x48] sm:$0xff]
    %v3398 = vld [vmem:[%s3387 + $0x50] sm:$0xff]
    %v3399 = vld [vmem:[%s3387 + $0x58] sm:$0xff]
    %v3400 = vld [vmem:[%s3387 + $0x60] sm:$0xff]
    %v3401 = vld [vmem:[%s3387 + $0x68] sm:$0xff]
    %v3402 = vld [vmem:[%s3387 + $0x70] sm:$0xff]
    %v3403 = vld [vmem:[%s3387 + $0x78] sm:$0xff]
    %3404 = vmatprep.subr.mxu0 0.0
    %3405 = vmatpush1.msra.mxu0 %v3403
    %3406 = vmatprep.subr.mxu0 0.0
    %3407 = vmatpush1.msra.mxu0 %v3402
    %3408 = vmatprep.subr.mxu0 0.0
    %3409 = vmatpush1.msra.mxu0 %v3401
    %3410 = vmatprep.subr.mxu0 0.0
    %3411 = vmatpush1.msra.mxu0 %v3400
    %3412 = vmatprep.subr.mxu0 0.0
    %3413 = vmatpush1.msra.mxu0 %v3399
    %3414 = vmatprep.subr.mxu0 0.0
    %3415 = vmatpush1.msra.mxu0 %v3398
    %3416 = vmatprep.subr.mxu0 0.0
    %3417 = vmatpush1.msra.mxu0 %v3397
    %3418 = vmatprep.subr.mxu0 0.0
    %3419 = vmatpush1.msra.mxu0 %v3396
    %3420 = vmatprep.subr.mxu0 0.0
    %3421 = vmatpush1.msra.mxu0 %v3395
    %3422 = vmatprep.subr.mxu0 0.0
    %3423 = vmatpush1.msra.mxu0 %v3394
    %3424 = vmatprep.subr.mxu0 0.0
    %3425 = vmatpush1.msra.mxu0 %v3393
    %3426 = vmatprep.subr.mxu0 0.0
    %3427 = vmatpush1.msra.mxu0 %v3392
    %3428 = vmatprep.subr.mxu0 0.0
    %3429 = vmatpush1.msra.mxu0 %v3391
    %3430 = vmatprep.subr.mxu0 0.0
    %3431 = vmatpush1.msra.mxu0 %v3390
    %3432 = vmatprep.subr.mxu0 0.0
    %3433 = vmatpush1.msra.mxu0 %v3389
    %3434 = vmatprep.subr.mxu0 0.0
    %3435 = vmatpush1.msra.mxu0 %v3388
    %3436 = vmatprep.subr.mxu0 0.0
    %3437 = vmatpush2.msra.mxu0 0.0
    %3438 = vmatprep.subr.mxu0 0.0
    %3439 = vmatpush2.msra.mxu0 0.0
    %3440 = vmatprep.subr.mxu0 0.0
    %3441 = vmatpush2.msra.mxu0 0.0
    %3442 = vmatprep.subr.mxu0 0.0
    %3443 = vmatpush2.msra.mxu0 0.0
    %3444 = vmatprep.subr.mxu0 0.0
    %3445 = vmatpush2.msra.mxu0 0.0
    %3446 = vmatprep.subr.mxu0 0.0
    %3447 = vmatpush2.msra.mxu0 0.0
    %3448 = vmatprep.subr.mxu0 0.0
    %3449 = vmatpush2.msra.mxu0 0.0
    %3450 = vmatprep.subr.mxu0 0.0
    %3451 = vmatpush2.msra.mxu0 0.0
    %3452 = vmatprep.subr.mxu0 0.0
    %3453 = vmatpush2.msra.mxu0 0.0
    %3454 = vmatprep.subr.mxu0 0.0
    %3455 = vmatpush2.msra.mxu0 0.0
    %3456 = vmatprep.subr.mxu0 0.0
    %3457 = vmatpush2.msra.mxu0 0.0
    %3458 = vmatprep.subr.mxu0 0.0
    %3459 = vmatpush2.msra.mxu0 0.0
    %3460 = vmatprep.subr.mxu0 0.0
    %3461 = vmatpush2.msra.mxu0 0.0
    %3462 = vmatprep.subr.mxu0 0.0
    %3463 = vmatpush2.msra.mxu0 0.0
    %3464 = vmatprep.subr.mxu0 0.0
    %3465 = vmatpush2.msra.mxu0 0.0
    %3466 = vmatprep.subr.mxu0 0.0
    %3467 = vmatpush2.msra.mxu0 0.0
    %3468 = vmatprep.mubr.f32.mxu0 0.0
    %3469 = vmatmul.mubr.f32.gmra.mxu0 %v3379
    %v3470 = vpop.f32.mrf.mxu0
    %v3471 = vadd.f32 0.0, %v3470
    %v3472 = vpop.f32.mrf.mxu0
    %3473 = vmatprep.mubr.f32.mxu0 0.0
    %3474 = vmatmul.mubr.f32.gmra.mxu0 %v3384
    %v3475 = vpop.f32.mrf.mxu0
    %v3476 = vadd.f32 0.0, %v3475
    %v3477 = vpop.f32.mrf.mxu0
    %3478 = vdwg.mxu0
    %v3479 = vadd.f32 %v3295, %v3471
    %v3480 = vadd.f32 %v3300, %v3476
    %v3481 = vld [vmem:[#allocation18] sm:$0x1]
    %v3483 = vlaneseq
    %v3484 = vshrl.u32 %v3483, 7
    %v3485 = vsub.s32 0, %v3484
    %v3486 = vrot.slane %v3481, %v3485
    %v3488 = vadd.f32 %v3479, %v3486
    %v3489 = vadd.f32 %v3480, %v3486
    %v3490 = vmax.f32 %v3488, 0.0
    %v3491 = vmax.f32 %v3489, 0.0
    %v3492 = vld [vmem:[#allocation19] sm:$0xf]
    %v3494 = vsel %vm1649, %v3492, 0
    %3496 = vmatprep.subr.mxu0 0.0
    %3497 = vmatpush1.msra.mxu0 0.0
    %3498 = vmatprep.subr.mxu0 0.0
    %3499 = vmatpush1.msra.mxu0 0.0
    %3500 = vmatprep.subr.mxu0 0.0
    %3501 = vmatpush1.msra.mxu0 0.0
    %3502 = vmatprep.subr.mxu0 0.0
    %3503 = vmatpush1.msra.mxu0 0.0
    %3504 = vmatprep.subr.mxu0 0.0
    %3505 = vmatpush1.msra.mxu0 0.0
    %3506 = vmatprep.subr.mxu0 0.0
    %3507 = vmatpush1.msra.mxu0 0.0
    %3508 = vmatprep.subr.mxu0 0.0
    %3509 = vmatpush1.msra.mxu0 0.0
    %3510 = vmatprep.subr.mxu0 0.0
    %3511 = vmatpush1.msra.mxu0 0.0
    %3512 = vmatprep.subr.mxu0 0.0
    %3513 = vmatpush1.msra.mxu0 0.0
    %3514 = vmatprep.subr.mxu0 0.0
    %3515 = vmatpush1.msra.mxu0 0.0
    %3516 = vmatprep.subr.mxu0 0.0
    %3517 = vmatpush1.msra.mxu0 0.0
    %3518 = vmatprep.subr.mxu0 0.0
    %3519 = vmatpush1.msra.mxu0 0.0
    %3520 = vmatprep.subr.mxu0 0.0
    %3521 = vmatpush1.msra.mxu0 0.0
    %3522 = vmatprep.subr.mxu0 0.0
    %3523 = vmatpush1.msra.mxu0 0.0
    %3524 = vmatprep.subr.mxu0 0.0
    %3525 = vmatpush1.msra.mxu0 %v3491
    %3526 = vmatprep.subr.mxu0 0.0
    %3527 = vmatpush1.msra.mxu0 %v3490
    %3528 = vmatprep.subr.mxu0 0.0
    %3529 = vmatpush2.msra.mxu0 0.0
    %3530 = vmatprep.subr.mxu0 0.0
    %3531 = vmatpush2.msra.mxu0 0.0
    %3532 = vmatprep.subr.mxu0 0.0
    %3533 = vmatpush2.msra.mxu0 0.0
    %3534 = vmatprep.subr.mxu0 0.0
    %3535 = vmatpush2.msra.mxu0 0.0
    %3536 = vmatprep.subr.mxu0 0.0
    %3537 = vmatpush2.msra.mxu0 0.0
    %3538 = vmatprep.subr.mxu0 0.0
    %3539 = vmatpush2.msra.mxu0 0.0
    %3540 = vmatprep.subr.mxu0 0.0
    %3541 = vmatpush2.msra.mxu0 0.0
    %3542 = vmatprep.subr.mxu0 0.0
    %3543 = vmatpush2.msra.mxu0 0.0
    %3544 = vmatprep.subr.mxu0 0.0
    %3545 = vmatpush2.msra.mxu0 0.0
    %3546 = vmatprep.subr.mxu0 0.0
    %3547 = vmatpush2.msra.mxu0 0.0
    %3548 = vmatprep.subr.mxu0 0.0
    %3549 = vmatpush2.msra.mxu0 0.0
    %3550 = vmatprep.subr.mxu0 0.0
    %3551 = vmatpush2.msra.mxu0 0.0
    %3552 = vmatprep.subr.mxu0 0.0
    %3553 = vmatpush2.msra.mxu0 0.0
    %3554 = vmatprep.subr.mxu0 0.0
    %3555 = vmatpush2.msra.mxu0 0.0
    %3556 = vmatprep.subr.mxu0 0.0
    %3557 = vmatpush2.msra.mxu0 0.0
    %3558 = vmatprep.subr.mxu0 0.0
    %3559 = vmatpush2.msra.mxu0 0.0
    %3560 = vmatprep.mubr.f32.mxu0 0.0
    %3561 = vmatmul.mubr.f32.gmra.mxu0 %v3494
    %v3562 = vpop.f32.mrf.mxu0
    %v3563 = vadd.f32 0.0, %v3562
    %v3564 = vpop.f32.mrf.mxu0
    %3565 = vdwg.mxu0
    %v3566 = vld [vmem:[%s18] sm:$0xff]
    %v3567 = vld [vmem:[%s18 + $0x8] sm:$0xff]
    %v3568 = vld [vmem:[%s18 + $0x10] sm:$0xff]
    %v3569 = vld [vmem:[%s18 + $0x18] sm:$0xff]
    %v3570 = vld [vmem:[%s18 + $0x20] sm:$0xff]
    %v3571 = vld [vmem:[%s18 + $0x28] sm:$0xff]
    %v3572 = vld [vmem:[%s18 + $0x30] sm:$0xff]
    %v3573 = vld [vmem:[%s18 + $0x38] sm:$0xff]
    %v3574 = vld [vmem:[%s18 + $0x40] sm:$0xff]
    %v3575 = vld [vmem:[%s18 + $0x48] sm:$0xff]
    %v3576 = vld [vmem:[%s18 + $0x50] sm:$0xff]
    %v3577 = vld [vmem:[%s18 + $0x58] sm:$0xff]
    %v3578 = vld [vmem:[%s18 + $0x60] sm:$0xff]
    %v3579 = vld [vmem:[%s18 + $0x68] sm:$0xff]
    %v3580 = vld [vmem:[%s18 + $0x70] sm:$0xff]
    %v3581 = vld [vmem:[%s18 + $0x78] sm:$0xff]
    %v3582 = vld [vmem:[#allocation21] sm:$0x1]
    %v3584 = vlaneseq
    %v3585 = vshrl.u32 %v3584, 7
    %v3586 = vsub.s32 0, %v3585
    %v3587 = vrot.slane %v3582, %v3586
    %3589 = vmatprep.subr.mxu0 0.0
    %3590 = vmatpush1.msra.mxu0 %v3581
    %3591 = vmatprep.subr.mxu0 0.0
    %3592 = vmatpush1.msra.mxu0 %v3580
    %3593 = vmatprep.subr.mxu0 0.0
    %3594 = vmatpush1.msra.mxu0 %v3579
    %3595 = vmatprep.subr.mxu0 0.0
    %3596 = vmatpush1.msra.mxu0 %v3578
    %3597 = vmatprep.subr.mxu0 0.0
    %3598 = vmatpush1.msra.mxu0 %v3577
    %3599 = vmatprep.subr.mxu0 0.0
    %3600 = vmatpush1.msra.mxu0 %v3576
    %3601 = vmatprep.subr.mxu0 0.0
    %3602 = vmatpush1.msra.mxu0 %v3575
    %3603 = vmatprep.subr.mxu0 0.0
    %3604 = vmatpush1.msra.mxu0 %v3574
    %3605 = vmatprep.subr.mxu0 0.0
    %3606 = vmatpush1.msra.mxu0 %v3573
    %3607 = vmatprep.subr.mxu0 0.0
    %3608 = vmatpush1.msra.mxu0 %v3572
    %3609 = vmatprep.subr.mxu0 0.0
    %3610 = vmatpush1.msra.mxu0 %v3571
    %3611 = vmatprep.subr.mxu0 0.0
    %3612 = vmatpush1.msra.mxu0 %v3570
    %3613 = vmatprep.subr.mxu0 0.0
    %3614 = vmatpush1.msra.mxu0 %v3569
    %3615 = vmatprep.subr.mxu0 0.0
    %3616 = vmatpush1.msra.mxu0 %v3568
    %3617 = vmatprep.subr.mxu0 0.0
    %3618 = vmatpush1.msra.mxu0 %v3567
    %3619 = vmatprep.subr.mxu0 0.0
    %3620 = vmatpush1.msra.mxu0 %v3566
    %3621 = vmatprep.subr.mxu0 0.0
    %3622 = vmatpush2.msra.mxu0 0.0
    %3623 = vmatprep.subr.mxu0 0.0
    %3624 = vmatpush2.msra.mxu0 0.0
    %3625 = vmatprep.subr.mxu0 0.0
    %3626 = vmatpush2.msra.mxu0 0.0
    %3627 = vmatprep.subr.mxu0 0.0
    %3628 = vmatpush2.msra.mxu0 0.0
    %3629 = vmatprep.subr.mxu0 0.0
    %3630 = vmatpush2.msra.mxu0 0.0
    %3631 = vmatprep.subr.mxu0 0.0
    %3632 = vmatpush2.msra.mxu0 0.0
    %3633 = vmatprep.subr.mxu0 0.0
    %3634 = vmatpush2.msra.mxu0 0.0
    %3635 = vmatprep.subr.mxu0 0.0
    %3636 = vmatpush2.msra.mxu0 0.0
    %3637 = vmatprep.subr.mxu0 0.0
    %3638 = vmatpush2.msra.mxu0 0.0
    %3639 = vmatprep.subr.mxu0 0.0
    %3640 = vmatpush2.msra.mxu0 0.0
    %3641 = vmatprep.subr.mxu0 0.0
    %3642 = vmatpush2.msra.mxu0 0.0
    %3643 = vmatprep.subr.mxu0 0.0
    %3644 = vmatpush2.msra.mxu0 0.0
    %3645 = vmatprep.subr.mxu0 0.0
    %3646 = vmatpush2.msra.mxu0 0.0
    %3647 = vmatprep.subr.mxu0 0.0
    %3648 = vmatpush2.msra.mxu0 0.0
    %3649 = vmatprep.subr.mxu0 0.0
    %3650 = vmatpush2.msra.mxu0 0.0
    %3651 = vmatprep.subr.mxu0 0.0
    %3652 = vmatpush2.msra.mxu0 0.0
    %3653 = vmatprep.mubr.f32.mxu0 0.0
    %3654 = vmatmul.mubr.f32.gmra.mxu0 %v3563
    %v3655 = vpop.f32.mrf.mxu0
    %v3656 = vadd.f32 %v3587, %v3655
    %v3657 = vpop.f32.mrf.mxu0
    %3658 = vdwg.mxu0
    %vm3659 = vcmask 257024
    %3660 = vst.msk [vmem:[%s23] sm:$0xf] %vm3659, %v3656
    // Predicated region
    $region134: #{forward.1} parent=1 // pred_check
      _
    $region135: #{forward.1} parent=1 // pred_check_branch
      %3662 = sbr.rel (0) target = $region137
    $region136: #{forward.1} parent=1 // pred_region
      _
    $region137: #{forward.1} parent=1 // pred_fallthru
      _
    // Predicated region
    $region138: #{forward.1} parent=1 // pred_check
      _
    $region139: #{forward.1} parent=1 // pred_check_branch
      %3664 = sbr.rel (0) target = $region141
    $region140: #{forward.1} parent=1 // pred_region
      _
    $region141: #{forward.1} parent=1 // pred_fallthru
      _
    // Predicated region
    $region142: #{forward.1} parent=1 // pred_check
      _
    $region143: #{forward.1} parent=1 // pred_check_branch
      %3666 = sbr.rel (0) target = $region145
    $region144: #{forward.1} parent=1 // pred_region
      _
    $region145: #{forward.1} parent=1 // pred_fallthru
      _
    // Predicated region
    $region146: #{forward.1} parent=1 // pred_check
      _
    $region147: #{forward.1} parent=1 // pred_check_branch
      %3668 = sbr.rel (0) target = $region149
    $region148: #{forward.1} parent=1 // pred_region
      _
    $region149: #{forward.1} parent=1 // pred_fallthru
      _
    // Predicated region
    $region150: #{forward.1} parent=1 // pred_check
      _
    $region151: #{forward.1} parent=1 // pred_check_branch
      %3670 = sbr.rel (0) target = $region153
    $region152: #{forward.1} parent=1 // pred_region
      _
    $region153: #{forward.1} parent=1 // pred_fallthru
      _
    // Predicated region
    $region154: #{forward.1} parent=1 // pred_check
      _
    $region155: #{forward.1} parent=1 // pred_check_branch
      %3672 = sbr.rel (0) target = $region157
    $region156: #{forward.1} parent=1 // pred_region
      _
    $region157: #{forward.1} parent=1 // pred_fallthru
      _
    // Predicated region
    $region158: #{forward.1} parent=1 // pred_check
      _
    $region159: #{forward.1} parent=1 // pred_check_branch
      %3674 = sbr.rel (0) target = $region161
    $region160: #{forward.1} parent=1 // pred_region
      _
    $region161: #{forward.1} parent=1 // pred_fallthru
      _
    // Predicated region
    $region162: #{forward.1} parent=1 // pred_check
      _
    $region163: #{forward.1} parent=1 // pred_check_branch
      %3676 = sbr.rel (0) target = $region165
    $region164: #{forward.1} parent=1 // pred_region
      _
    $region165: #{forward.1} parent=1 // pred_fallthru
      _
    %3677 = vsyncpa [#allocation3], 1
    %3678 = vsyncpa [#allocation5], 1
    %3679 = vsyncpa [#allocation8], 1
    %3680 = vsyncpa [#allocation11], 1
    %3681 = vsyncpa [#allocation14], 1
    %3682 = vsyncpa [#allocation17], 1
    %3683 = vsyncpa [#allocation20], 1

</llo_original>
